<compile_context>
chip_gen: v5e
topology: v5e:2x2
jax: 0.10.0
libtpu: 0.0.40
codegen_flags: <defaults>
</compile_context>

<pallas_src>
import numpy as np
import jax
import jax.numpy as jnp
from jax.experimental import pallas as pl
from jax.experimental.pallas import tpu as pltpu

NUM_CLASSES = 10
OUT_PAD = 128          # lane-dense logits width
IN_FEATURES = 3072     # 3 * 32 * 32
NEG_BIG = -1e30        # finite mask value for padded logit lanes

# Layer dims of the original module (in, out).
_LAYER_DIMS = [(3072, 512), (512, 256), (256, 128), (128, 64), (64, 10)]


def _round_up(x, m):
    return ((x + m - 1) // m) * m


# ---------------------------------------------------------------------------
# Pallas kernel: full forward pass of the 5-layer expander MLP for one batch
# tile.  Weight refs are whole (padded, pre-masked, pre-transposed) matrices,
# VMEM-resident across all batch tiles.  x tile arrives already in bf16.
# ---------------------------------------------------------------------------
def mlp_expander_kernel(x_ref, w1_ref, w2_ref, w3_ref, w4_ref, w5_ref, o_ref):
    bf16 = jnp.bfloat16
    h = x_ref[...]                                                         # (TB, 3072) bf16

    h = jnp.maximum(
        jnp.dot(h, w1_ref[...], preferred_element_type=jnp.float32), 0.0
    ).astype(bf16)                                                         # (TB, 512)
    h = jnp.maximum(
        jnp.dot(h, w2_ref[...], preferred_element_type=jnp.float32), 0.0
    ).astype(bf16)                                                         # (TB, 256)
    h = jnp.maximum(
        jnp.dot(h, w3_ref[...], preferred_element_type=jnp.float32), 0.0
    ).astype(bf16)                                                         # (TB, 128)
    h = jnp.maximum(
        jnp.dot(h, w4_ref[...], preferred_element_type=jnp.float32), 0.0
    ).astype(bf16)                                                         # (TB, 128) cols>=64 are 0
    logits = jnp.dot(h, w5_ref[...], preferred_element_type=jnp.float32)   # (TB, 128) f32

    # Mask padded logit lanes (>= NUM_CLASSES) with a large finite negative so
    # the log_softmax reduction only sees the 10 real classes and no Inf/NaN
    # can leak through the padded lanes.
    lane = jax.lax.broadcasted_iota(jnp.int32, logits.shape, 1)
    logits = jnp.where(lane < NUM_CLASSES, logits, NEG_BIG)

    # Numerically stable log_softmax along dim=1 (f32 throughout).
    m = jnp.max(logits, axis=1, keepdims=True)
    shifted = logits - m
    lse = jnp.log(jnp.sum(jnp.exp(shifted), axis=1, keepdims=True))
    o_ref[...] = (shifted - lse).astype(o_ref.dtype)


# ---------------------------------------------------------------------------
# Wrapper: batch-tiled pallas_call with VMEM-resident weights.
# ---------------------------------------------------------------------------
def mlp_expander_forward(x_flat, weights):
    """x_flat: (B, 3072); weights: 5 pre-masked/transposed/padded bf16 mats."""
    B, d_in = x_flat.shape
    assert d_in == IN_FEATURES

    # bf16 input halves the dominant per-tile HBM stream and removes the
    # in-kernel cast.  (In a real pipeline the producer would emit bf16 and
    # this cast fuses away.)
    x_flat = x_flat.astype(jnp.bfloat16)

    # Batch tile: multiple of 16 sublanes (native bf16 tile), up to 512 rows.
    tile_b = min(512, _round_up(B, 16))

    if B < tile_b:
        # Tiny batch: pad up to one full tile (cheap — at most one tile copied).
        x_flat = jnp.pad(x_flat, ((0, tile_b - B), (0, 0)))
        b_grid = tile_b
    else:
        # Large batch: no full-array pad; a ragged last tile is handled by
        # Pallas partial blocks (garbage rows are independent and sliced off).
        b_grid = B

    n_tiles = pl.cdiv(b_grid, tile_b)

    x_spec = pl.BlockSpec((tile_b, IN_FEATURES), lambda i: (i, 0))
    # Constant index_map: weight blocks never change -> DMA'd once, VMEM-resident.
    w_specs = [pl.BlockSpec(w.shape, lambda i: (0, 0)) for w in weights]
    out_spec = pl.BlockSpec((tile_b, OUT_PAD), lambda i: (i, 0))

    # Only shard the batch axis across cores when there is more than one tile;
    # otherwise the second TC would just duplicate the weight DMA.
    dim_sem = ("parallel",) if n_tiles >= 2 else ("arbitrary",)

    flops = 2 * b_grid * (3072 * 512 + 512 * 256 + 256 * 128 + 128 * 128 + 128 * 128)
    bytes_accessed = (
        sum(int(np.prod(w.shape)) * 2 for w in weights)   # bf16 weights (once)
        + b_grid * IN_FEATURES * 2                         # bf16 input
        + b_grid * OUT_PAD * 4                             # f32 output
    )

    out = pl.pallas_call(
        mlp_expander_kernel,
        out_shape=jax.ShapeDtypeStruct((b_grid, OUT_PAD), jnp.float32),
        grid=(n_tiles,),
        in_specs=[x_spec] + w_specs,
        out_specs=out_spec,
        compiler_params=pltpu.CompilerParams(
            dimension_semantics=dim_sem,
            vmem_limit_bytes=32 << 20,
        ),
        cost_estimate=pl.CostEstimate(
            flops=flops,
            transcendentals=b_grid * OUT_PAD,
            bytes_accessed=bytes_accessed,
        ),
    )(x_flat, *weights)

    return out[:B, :NUM_CLASSES]


# ---------------------------------------------------------------------------
# Deterministic parameter / expander-mask construction (glue, plain JAX).
# ---------------------------------------------------------------------------
def make_expander_mask(key, out_dim, in_dim, expand_size):
    """Each output unit connects to exactly `expand_size` distinct inputs."""
    u = jax.random.uniform(key, (out_dim, in_dim))
    order = jnp.argsort(u, axis=1)
    ranks = jnp.argsort(order, axis=1)
    return (ranks < expand_size).astype(jnp.float32)


def make_expander_linear(key, in_dim, out_dim, expand_size):
    k_w, k_m = jax.random.split(key)
    # Kaiming-like deterministic init (ExpanderLinear has weight + mask, no bias).
    w = jax.random.normal(k_w, (out_dim, in_dim), dtype=jnp.float32) / np.sqrt(in_dim)
    mask = make_expander_mask(k_m, out_dim, in_dim, expand_size)
    # Pre-mask and pre-transpose to (in, out) for the kernel.
    return (w * mask).T


def build_params(sparsity, key):
    expand_sizes = [
        int(np.floor(0.005 * sparsity * 3072)),
        int(np.floor(0.005 * sparsity * 512)),
        int(np.floor(0.005 * sparsity * 256)),
        int(np.floor(0.005 * sparsity * 128)),
        int(np.floor(0.01 * sparsity * 64)),
    ]
    keys = jax.random.split(key, len(_LAYER_DIMS))
    ws = [
        make_expander_linear(k, din, dout, es)
        for k, (din, dout), es in zip(keys, _LAYER_DIMS, expand_sizes)
    ]
    # Lane-pad narrow tail layers to 128 so all matmuls / stores are lane-dense:
    #   W4: (128, 64) -> (128, 128)   zero output cols 64..127
    #   W5: (64, 10)  -> (128, 128)   zero input rows 64..127, zero output cols 10..127
    ws[3] = jnp.pad(ws[3], ((0, 0), (0, 128 - 64)))
    ws[4] = jnp.pad(ws[4], ((0, 128 - 64), (0, 128 - NUM_CLASSES)))
    # bf16 weights halve the (dominant) HBM weight-streaming traffic vs f32.
    return [w.astype(jnp.bfloat16) for w in ws]


if __name__ == "__main__":
    key = jax.random.PRNGKey(0)
    k_x, k_p = jax.random.split(key)

    sparsity = 50  # synthetic choice; controls expander connectivity
    weights = build_params(sparsity, k_p)

    # NCHW input (CIFAR-like: 3*32*32 = 3072 features), small batch.
    B = 2
    x = jax.random.normal(k_x, (B, 3, 32, 32), dtype=jnp.float32)
    x_flat = x.reshape(B, -1)  # == x.view(x.shape[0], -1)

    out = mlp_expander_forward(x_flat, weights)
    out = jax.block_until_ready(out)

    assert out.shape == (B, NUM_CLASSES)
    out_np = np.asarray(out)
    assert np.isfinite(out_np).all()
    # log_softmax rows should sum (in prob space) to 1
    assert np.allclose(np.exp(out_np).sum(axis=1), 1.0, atol=1e-4)
    print("KERNEL_OK")
</pallas_src>

<mosaic_0001>
module attributes {stable_mosaic.version = 11 : i64} {
  func.func @mlp_expander_kernel(%arg0: i32, %arg1: memref<16x3072xbf16, #tpu.memory_space<vmem>>, %arg2: memref<3072x512xbf16, #tpu.memory_space<vmem>>, %arg3: memref<512x256xbf16, #tpu.memory_space<vmem>>, %arg4: memref<256x128xbf16, #tpu.memory_space<vmem>>, %arg5: memref<128x128xbf16, #tpu.memory_space<vmem>>, %arg6: memref<128x128xbf16, #tpu.memory_space<vmem>>, %arg7: memref<16x128xf32, #tpu.memory_space<vmem>>) attributes {dimension_semantics = [#tpu.dimension_semantics<arbitrary>], iteration_bounds = array<i64: 1>, scalar_prefetch = 0 : i64, scratch_operands = 0 : i64, tpu.core_type = #tpu.core_type<tc>, window_params = [{transform_indices = @transform_0, window_bounds = array<i64: 16, 3072>}, {pipeline_mode = #tpu.pipeline_mode<synchronous>, transform_indices = @transform_1, window_bounds = array<i64: 3072, 512>}, {pipeline_mode = #tpu.pipeline_mode<synchronous>, transform_indices = @transform_2, window_bounds = array<i64: 512, 256>}, {pipeline_mode = #tpu.pipeline_mode<synchronous>, transform_indices = @transform_3, window_bounds = array<i64: 256, 128>}, {pipeline_mode = #tpu.pipeline_mode<synchronous>, transform_indices = @transform_4, window_bounds = array<i64: 128, 128>}, {pipeline_mode = #tpu.pipeline_mode<synchronous>, transform_indices = @transform_5, window_bounds = array<i64: 128, 128>}, {transform_indices = @transform_6, window_bounds = array<i64: 16, 128>}]} {
    %c0 = arith.constant 0 : index
    %c0_0 = arith.constant 0 : index
    %0 = vector.load %arg1[%c0, %c0_0] : memref<16x3072xbf16, #tpu.memory_space<vmem>>, vector<16x3072xbf16>
    %c0_1 = arith.constant 0 : index
    %c0_2 = arith.constant 0 : index
    %1 = vector.load %arg2[%c0_1, %c0_2] : memref<3072x512xbf16, #tpu.memory_space<vmem>>, vector<3072x512xbf16>
    %cst = arith.constant dense<0.000000e+00> : vector<16x512xf32>
    %2 = tpu.matmul %0, %1, %cst {dimension_numbers = #tpu.dot_dimension_numbers<[1], [0], [0], [1], [0, 0, 1, 1], [], []>} : vector<16x3072xbf16>, vector<3072x512xbf16>, vector<16x512xf32> -> vector<16x512xf32>
    %cst_3 = arith.constant 0.000000e+00 : f32
    %3 = vector.broadcast %cst_3 : f32 to vector<16x512xf32>
    %4 = arith.maximumf %2, %3 : vector<16x512xf32>
    %5 = arith.truncf %4 : vector<16x512xf32> to vector<16x512xbf16>
    %c0_4 = arith.constant 0 : index
    %c0_5 = arith.constant 0 : index
    %6 = vector.load %arg3[%c0_4, %c0_5] : memref<512x256xbf16, #tpu.memory_space<vmem>>, vector<512x256xbf16>
    %cst_6 = arith.constant dense<0.000000e+00> : vector<16x256xf32>
    %7 = tpu.matmul %5, %6, %cst_6 {dimension_numbers = #tpu.dot_dimension_numbers<[1], [0], [0], [1], [0, 0, 1, 1], [], []>} : vector<16x512xbf16>, vector<512x256xbf16>, vector<16x256xf32> -> vector<16x256xf32>
    %cst_7 = arith.constant 0.000000e+00 : f32
    %8 = vector.broadcast %cst_7 : f32 to vector<16x256xf32>
    %9 = arith.maximumf %7, %8 : vector<16x256xf32>
    %10 = arith.truncf %9 : vector<16x256xf32> to vector<16x256xbf16>
    %c0_8 = arith.constant 0 : index
    %c0_9 = arith.constant 0 : index
    %11 = vector.load %arg4[%c0_8, %c0_9] : memref<256x128xbf16, #tpu.memory_space<vmem>>, vector<256x128xbf16>
    %cst_10 = arith.constant dense<0.000000e+00> : vector<16x128xf32>
    %12 = tpu.matmul %10, %11, %cst_10 {dimension_numbers = #tpu.dot_dimension_numbers<[1], [0], [0], [1], [0, 0, 1, 1], [], []>} : vector<16x256xbf16>, vector<256x128xbf16>, vector<16x128xf32> -> vector<16x128xf32>
    %cst_11 = arith.constant 0.000000e+00 : f32
    %13 = vector.broadcast %cst_11 : f32 to vector<16x128xf32>
    %14 = arith.maximumf %12, %13 : vector<16x128xf32>
    %15 = arith.truncf %14 : vector<16x128xf32> to vector<16x128xbf16>
    %c0_12 = arith.constant 0 : index
    %c0_13 = arith.constant 0 : index
    %16 = vector.load %arg5[%c0_12, %c0_13] : memref<128x128xbf16, #tpu.memory_space<vmem>>, vector<128x128xbf16>
    %cst_14 = arith.constant dense<0.000000e+00> : vector<16x128xf32>
    %17 = tpu.matmul %15, %16, %cst_14 {dimension_numbers = #tpu.dot_dimension_numbers<[1], [0], [0], [1], [0, 0, 1, 1], [], []>} : vector<16x128xbf16>, vector<128x128xbf16>, vector<16x128xf32> -> vector<16x128xf32>
    %cst_15 = arith.constant 0.000000e+00 : f32
    %18 = vector.broadcast %cst_15 : f32 to vector<16x128xf32>
    %19 = arith.maximumf %17, %18 : vector<16x128xf32>
    %20 = arith.truncf %19 : vector<16x128xf32> to vector<16x128xbf16>
    %c0_16 = arith.constant 0 : index
    %c0_17 = arith.constant 0 : index
    %21 = vector.load %arg6[%c0_16, %c0_17] : memref<128x128xbf16, #tpu.memory_space<vmem>>, vector<128x128xbf16>
    %cst_18 = arith.constant dense<0.000000e+00> : vector<16x128xf32>
    %22 = tpu.matmul %20, %21, %cst_18 {dimension_numbers = #tpu.dot_dimension_numbers<[1], [0], [0], [1], [0, 0, 1, 1], [], []>} : vector<16x128xbf16>, vector<128x128xbf16>, vector<16x128xf32> -> vector<16x128xf32>
    %23 = tpu.iota {dimensions = array<i32: 1>} : vector<16x128xi32>
    %c10_i32 = arith.constant 10 : i32
    %24 = vector.broadcast %c10_i32 : i32 to vector<16x128xi32>
    %25 = arith.cmpi slt, %23, %24 : vector<16x128xi32>
    %cst_19 = arith.constant -1.000000e+30 : f32
    %26 = vector.broadcast %cst_19 : f32 to vector<16x128xf32>
    %27 = arith.select %25, %22, %26 : vector<16x128xi1>, vector<16x128xf32>
    %cst_20 = arith.constant dense<0xFF800000> : vector<16xf32>
    %28 = vector.multi_reduction <maximumf>, %27, %cst_20 [1] : vector<16x128xf32> to vector<16xf32>
    %29 = vector.shape_cast %28 : vector<16xf32> to vector<16x1xf32>
    %30 = vector.broadcast %29 : vector<16x1xf32> to vector<16x128xf32>
    %31 = arith.subf %27, %30 : vector<16x128xf32>
    %32 = math.exp %31 : vector<16x128xf32>
    %cst_21 = arith.constant dense<0.000000e+00> : vector<16xf32>
    %33 = vector.multi_reduction <add>, %32, %cst_21 [1] : vector<16x128xf32> to vector<16xf32>
    %34 = vector.shape_cast %33 : vector<16xf32> to vector<16x1xf32>
    %35 = math.log %34 : vector<16x1xf32>
    %36 = vector.broadcast %35 : vector<16x1xf32> to vector<16x128xf32>
    %37 = arith.subf %31, %36 : vector<16x128xf32>
    %c0_22 = arith.constant 0 : index
    %c0_23 = arith.constant 0 : index
    %38 = vector.load %arg7[%c0_22, %c0_23] : memref<16x128xf32, #tpu.memory_space<vmem>>, vector<16x128xf32>
    tpu.vector_store %arg7[%c0_22, %c0_23], %37 {strides = array<i32>} : memref<16x128xf32, #tpu.memory_space<vmem>>, vector<16x128xf32>,
    return
  }
  func.func @transform_0(%arg0: i32) -> (i32, i32) {
    %c0_i32 = arith.constant 0 : i32
    %c0_i32_0 = arith.constant 0 : i32
    return %arg0, %c0_i32 : i32, i32
  }
  func.func @transform_1(%arg0: i32) -> (i32, i32) {
    %c0_i32 = arith.constant 0 : i32
    %c0_i32_0 = arith.constant 0 : i32
    %c0_i32_1 = arith.constant 0 : i32
    return %c0_i32, %c0_i32_0 : i32, i32
  }
  func.func @transform_2(%arg0: i32) -> (i32, i32) {
    %c0_i32 = arith.constant 0 : i32
    %c0_i32_0 = arith.constant 0 : i32
    %c0_i32_1 = arith.constant 0 : i32
    return %c0_i32, %c0_i32_0 : i32, i32
  }
  func.func @transform_3(%arg0: i32) -> (i32, i32) {
    %c0_i32 = arith.constant 0 : i32
    %c0_i32_0 = arith.constant 0 : i32
    %c0_i32_1 = arith.constant 0 : i32
    return %c0_i32, %c0_i32_0 : i32, i32
  }
  func.func @transform_4(%arg0: i32) -> (i32, i32) {
    %c0_i32 = arith.constant 0 : i32
    %c0_i32_0 = arith.constant 0 : i32
    %c0_i32_1 = arith.constant 0 : i32
    return %c0_i32, %c0_i32_0 : i32, i32
  }
  func.func @transform_5(%arg0: i32) -> (i32, i32) {
    %c0_i32 = arith.constant 0 : i32
    %c0_i32_0 = arith.constant 0 : i32
    %c0_i32_1 = arith.constant 0 : i32
    return %c0_i32, %c0_i32_0 : i32, i32
  }
  func.func @transform_6(%arg0: i32) -> (i32, i32) {
    %c0_i32 = arith.constant 0 : i32
    %c0_i32_0 = arith.constant 0 : i32
    return %arg0, %c0_i32 : i32, i32
  }
}

</mosaic_0001>

<llo_original>
// kernel: tpu_custom_call.1
$region0: #{tpu_custom_call.1}
  #allocation0 [shape = 'u32[]', space=smem, size = 0x4, offset = 0x4, fixed_abs, tag = 'smem constant byte address 0x4 - core index']
  #allocation1 [shape = 'u32[72,128]{1,0:T(1,128)}', space=vmem, size = 0x9000, scoped, tag = 'internal scratch']
  %s0 = inlined_call_operand.hbm [shape: bf16[16,3072], index: 0, kind: input, shape index: {}]
  %s1 = inlined_call_operand.hbm [shape: bf16[3072,512], index: 1, kind: input, shape index: {}]
  %s2 = inlined_call_operand.hbm [shape: bf16[512,256], index: 2, kind: input, shape index: {}]
  %s3 = inlined_call_operand.hbm [shape: bf16[256,128], index: 3, kind: input, shape index: {}]
  %s4 = inlined_call_operand.hbm [shape: bf16[128,128], index: 4, kind: input, shape index: {}]
  %s5 = inlined_call_operand.hbm [shape: bf16[128,128], index: 5, kind: input, shape index: {}]
  %s6 = inlined_call_operand.hbm [shape: f32[16,128], index: 6, kind: output, shape index: {}]
  %s7 = sld [smem:[#allocation0]]
  $region58: #{tpu_custom_call.1} parent=0
    _
  %s9 = ssub.s32 1, %s7
  %s10 = scalar_select 0, %s9, %s7
  $region1: #{tpu_custom_call.1} parent=0
    #allocation2 [shape = 'u8[98304]{0}', space=vmem, size = 0x18000, scoped, tag = 'input window, operand 0, single buffered']
    #allocation3 [shape = 's32[1]{0}', space=sflag, size = 0x4, scoped, tag = 'scoped memory for tpu_custom_call.1']
    #allocation4 [shape = 's32[1]{0}', space=sflag, size = 0x4, scoped, tag = 'scoped memory for tpu_custom_call.1']
    #allocation5 [shape = 'u8[3145728]{0}', space=vmem, size = 0x300000, scoped, tag = 'input window, operand 1, single buffered']
    #allocation6 [shape = 's32[1]{0}', space=sflag, size = 0x4, scoped, tag = 'scoped memory for tpu_custom_call.1']
    #allocation7 [shape = 'u8[262144]{0}', space=vmem, size = 0x40000, scoped, tag = 'input window, operand 2, single buffered']
    #allocation8 [shape = 'u8[65536]{0}', space=vmem, size = 0x10000, scoped, tag = 'input window, operand 3, single buffered']
    #allocation9 [shape = 's32[1]{0}', space=sflag, size = 0x4, scoped, tag = 'scoped memory for tpu_custom_call.1']
    #allocation10 [shape = 'u8[32768]{0}', space=vmem, size = 0x8000, scoped, tag = 'input window, operand 4, single buffered']
    #allocation11 [shape = 'u8[32768]{0}', space=vmem, size = 0x8000, scoped, tag = 'input window, operand 5, single buffered']
    #allocation12 [shape = 's32[1]{0}', space=sflag, size = 0x4, scoped, tag = 'scoped memory for tpu_custom_call.1']
    #allocation13 [shape = 'u8[8192]{0}', space=vmem, size = 0x2000, scoped, tag = 'output window, operand 0, single buffered']
    %11 = vsyncpa [#allocation3], 0
    %12 = vsyncpa [#allocation6], 0
    %13 = vsyncpa [#allocation9], 0
    %14 = vsyncpa [#allocation12], 0
    %15 = vsyncpa [#allocation4], 0
    // Predicated region
    $region2: #{tpu_custom_call.1} parent=1 // pred_check
      _
    $region3: #{tpu_custom_call.1} parent=1 // pred_check_branch
      %17 = sbr.rel (0) target = $region5
    $region4: #{tpu_custom_call.1} parent=1 // pred_region
      %19 = vsyncadd [#allocation3], 0
      %s20 = sshll.u32 %s0, 4
      %s21 = int_to_ptr.hbm [resolvable:$true] %s20
      %s22 = sshll.u32 [#allocation2], 4
      %s23 = int_to_ptr.vmem [resolvable:$true] %s22
      %28 = dma.hbm_to_vmem [thread:$0]  %s21, 3072, %s23, [#allocation3], 1536, 1536, 96
    $region5: #{tpu_custom_call.1} parent=1 // pred_fallthru
      _
    // Predicated region
    $region6: #{tpu_custom_call.1} parent=1 // pred_check
      _
    $region7: #{tpu_custom_call.1} parent=1 // pred_check_branch
      %30 = sbr.rel (0) target = $region9
    $region8: #{tpu_custom_call.1} parent=1 // pred_region
      %32 = vsyncadd [#allocation6], 0
      %s33 = sshll.u32 %s1, 4
      %s34 = int_to_ptr.hbm [resolvable:$true] %s33
      %s35 = sshll.u32 [#allocation5], 4
      %s36 = int_to_ptr.vmem [resolvable:$true] %s35
      %41 = dma.hbm_to_vmem [thread:$0]  %s34, 98304, %s36, [#allocation6], 256, 256, 16
    $region9: #{tpu_custom_call.1} parent=1 // pred_fallthru
      _
    // Predicated region
    $region10: #{tpu_custom_call.1} parent=1 // pred_check
      _
    $region11: #{tpu_custom_call.1} parent=1 // pred_check_branch
      %43 = sbr.rel (0) target = $region13
    $region12: #{tpu_custom_call.1} parent=1 // pred_region
      %45 = vsyncadd [#allocation6], 0
      %s46 = sshll.u32 %s2, 4
      %s47 = int_to_ptr.hbm [resolvable:$true] %s46
      %s48 = sshll.u32 [#allocation7], 4
      %s49 = int_to_ptr.vmem [resolvable:$true] %s48
      %54 = dma.hbm_to_vmem [thread:$0]  %s47, 8192, %s49, [#allocation6], 128, 128, 8
    $region13: #{tpu_custom_call.1} parent=1 // pred_fallthru
      _
    // Predicated region
    $region14: #{tpu_custom_call.1} parent=1 // pred_check
      _
    $region15: #{tpu_custom_call.1} parent=1 // pred_check_branch
      %56 = sbr.rel (0) target = $region17
    $region16: #{tpu_custom_call.1} parent=1 // pred_region
      %58 = vsyncadd [#allocation9], 0
      %s59 = sshll.u32 %s3, 4
      %s60 = int_to_ptr.hbm [resolvable:$true] %s59
      %s61 = sshll.u32 [#allocation8], 4
      %s62 = int_to_ptr.vmem [resolvable:$true] %s61
      %67 = dma.hbm_to_vmem [thread:$0]  %s60, 2048, %s62, [#allocation9], 64, 64, 4
    $region17: #{tpu_custom_call.1} parent=1 // pred_fallthru
      _
    // Predicated region
    $region18: #{tpu_custom_call.1} parent=1 // pred_check
      _
    $region19: #{tpu_custom_call.1} parent=1 // pred_check_branch
      %69 = sbr.rel (0) target = $region21
    $region20: #{tpu_custom_call.1} parent=1 // pred_region
      %71 = vsyncadd [#allocation9], 0
      %s72 = sshll.u32 %s4, 4
      %s73 = int_to_ptr.hbm [resolvable:$true] %s72
      %s74 = sshll.u32 [#allocation10], 4
      %s75 = int_to_ptr.vmem [resolvable:$true] %s74
      %80 = dma.hbm_to_vmem [thread:$0]  %s73, 1024, %s75, [#allocation9], 64, 64, 4
    $region21: #{tpu_custom_call.1} parent=1 // pred_fallthru
      _
    // Predicated region
    $region22: #{tpu_custom_call.1} parent=1 // pred_check
      _
    $region23: #{tpu_custom_call.1} parent=1 // pred_check_branch
      %82 = sbr.rel (0) target = $region25
    $region24: #{tpu_custom_call.1} parent=1 // pred_region
      %84 = vsyncadd [#allocation12], 0
      %s85 = sshll.u32 %s5, 4
      %s86 = int_to_ptr.hbm [resolvable:$true] %s85
      %s87 = sshll.u32 [#allocation11], 4
      %s88 = int_to_ptr.vmem [resolvable:$true] %s87
      %93 = dma.hbm_to_vmem [thread:$0]  %s86, 1024, %s88, [#allocation12], 64, 64, 4
    $region25: #{tpu_custom_call.1} parent=1 // pred_fallthru
      _
    // Predicated region
    $region26: #{tpu_custom_call.1} parent=1 // pred_check
      _
    $region27: #{tpu_custom_call.1} parent=1 // pred_check_branch
      %95 = sbr.rel (0) target = $region29
    $region28: #{tpu_custom_call.1} parent=1 // pred_region
      %97 = dma.done [#allocation3], 3072
    $region29: #{tpu_custom_call.1} parent=1 // pred_fallthru
      _
    // Predicated region
    $region30: #{tpu_custom_call.1} parent=1 // pred_check
      _
    $region31: #{tpu_custom_call.1} parent=1 // pred_check_branch
      %99 = sbr.rel (0) target = $region33
    $region32: #{tpu_custom_call.1} parent=1 // pred_region
      %101 = dma.done [#allocation6], 98304
    $region33: #{tpu_custom_call.1} parent=1 // pred_fallthru
      _
    // Predicated region
    $region34: #{tpu_custom_call.1} parent=1 // pred_check
      _
    $region35: #{tpu_custom_call.1} parent=1 // pred_check_branch
      %103 = sbr.rel (0) target = $region37
    $region36: #{tpu_custom_call.1} parent=1 // pred_region
      %105 = dma.done [#allocation6], 8192
    $region37: #{tpu_custom_call.1} parent=1 // pred_fallthru
      _
    // Predicated region
    $region38: #{tpu_custom_call.1} parent=1 // pred_check
      _
    $region39: #{tpu_custom_call.1} parent=1 // pred_check_branch
      %107 = sbr.rel (0) target = $region41
    $region40: #{tpu_custom_call.1} parent=1 // pred_region
      %109 = dma.done [#allocation9], 2048
    $region41: #{tpu_custom_call.1} parent=1 // pred_fallthru
      _
    // Predicated region
    $region42: #{tpu_custom_call.1} parent=1 // pred_check
      _
    $region43: #{tpu_custom_call.1} parent=1 // pred_check_branch
      %111 = sbr.rel (0) target = $region45
    $region44: #{tpu_custom_call.1} parent=1 // pred_region
      %113 = dma.done [#allocation9], 1024
    $region45: #{tpu_custom_call.1} parent=1 // pred_fallthru
      _
    // Predicated region
    $region46: #{tpu_custom_call.1} parent=1 // pred_check
      _
    $region47: #{tpu_custom_call.1} parent=1 // pred_check_branch
      %115 = sbr.rel (0) target = $region49
    $region48: #{tpu_custom_call.1} parent=1 // pred_region
      %117 = dma.done [#allocation12], 1024
    $region49: #{tpu_custom_call.1} parent=1 // pred_fallthru
      _
    %v118 = vld [vmem:[#allocation2] sm:$0xff]
    %v119 = vld [vmem:[#allocation2 + $0x8] sm:$0xff]
    %v120 = vld [vmem:[#allocation2 + $0x10] sm:$0xff]
    %v121 = vld [vmem:[#allocation2 + $0x18] sm:$0xff]
    %v122 = vld [vmem:[#allocation2 + $0x20] sm:$0xff]
    %v123 = vld [vmem:[#allocation2 + $0x28] sm:$0xff]
    %v124 = vld [vmem:[#allocation2 + $0x30] sm:$0xff]
    %v125 = vld [vmem:[#allocation2 + $0x38] sm:$0xff]
    %v126 = vld [vmem:[#allocation2 + $0x40] sm:$0xff]
    %v127 = vld [vmem:[#allocation2 + $0x48] sm:$0xff]
    %v128 = vld [vmem:[#allocation2 + $0x50] sm:$0xff]
    %v129 = vld [vmem:[#allocation2 + $0x58] sm:$0xff]
    %v130 = vld [vmem:[#allocation2 + $0x60] sm:$0xff]
    %v131 = vld [vmem:[#allocation2 + $0x68] sm:$0xff]
    %v132 = vld [vmem:[#allocation2 + $0x70] sm:$0xff]
    %v133 = vld [vmem:[#allocation2 + $0x78] sm:$0xff]
    %v134 = vld [vmem:[#allocation2 + $0x80] sm:$0xff]
    %v135 = vld [vmem:[#allocation2 + $0x88] sm:$0xff]
    %v136 = vld [vmem:[#allocation2 + $0x90] sm:$0xff]
    %v137 = vld [vmem:[#allocation2 + $0x98] sm:$0xff]
    %v138 = vld [vmem:[#allocation2 + $0xa0] sm:$0xff]
    %v139 = vld [vmem:[#allocation2 + $0xa8] sm:$0xff]
    %v140 = vld [vmem:[#allocation2 + $0xb0] sm:$0xff]
    %v141 = vld [vmem:[#allocation2 + $0xb8] sm:$0xff]
    %v142 = vld [vmem:[#allocation5] sm:$0xff]
    %v143 = vld [vmem:[#allocation5 + $0x8] sm:$0xff]
    %v144 = vld [vmem:[#allocation5 + $0x10] sm:$0xff]
    %v145 = vld [vmem:[#allocation5 + $0x18] sm:$0xff]
    %v146 = vld [vmem:[#allocation5 + $0x20] sm:$0xff]
    %v147 = vld [vmem:[#allocation5 + $0x28] sm:$0xff]
    %v148 = vld [vmem:[#allocation5 + $0x30] sm:$0xff]
    %v149 = vld [vmem:[#allocation5 + $0x38] sm:$0xff]
    %v150 = vld [vmem:[#allocation5 + $0x40] sm:$0xff]
    %v151 = vld [vmem:[#allocation5 + $0x48] sm:$0xff]
    %v152 = vld [vmem:[#allocation5 + $0x50] sm:$0xff]
    %v153 = vld [vmem:[#allocation5 + $0x58] sm:$0xff]
    %v154 = vld [vmem:[#allocation5 + $0x60] sm:$0xff]
    %v155 = vld [vmem:[#allocation5 + $0x68] sm:$0xff]
    %v156 = vld [vmem:[#allocation5 + $0x70] sm:$0xff]
    %v157 = vld [vmem:[#allocation5 + $0x78] sm:$0xff]
    %v158 = vld [vmem:[#allocation5 + $0x80] sm:$0xff]
    %v159 = vld [vmem:[#allocation5 + $0x88] sm:$0xff]
    %v160 = vld [vmem:[#allocation5 + $0x90] sm:$0xff]
    %v161 = vld [vmem:[#allocation5 + $0x98] sm:$0xff]
    %v162 = vld [vmem:[#allocation5 + $0xa0] sm:$0xff]
    %v163 = vld [vmem:[#allocation5 + $0xa8] sm:$0xff]
    %v164 = vld [vmem:[#allocation5 + $0xb0] sm:$0xff]
    %v165 = vld [vmem:[#allocation5 + $0xb8] sm:$0xff]
    %v166 = vld [vmem:[#allocation5 + $0xc0] sm:$0xff]
    %v167 = vld [vmem:[#allocation5 + $0xc8] sm:$0xff]
    %v168 = vld [vmem:[#allocation5 + $0xd0] sm:$0xff]
    %v169 = vld [vmem:[#allocation5 + $0xd8] sm:$0xff]
    %v170 = vld [vmem:[#allocation5 + $0xe0] sm:$0xff]
    %v171 = vld [vmem:[#allocation5 + $0xe8] sm:$0xff]
    %v172 = vld [vmem:[#allocation5 + $0xf0] sm:$0xff]
    %v173 = vld [vmem:[#allocation5 + $0xf8] sm:$0xff]
    %v174 = vld [vmem:[#allocation5 + $0x100] sm:$0xff]
    %v175 = vld [vmem:[#allocation5 + $0x108] sm:$0xff]
    %v176 = vld [vmem:[#allocation5 + $0x110] sm:$0xff]
    %v177 = vld [vmem:[#allocation5 + $0x118] sm:$0xff]
    %v178 = vld [vmem:[#allocation5 + $0x120] sm:$0xff]
    %v179 = vld [vmem:[#allocation5 + $0x128] sm:$0xff]
    %v180 = vld [vmem:[#allocation5 + $0x130] sm:$0xff]
    %v181 = vld [vmem:[#allocation5 + $0x138] sm:$0xff]
    %v182 = vld [vmem:[#allocation5 + $0x140] sm:$0xff]
    %v183 = vld [vmem:[#allocation5 + $0x148] sm:$0xff]
    %v184 = vld [vmem:[#allocation5 + $0x150] sm:$0xff]
    %v185 = vld [vmem:[#allocation5 + $0x158] sm:$0xff]
    %v186 = vld [vmem:[#allocation5 + $0x160] sm:$0xff]
    %v187 = vld [vmem:[#allocation5 + $0x168] sm:$0xff]
    %v188 = vld [vmem:[#allocation5 + $0x170] sm:$0xff]
    %v189 = vld [vmem:[#allocation5 + $0x178] sm:$0xff]
    %v190 = vld [vmem:[#allocation5 + $0x180] sm:$0xff]
    %v191 = vld [vmem:[#allocation5 + $0x188] sm:$0xff]
    %v192 = vld [vmem:[#allocation5 + $0x190] sm:$0xff]
    %v193 = vld [vmem:[#allocation5 + $0x198] sm:$0xff]
    %v194 = vld [vmem:[#allocation5 + $0x1a0] sm:$0xff]
    %v195 = vld [vmem:[#allocation5 + $0x1a8] sm:$0xff]
    %v196 = vld [vmem:[#allocation5 + $0x1b0] sm:$0xff]
    %v197 = vld [vmem:[#allocation5 + $0x1b8] sm:$0xff]
    %v198 = vld [vmem:[#allocation5 + $0x1c0] sm:$0xff]
    %v199 = vld [vmem:[#allocation5 + $0x1c8] sm:$0xff]
    %v200 = vld [vmem:[#allocation5 + $0x1d0] sm:$0xff]
    %v201 = vld [vmem:[#allocation5 + $0x1d8] sm:$0xff]
    %v202 = vld [vmem:[#allocation5 + $0x1e0] sm:$0xff]
    %v203 = vld [vmem:[#allocation5 + $0x1e8] sm:$0xff]
    %v204 = vld [vmem:[#allocation5 + $0x1f0] sm:$0xff]
    %v205 = vld [vmem:[#allocation5 + $0x1f8] sm:$0xff]
    %v206 = vld [vmem:[#allocation5 + $0x200] sm:$0xff]
    %v207 = vld [vmem:[#allocation5 + $0x208] sm:$0xff]
    %v208 = vld [vmem:[#allocation5 + $0x210] sm:$0xff]
    %v209 = vld [vmem:[#allocation5 + $0x218] sm:$0xff]
    %v210 = vld [vmem:[#allocation5 + $0x220] sm:$0xff]
    %v211 = vld [vmem:[#allocation5 + $0x228] sm:$0xff]
    %v212 = vld [vmem:[#allocation5 + $0x230] sm:$0xff]
    %v213 = vld [vmem:[#allocation5 + $0x238] sm:$0xff]
    %v214 = vld [vmem:[#allocation5 + $0x240] sm:$0xff]
    %v215 = vld [vmem:[#allocation5 + $0x248] sm:$0xff]
    %v216 = vld [vmem:[#allocation5 + $0x250] sm:$0xff]
    %v217 = vld [vmem:[#allocation5 + $0x258] sm:$0xff]
    %v218 = vld [vmem:[#allocation5 + $0x260] sm:$0xff]
    %v219 = vld [vmem:[#allocation5 + $0x268] sm:$0xff]
    %v220 = vld [vmem:[#allocation5 + $0x270] sm:$0xff]
    %v221 = vld [vmem:[#allocation5 + $0x278] sm:$0xff]
    %v222 = vld [vmem:[#allocation5 + $0x280] sm:$0xff]
    %v223 = vld [vmem:[#allocation5 + $0x288] sm:$0xff]
    %v224 = vld [vmem:[#allocation5 + $0x290] sm:$0xff]
    %v225 = vld [vmem:[#allocation5 + $0x298] sm:$0xff]
    %v226 = vld [vmem:[#allocation5 + $0x2a0] sm:$0xff]
    %v227 = vld [vmem:[#allocation5 + $0x2a8] sm:$0xff]
    %v228 = vld [vmem:[#allocation5 + $0x2b0] sm:$0xff]
    %v229 = vld [vmem:[#allocation5 + $0x2b8] sm:$0xff]
    %v230 = vld [vmem:[#allocation5 + $0x2c0] sm:$0xff]
    %v231 = vld [vmem:[#allocation5 + $0x2c8] sm:$0xff]
    %v232 = vld [vmem:[#allocation5 + $0x2d0] sm:$0xff]
    %v233 = vld [vmem:[#allocation5 + $0x2d8] sm:$0xff]
    %v234 = vld [vmem:[#allocation5 + $0x2e0] sm:$0xff]
    %v235 = vld [vmem:[#allocation5 + $0x2e8] sm:$0xff]
    %v236 = vld [vmem:[#allocation5 + $0x2f0] sm:$0xff]
    %v237 = vld [vmem:[#allocation5 + $0x2f8] sm:$0xff]
    %v238 = vld [vmem:[#allocation5 + $0x300] sm:$0xff]
    %v239 = vld [vmem:[#allocation5 + $0x308] sm:$0xff]
    %v240 = vld [vmem:[#allocation5 + $0x310] sm:$0xff]
    %v241 = vld [vmem:[#allocation5 + $0x318] sm:$0xff]
    %v242 = vld [vmem:[#allocation5 + $0x320] sm:$0xff]
    %v243 = vld [vmem:[#allocation5 + $0x328] sm:$0xff]
    %v244 = vld [vmem:[#allocation5 + $0x330] sm:$0xff]
    %v245 = vld [vmem:[#allocation5 + $0x338] sm:$0xff]
    %v246 = vld [vmem:[#allocation5 + $0x340] sm:$0xff]
    %v247 = vld [vmem:[#allocation5 + $0x348] sm:$0xff]
    %v248 = vld [vmem:[#allocation5 + $0x350] sm:$0xff]
    %v249 = vld [vmem:[#allocation5 + $0x358] sm:$0xff]
    %v250 = vld [vmem:[#allocation5 + $0x360] sm:$0xff]
    %v251 = vld [vmem:[#allocation5 + $0x368] sm:$0xff]
    %v252 = vld [vmem:[#allocation5 + $0x370] sm:$0xff]
    %v253 = vld [vmem:[#allocation5 + $0x378] sm:$0xff]
    %v254 = vld [vmem:[#allocation5 + $0x380] sm:$0xff]
    %v255 = vld [vmem:[#allocation5 + $0x388] sm:$0xff]
    %v256 = vld [vmem:[#allocation5 + $0x390] sm:$0xff]
    %v257 = vld [vmem:[#allocation5 + $0x398] sm:$0xff]
    %v258 = vld [vmem:[#allocation5 + $0x3a0] sm:$0xff]
    %v259 = vld [vmem:[#allocation5 + $0x3a8] sm:$0xff]
    %v260 = vld [vmem:[#allocation5 + $0x3b0] sm:$0xff]
    %v261 = vld [vmem:[#allocation5 + $0x3b8] sm:$0xff]
    %v262 = vld [vmem:[#allocation5 + $0x3c0] sm:$0xff]
    %v263 = vld [vmem:[#allocation5 + $0x3c8] sm:$0xff]
    %v264 = vld [vmem:[#allocation5 + $0x3d0] sm:$0xff]
    %v265 = vld [vmem:[#allocation5 + $0x3d8] sm:$0xff]
    %v266 = vld [vmem:[#allocation5 + $0x3e0] sm:$0xff]
    %v267 = vld [vmem:[#allocation5 + $0x3e8] sm:$0xff]
    %v268 = vld [vmem:[#allocation5 + $0x3f0] sm:$0xff]
    %v269 = vld [vmem:[#allocation5 + $0x3f8] sm:$0xff]
    %v270 = vld [vmem:[#allocation5 + $0x400] sm:$0xff]
    %v271 = vld [vmem:[#allocation5 + $0x408] sm:$0xff]
    %v272 = vld [vmem:[#allocation5 + $0x410] sm:$0xff]
    %v273 = vld [vmem:[#allocation5 + $0x418] sm:$0xff]
    %v274 = vld [vmem:[#allocation5 + $0x420] sm:$0xff]
    %v275 = vld [vmem:[#allocation5 + $0x428] sm:$0xff]
    %v276 = vld [vmem:[#allocation5 + $0x430] sm:$0xff]
    %v277 = vld [vmem:[#allocation5 + $0x438] sm:$0xff]
    %v278 = vld [vmem:[#allocation5 + $0x440] sm:$0xff]
    %v279 = vld [vmem:[#allocation5 + $0x448] sm:$0xff]
    %v280 = vld [vmem:[#allocation5 + $0x450] sm:$0xff]
    %v281 = vld [vmem:[#allocation5 + $0x458] sm:$0xff]
    %v282 = vld [vmem:[#allocation5 + $0x460] sm:$0xff]
    %v283 = vld [vmem:[#allocation5 + $0x468] sm:$0xff]
    %v284 = vld [vmem:[#allocation5 + $0x470] sm:$0xff]
    %v285 = vld [vmem:[#allocation5 + $0x478] sm:$0xff]
    %v286 = vld [vmem:[#allocation5 + $0x480] sm:$0xff]
    %v287 = vld [vmem:[#allocation5 + $0x488] sm:$0xff]
    %v288 = vld [vmem:[#allocation5 + $0x490] sm:$0xff]
    %v289 = vld [vmem:[#allocation5 + $0x498] sm:$0xff]
    %v290 = vld [vmem:[#allocation5 + $0x4a0] sm:$0xff]
    %v291 = vld [vmem:[#allocation5 + $0x4a8] sm:$0xff]
    %v292 = vld [vmem:[#allocation5 + $0x4b0] sm:$0xff]
    %v293 = vld [vmem:[#allocation5 + $0x4b8] sm:$0xff]
    %v294 = vld [vmem:[#allocation5 + $0x4c0] sm:$0xff]
    %v295 = vld [vmem:[#allocation5 + $0x4c8] sm:$0xff]
    %v296 = vld [vmem:[#allocation5 + $0x4d0] sm:$0xff]
    %v297 = vld [vmem:[#allocation5 + $0x4d8] sm:$0xff]
    %v298 = vld [vmem:[#allocation5 + $0x4e0] sm:$0xff]
    %v299 = vld [vmem:[#allocation5 + $0x4e8] sm:$0xff]
    %v300 = vld [vmem:[#allocation5 + $0x4f0] sm:$0xff]
    %v301 = vld [vmem:[#allocation5 + $0x4f8] sm:$0xff]
    %v302 = vld [vmem:[#allocation5 + $0x500] sm:$0xff]
    %v303 = vld [vmem:[#allocation5 + $0x508] sm:$0xff]
    %v304 = vld [vmem:[#allocation5 + $0x510] sm:$0xff]
    %v305 = vld [vmem:[#allocation5 + $0x518] sm:$0xff]
    %v306 = vld [vmem:[#allocation5 + $0x520] sm:$0xff]
    %v307 = vld [vmem:[#allocation5 + $0x528] sm:$0xff]
    %v308 = vld [vmem:[#allocation5 + $0x530] sm:$0xff]
    %v309 = vld [vmem:[#allocation5 + $0x538] sm:$0xff]
    %v310 = vld [vmem:[#allocation5 + $0x540] sm:$0xff]
    %v311 = vld [vmem:[#allocation5 + $0x548] sm:$0xff]
    %v312 = vld [vmem:[#allocation5 + $0x550] sm:$0xff]
    %v313 = vld [vmem:[#allocation5 + $0x558] sm:$0xff]
    %v314 = vld [vmem:[#allocation5 + $0x560] sm:$0xff]
    %v315 = vld [vmem:[#allocation5 + $0x568] sm:$0xff]
    %v316 = vld [vmem:[#allocation5 + $0x570] sm:$0xff]
    %v317 = vld [vmem:[#allocation5 + $0x578] sm:$0xff]
    %v318 = vld [vmem:[#allocation5 + $0x580] sm:$0xff]
    %v319 = vld [vmem:[#allocation5 + $0x588] sm:$0xff]
    %v320 = vld [vmem:[#allocation5 + $0x590] sm:$0xff]
    %v321 = vld [vmem:[#allocation5 + $0x598] sm:$0xff]
    %v322 = vld [vmem:[#allocation5 + $0x5a0] sm:$0xff]
    %v323 = vld [vmem:[#allocation5 + $0x5a8] sm:$0xff]
    %v324 = vld [vmem:[#allocation5 + $0x5b0] sm:$0xff]
    %v325 = vld [vmem:[#allocation5 + $0x5b8] sm:$0xff]
    %v326 = vld [vmem:[#allocation5 + $0x5c0] sm:$0xff]
    %v327 = vld [vmem:[#allocation5 + $0x5c8] sm:$0xff]
    %v328 = vld [vmem:[#allocation5 + $0x5d0] sm:$0xff]
    %v329 = vld [vmem:[#allocation5 + $0x5d8] sm:$0xff]
    %v330 = vld [vmem:[#allocation5 + $0x5e0] sm:$0xff]
    %v331 = vld [vmem:[#allocation5 + $0x5e8] sm:$0xff]
    %v332 = vld [vmem:[#allocation5 + $0x5f0] sm:$0xff]
    %v333 = vld [vmem:[#allocation5 + $0x5f8] sm:$0xff]
    %v334 = vld [vmem:[#allocation5 + $0x600] sm:$0xff]
    %v335 = vld [vmem:[#allocation5 + $0x608] sm:$0xff]
    %v336 = vld [vmem:[#allocation5 + $0x610] sm:$0xff]
    %v337 = vld [vmem:[#allocation5 + $0x618] sm:$0xff]
    %v338 = vld [vmem:[#allocation5 + $0x620] sm:$0xff]
    %v339 = vld [vmem:[#allocation5 + $0x628] sm:$0xff]
    %v340 = vld [vmem:[#allocation5 + $0x630] sm:$0xff]
    %v341 = vld [vmem:[#allocation5 + $0x638] sm:$0xff]
    %v342 = vld [vmem:[#allocation5 + $0x640] sm:$0xff]
    %v343 = vld [vmem:[#allocation5 + $0x648] sm:$0xff]
    %v344 = vld [vmem:[#allocation5 + $0x650] sm:$0xff]
    %v345 = vld [vmem:[#allocation5 + $0x658] sm:$0xff]
    %v346 = vld [vmem:[#allocation5 + $0x660] sm:$0xff]
    %v347 = vld [vmem:[#allocation5 + $0x668] sm:$0xff]
    %v348 = vld [vmem:[#allocation5 + $0x670] sm:$0xff]
    %v349 = vld [vmem:[#allocation5 + $0x678] sm:$0xff]
    %v350 = vld [vmem:[#allocation5 + $0x680] sm:$0xff]
    %v351 = vld [vmem:[#allocation5 + $0x688] sm:$0xff]
    %v352 = vld [vmem:[#allocation5 + $0x690] sm:$0xff]
    %v353 = vld [vmem:[#allocation5 + $0x698] sm:$0xff]
    %v354 = vld [vmem:[#allocation5 + $0x6a0] sm:$0xff]
    %v355 = vld [vmem:[#allocation5 + $0x6a8] sm:$0xff]
    %v356 = vld [vmem:[#allocation5 + $0x6b0] sm:$0xff]
    %v357 = vld [vmem:[#allocation5 + $0x6b8] sm:$0xff]
    %v358 = vld [vmem:[#allocation5 + $0x6c0] sm:$0xff]
    %v359 = vld [vmem:[#allocation5 + $0x6c8] sm:$0xff]
    %v360 = vld [vmem:[#allocation5 + $0x6d0] sm:$0xff]
    %v361 = vld [vmem:[#allocation5 + $0x6d8] sm:$0xff]
    %v362 = vld [vmem:[#allocation5 + $0x6e0] sm:$0xff]
    %v363 = vld [vmem:[#allocation5 + $0x6e8] sm:$0xff]
    %v364 = vld [vmem:[#allocation5 + $0x6f0] sm:$0xff]
    %v365 = vld [vmem:[#allocation5 + $0x6f8] sm:$0xff]
    %v366 = vld [vmem:[#allocation5 + $0x700] sm:$0xff]
    %v367 = vld [vmem:[#allocation5 + $0x708] sm:$0xff]
    %v368 = vld [vmem:[#allocation5 + $0x710] sm:$0xff]
    %v369 = vld [vmem:[#allocation5 + $0x718] sm:$0xff]
    %v370 = vld [vmem:[#allocation5 + $0x720] sm:$0xff]
    %v371 = vld [vmem:[#allocation5 + $0x728] sm:$0xff]
    %v372 = vld [vmem:[#allocation5 + $0x730] sm:$0xff]
    %v373 = vld [vmem:[#allocation5 + $0x738] sm:$0xff]
    %v374 = vld [vmem:[#allocation5 + $0x740] sm:$0xff]
    %v375 = vld [vmem:[#allocation5 + $0x748] sm:$0xff]
    %v376 = vld [vmem:[#allocation5 + $0x750] sm:$0xff]
    %v377 = vld [vmem:[#allocation5 + $0x758] sm:$0xff]
    %v378 = vld [vmem:[#allocation5 + $0x760] sm:$0xff]
    %v379 = vld [vmem:[#allocation5 + $0x768] sm:$0xff]
    %v380 = vld [vmem:[#allocation5 + $0x770] sm:$0xff]
    %v381 = vld [vmem:[#allocation5 + $0x778] sm:$0xff]
    %v382 = vld [vmem:[#allocation5 + $0x780] sm:$0xff]
    %v383 = vld [vmem:[#allocation5 + $0x788] sm:$0xff]
    %v384 = vld [vmem:[#allocation5 + $0x790] sm:$0xff]
    %v385 = vld [vmem:[#allocation5 + $0x798] sm:$0xff]
    %v386 = vld [vmem:[#allocation5 + $0x7a0] sm:$0xff]
    %v387 = vld [vmem:[#allocation5 + $0x7a8] sm:$0xff]
    %v388 = vld [vmem:[#allocation5 + $0x7b0] sm:$0xff]
    %v389 = vld [vmem:[#allocation5 + $0x7b8] sm:$0xff]
    %v390 = vld [vmem:[#allocation5 + $0x7c0] sm:$0xff]
    %v391 = vld [vmem:[#allocation5 + $0x7c8] sm:$0xff]
    %v392 = vld [vmem:[#allocation5 + $0x7d0] sm:$0xff]
    %v393 = vld [vmem:[#allocation5 + $0x7d8] sm:$0xff]
    %v394 = vld [vmem:[#allocation5 + $0x7e0] sm:$0xff]
    %v395 = vld [vmem:[#allocation5 + $0x7e8] sm:$0xff]
    %v396 = vld [vmem:[#allocation5 + $0x7f0] sm:$0xff]
    %v397 = vld [vmem:[#allocation5 + $0x7f8] sm:$0xff]
    %v398 = vld [vmem:[#allocation5 + $0x800] sm:$0xff]
    %v399 = vld [vmem:[#allocation5 + $0x808] sm:$0xff]
    %v400 = vld [vmem:[#allocation5 + $0x810] sm:$0xff]
    %v401 = vld [vmem:[#allocation5 + $0x818] sm:$0xff]
    %v402 = vld [vmem:[#allocation5 + $0x820] sm:$0xff]
    %v403 = vld [vmem:[#allocation5 + $0x828] sm:$0xff]
    %v404 = vld [vmem:[#allocation5 + $0x830] sm:$0xff]
    %v405 = vld [vmem:[#allocation5 + $0x838] sm:$0xff]
    %v406 = vld [vmem:[#allocation5 + $0x840] sm:$0xff]
    %v407 = vld [vmem:[#allocation5 + $0x848] sm:$0xff]
    %v408 = vld [vmem:[#allocation5 + $0x850] sm:$0xff]
    %v409 = vld [vmem:[#allocation5 + $0x858] sm:$0xff]
    %v410 = vld [vmem:[#allocation5 + $0x860] sm:$0xff]
    %v411 = vld [vmem:[#allocation5 + $0x868] sm:$0xff]
    %v412 = vld [vmem:[#allocation5 + $0x870] sm:$0xff]
    %v413 = vld [vmem:[#allocation5 + $0x878] sm:$0xff]
    %v414 = vld [vmem:[#allocation5 + $0x880] sm:$0xff]
    %v415 = vld [vmem:[#allocation5 + $0x888] sm:$0xff]
    %v416 = vld [vmem:[#allocation5 + $0x890] sm:$0xff]
    %v417 = vld [vmem:[#allocation5 + $0x898] sm:$0xff]
    %v418 = vld [vmem:[#allocation5 + $0x8a0] sm:$0xff]
    %v419 = vld [vmem:[#allocation5 + $0x8a8] sm:$0xff]
    %v420 = vld [vmem:[#allocation5 + $0x8b0] sm:$0xff]
    %v421 = vld [vmem:[#allocation5 + $0x8b8] sm:$0xff]
    %v422 = vld [vmem:[#allocation5 + $0x8c0] sm:$0xff]
    %v423 = vld [vmem:[#allocation5 + $0x8c8] sm:$0xff]
    %v424 = vld [vmem:[#allocation5 + $0x8d0] sm:$0xff]
    %v425 = vld [vmem:[#allocation5 + $0x8d8] sm:$0xff]
    %v426 = vld [vmem:[#allocation5 + $0x8e0] sm:$0xff]
    %v427 = vld [vmem:[#allocation5 + $0x8e8] sm:$0xff]
    %v428 = vld [vmem:[#allocation5 + $0x8f0] sm:$0xff]
    %v429 = vld [vmem:[#allocation5 + $0x8f8] sm:$0xff]
    %v430 = vld [vmem:[#allocation5 + $0x900] sm:$0xff]
    %v431 = vld [vmem:[#allocation5 + $0x908] sm:$0xff]
    %v432 = vld [vmem:[#allocation5 + $0x910] sm:$0xff]
    %v433 = vld [vmem:[#allocation5 + $0x918] sm:$0xff]
    %v434 = vld [vmem:[#allocation5 + $0x920] sm:$0xff]
    %v435 = vld [vmem:[#allocation5 + $0x928] sm:$0xff]
    %v436 = vld [vmem:[#allocation5 + $0x930] sm:$0xff]
    %v437 = vld [vmem:[#allocation5 + $0x938] sm:$0xff]
    %v438 = vld [vmem:[#allocation5 + $0x940] sm:$0xff]
    %v439 = vld [vmem:[#allocation5 + $0x948] sm:$0xff]
    %v440 = vld [vmem:[#allocation5 + $0x950] sm:$0xff]
    %v441 = vld [vmem:[#allocation5 + $0x958] sm:$0xff]
    %v442 = vld [vmem:[#allocation5 + $0x960] sm:$0xff]
    %v443 = vld [vmem:[#allocation5 + $0x968] sm:$0xff]
    %v444 = vld [vmem:[#allocation5 + $0x970] sm:$0xff]
    %v445 = vld [vmem:[#allocation5 + $0x978] sm:$0xff]
    %v446 = vld [vmem:[#allocation5 + $0x980] sm:$0xff]
    %v447 = vld [vmem:[#allocation5 + $0x988] sm:$0xff]
    %v448 = vld [vmem:[#allocation5 + $0x990] sm:$0xff]
    %v449 = vld [vmem:[#allocation5 + $0x998] sm:$0xff]
    %v450 = vld [vmem:[#allocation5 + $0x9a0] sm:$0xff]
    %v451 = vld [vmem:[#allocation5 + $0x9a8] sm:$0xff]
    %v452 = vld [vmem:[#allocation5 + $0x9b0] sm:$0xff]
    %v453 = vld [vmem:[#allocation5 + $0x9b8] sm:$0xff]
    %v454 = vld [vmem:[#allocation5 + $0x9c0] sm:$0xff]
    %v455 = vld [vmem:[#allocation5 + $0x9c8] sm:$0xff]
    %v456 = vld [vmem:[#allocation5 + $0x9d0] sm:$0xff]
    %v457 = vld [vmem:[#allocation5 + $0x9d8] sm:$0xff]
    %v458 = vld [vmem:[#allocation5 + $0x9e0] sm:$0xff]
    %v459 = vld [vmem:[#allocation5 + $0x9e8] sm:$0xff]
    %v460 = vld [vmem:[#allocation5 + $0x9f0] sm:$0xff]
    %v461 = vld [vmem:[#allocation5 + $0x9f8] sm:$0xff]
    %v462 = vld [vmem:[#allocation5 + $0xa00] sm:$0xff]
    %v463 = vld [vmem:[#allocation5 + $0xa08] sm:$0xff]
    %v464 = vld [vmem:[#allocation5 + $0xa10] sm:$0xff]
    %v465 = vld [vmem:[#allocation5 + $0xa18] sm:$0xff]
    %v466 = vld [vmem:[#allocation5 + $0xa20] sm:$0xff]
    %v467 = vld [vmem:[#allocation5 + $0xa28] sm:$0xff]
    %v468 = vld [vmem:[#allocation5 + $0xa30] sm:$0xff]
    %v469 = vld [vmem:[#allocation5 + $0xa38] sm:$0xff]
    %v470 = vld [vmem:[#allocation5 + $0xa40] sm:$0xff]
    %v471 = vld [vmem:[#allocation5 + $0xa48] sm:$0xff]
    %v472 = vld [vmem:[#allocation5 + $0xa50] sm:$0xff]
    %v473 = vld [vmem:[#allocation5 + $0xa58] sm:$0xff]
    %v474 = vld [vmem:[#allocation5 + $0xa60] sm:$0xff]
    %v475 = vld [vmem:[#allocation5 + $0xa68] sm:$0xff]
    %v476 = vld [vmem:[#allocation5 + $0xa70] sm:$0xff]
    %v477 = vld [vmem:[#allocation5 + $0xa78] sm:$0xff]
    %v478 = vld [vmem:[#allocation5 + $0xa80] sm:$0xff]
    %v479 = vld [vmem:[#allocation5 + $0xa88] sm:$0xff]
    %v480 = vld [vmem:[#allocation5 + $0xa90] sm:$0xff]
    %v481 = vld [vmem:[#allocation5 + $0xa98] sm:$0xff]
    %v482 = vld [vmem:[#allocation5 + $0xaa0] sm:$0xff]
    %v483 = vld [vmem:[#allocation5 + $0xaa8] sm:$0xff]
    %v484 = vld [vmem:[#allocation5 + $0xab0] sm:$0xff]
    %v485 = vld [vmem:[#allocation5 + $0xab8] sm:$0xff]
    %v486 = vld [vmem:[#allocation5 + $0xac0] sm:$0xff]
    %v487 = vld [vmem:[#allocation5 + $0xac8] sm:$0xff]
    %v488 = vld [vmem:[#allocation5 + $0xad0] sm:$0xff]
    %v489 = vld [vmem:[#allocation5 + $0xad8] sm:$0xff]
    %v490 = vld [vmem:[#allocation5 + $0xae0] sm:$0xff]
    %v491 = vld [vmem:[#allocation5 + $0xae8] sm:$0xff]
    %v492 = vld [vmem:[#allocation5 + $0xaf0] sm:$0xff]
    %v493 = vld [vmem:[#allocation5 + $0xaf8] sm:$0xff]
    %v494 = vld [vmem:[#allocation5 + $0xb00] sm:$0xff]
    %v495 = vld [vmem:[#allocation5 + $0xb08] sm:$0xff]
    %v496 = vld [vmem:[#allocation5 + $0xb10] sm:$0xff]
    %v497 = vld [vmem:[#allocation5 + $0xb18] sm:$0xff]
    %v498 = vld [vmem:[#allocation5 + $0xb20] sm:$0xff]
    %v499 = vld [vmem:[#allocation5 + $0xb28] sm:$0xff]
    %v500 = vld [vmem:[#allocation5 + $0xb30] sm:$0xff]
    %v501 = vld [vmem:[#allocation5 + $0xb38] sm:$0xff]
    %v502 = vld [vmem:[#allocation5 + $0xb40] sm:$0xff]
    %v503 = vld [vmem:[#allocation5 + $0xb48] sm:$0xff]
    %v504 = vld [vmem:[#allocation5 + $0xb50] sm:$0xff]
    %v505 = vld [vmem:[#allocation5 + $0xb58] sm:$0xff]
    %v506 = vld [vmem:[#allocation5 + $0xb60] sm:$0xff]
    %v507 = vld [vmem:[#allocation5 + $0xb68] sm:$0xff]
    %v508 = vld [vmem:[#allocation5 + $0xb70] sm:$0xff]
    %v509 = vld [vmem:[#allocation5 + $0xb78] sm:$0xff]
    %v510 = vld [vmem:[#allocation5 + $0xb80] sm:$0xff]
    %v511 = vld [vmem:[#allocation5 + $0xb88] sm:$0xff]
    %v512 = vld [vmem:[#allocation5 + $0xb90] sm:$0xff]
    %v513 = vld [vmem:[#allocation5 + $0xb98] sm:$0xff]
    %v514 = vld [vmem:[#allocation5 + $0xba0] sm:$0xff]
    %v515 = vld [vmem:[#allocation5 + $0xba8] sm:$0xff]
    %v516 = vld [vmem:[#allocation5 + $0xbb0] sm:$0xff]
    %v517 = vld [vmem:[#allocation5 + $0xbb8] sm:$0xff]
    %v518 = vld [vmem:[#allocation5 + $0xbc0] sm:$0xff]
    %v519 = vld [vmem:[#allocation5 + $0xbc8] sm:$0xff]
    %v520 = vld [vmem:[#allocation5 + $0xbd0] sm:$0xff]
    %v521 = vld [vmem:[#allocation5 + $0xbd8] sm:$0xff]
    %v522 = vld [vmem:[#allocation5 + $0xbe0] sm:$0xff]
    %v523 = vld [vmem:[#allocation5 + $0xbe8] sm:$0xff]
    %v524 = vld [vmem:[#allocation5 + $0xbf0] sm:$0xff]
    %v525 = vld [vmem:[#allocation5 + $0xbf8] sm:$0xff]
    %v526 = vld [vmem:[#allocation5 + $0xc00] sm:$0xff]
    %v527 = vld [vmem:[#allocation5 + $0xc08] sm:$0xff]
    %v528 = vld [vmem:[#allocation5 + $0xc10] sm:$0xff]
    %v529 = vld [vmem:[#allocation5 + $0xc18] sm:$0xff]
    %v530 = vld [vmem:[#allocation5 + $0xc20] sm:$0xff]
    %v531 = vld [vmem:[#allocation5 + $0xc28] sm:$0xff]
    %v532 = vld [vmem:[#allocation5 + $0xc30] sm:$0xff]
    %v533 = vld [vmem:[#allocation5 + $0xc38] sm:$0xff]
    %v534 = vld [vmem:[#allocation5 + $0xc40] sm:$0xff]
    %v535 = vld [vmem:[#allocation5 + $0xc48] sm:$0xff]
    %v536 = vld [vmem:[#allocation5 + $0xc50] sm:$0xff]
    %v537 = vld [vmem:[#allocation5 + $0xc58] sm:$0xff]
    %v538 = vld [vmem:[#allocation5 + $0xc60] sm:$0xff]
    %v539 = vld [vmem:[#allocation5 + $0xc68] sm:$0xff]
    %v540 = vld [vmem:[#allocation5 + $0xc70] sm:$0xff]
    %v541 = vld [vmem:[#allocation5 + $0xc78] sm:$0xff]
    %v542 = vld [vmem:[#allocation5 + $0xc80] sm:$0xff]
    %v543 = vld [vmem:[#allocation5 + $0xc88] sm:$0xff]
    %v544 = vld [vmem:[#allocation5 + $0xc90] sm:$0xff]
    %v545 = vld [vmem:[#allocation5 + $0xc98] sm:$0xff]
    %v546 = vld [vmem:[#allocation5 + $0xca0] sm:$0xff]
    %v547 = vld [vmem:[#allocation5 + $0xca8] sm:$0xff]
    %v548 = vld [vmem:[#allocation5 + $0xcb0] sm:$0xff]
    %v549 = vld [vmem:[#allocation5 + $0xcb8] sm:$0xff]
    %v550 = vld [vmem:[#allocation5 + $0xcc0] sm:$0xff]
    %v551 = vld [vmem:[#allocation5 + $0xcc8] sm:$0xff]
    %v552 = vld [vmem:[#allocation5 + $0xcd0] sm:$0xff]
    %v553 = vld [vmem:[#allocation5 + $0xcd8] sm:$0xff]
    %v554 = vld [vmem:[#allocation5 + $0xce0] sm:$0xff]
    %v555 = vld [vmem:[#allocation5 + $0xce8] sm:$0xff]
    %v556 = vld [vmem:[#allocation5 + $0xcf0] sm:$0xff]
    %v557 = vld [vmem:[#allocation5 + $0xcf8] sm:$0xff]
    %v558 = vld [vmem:[#allocation5 + $0xd00] sm:$0xff]
    %v559 = vld [vmem:[#allocation5 + $0xd08] sm:$0xff]
    %v560 = vld [vmem:[#allocation5 + $0xd10] sm:$0xff]
    %v561 = vld [vmem:[#allocation5 + $0xd18] sm:$0xff]
    %v562 = vld [vmem:[#allocation5 + $0xd20] sm:$0xff]
    %v563 = vld [vmem:[#allocation5 + $0xd28] sm:$0xff]
    %v564 = vld [vmem:[#allocation5 + $0xd30] sm:$0xff]
    %v565 = vld [vmem:[#allocation5 + $0xd38] sm:$0xff]
    %v566 = vld [vmem:[#allocation5 + $0xd40] sm:$0xff]
    %v567 = vld [vmem:[#allocation5 + $0xd48] sm:$0xff]
    %v568 = vld [vmem:[#allocation5 + $0xd50] sm:$0xff]
    %v569 = vld [vmem:[#allocation5 + $0xd58] sm:$0xff]
    %v570 = vld [vmem:[#allocation5 + $0xd60] sm:$0xff]
    %v571 = vld [vmem:[#allocation5 + $0xd68] sm:$0xff]
    %v572 = vld [vmem:[#allocation5 + $0xd70] sm:$0xff]
    %v573 = vld [vmem:[#allocation5 + $0xd78] sm:$0xff]
    %v574 = vld [vmem:[#allocation5 + $0xd80] sm:$0xff]
    %v575 = vld [vmem:[#allocation5 + $0xd88] sm:$0xff]
    %v576 = vld [vmem:[#allocation5 + $0xd90] sm:$0xff]
    %v577 = vld [vmem:[#allocation5 + $0xd98] sm:$0xff]
    %v578 = vld [vmem:[#allocation5 + $0xda0] sm:$0xff]
    %v579 = vld [vmem:[#allocation5 + $0xda8] sm:$0xff]
    %v580 = vld [vmem:[#allocation5 + $0xdb0] sm:$0xff]
    %v581 = vld [vmem:[#allocation5 + $0xdb8] sm:$0xff]
    %v582 = vld [vmem:[#allocation5 + $0xdc0] sm:$0xff]
    %v583 = vld [vmem:[#allocation5 + $0xdc8] sm:$0xff]
    %v584 = vld [vmem:[#allocation5 + $0xdd0] sm:$0xff]
    %v585 = vld [vmem:[#allocation5 + $0xdd8] sm:$0xff]
    %v586 = vld [vmem:[#allocation5 + $0xde0] sm:$0xff]
    %v587 = vld [vmem:[#allocation5 + $0xde8] sm:$0xff]
    %v588 = vld [vmem:[#allocation5 + $0xdf0] sm:$0xff]
    %v589 = vld [vmem:[#allocation5 + $0xdf8] sm:$0xff]
    %v590 = vld [vmem:[#allocation5 + $0xe00] sm:$0xff]
    %v591 = vld [vmem:[#allocation5 + $0xe08] sm:$0xff]
    %v592 = vld [vmem:[#allocation5 + $0xe10] sm:$0xff]
    %v593 = vld [vmem:[#allocation5 + $0xe18] sm:$0xff]
    %v594 = vld [vmem:[#allocation5 + $0xe20] sm:$0xff]
    %v595 = vld [vmem:[#allocation5 + $0xe28] sm:$0xff]
    %v596 = vld [vmem:[#allocation5 + $0xe30] sm:$0xff]
    %v597 = vld [vmem:[#allocation5 + $0xe38] sm:$0xff]
    %v598 = vld [vmem:[#allocation5 + $0xe40] sm:$0xff]
    %v599 = vld [vmem:[#allocation5 + $0xe48] sm:$0xff]
    %v600 = vld [vmem:[#allocation5 + $0xe50] sm:$0xff]
    %v601 = vld [vmem:[#allocation5 + $0xe58] sm:$0xff]
    %v602 = vld [vmem:[#allocation5 + $0xe60] sm:$0xff]
    %v603 = vld [vmem:[#allocation5 + $0xe68] sm:$0xff]
    %v604 = vld [vmem:[#allocation5 + $0xe70] sm:$0xff]
    %v605 = vld [vmem:[#allocation5 + $0xe78] sm:$0xff]
    %v606 = vld [vmem:[#allocation5 + $0xe80] sm:$0xff]
    %v607 = vld [vmem:[#allocation5 + $0xe88] sm:$0xff]
    %v608 = vld [vmem:[#allocation5 + $0xe90] sm:$0xff]
    %v609 = vld [vmem:[#allocation5 + $0xe98] sm:$0xff]
    %v610 = vld [vmem:[#allocation5 + $0xea0] sm:$0xff]
    %v611 = vld [vmem:[#allocation5 + $0xea8] sm:$0xff]
    %v612 = vld [vmem:[#allocation5 + $0xeb0] sm:$0xff]
    %v613 = vld [vmem:[#allocation5 + $0xeb8] sm:$0xff]
    %v614 = vld [vmem:[#allocation5 + $0xec0] sm:$0xff]
    %v615 = vld [vmem:[#allocation5 + $0xec8] sm:$0xff]
    %v616 = vld [vmem:[#allocation5 + $0xed0] sm:$0xff]
    %v617 = vld [vmem:[#allocation5 + $0xed8] sm:$0xff]
    %v618 = vld [vmem:[#allocation5 + $0xee0] sm:$0xff]
    %v619 = vld [vmem:[#allocation5 + $0xee8] sm:$0xff]
    %v620 = vld [vmem:[#allocation5 + $0xef0] sm:$0xff]
    %v621 = vld [vmem:[#allocation5 + $0xef8] sm:$0xff]
    %v622 = vld [vmem:[#allocation5 + $0xf00] sm:$0xff]
    %v623 = vld [vmem:[#allocation5 + $0xf08] sm:$0xff]
    %v624 = vld [vmem:[#allocation5 + $0xf10] sm:$0xff]
    %v625 = vld [vmem:[#allocation5 + $0xf18] sm:$0xff]
    %v626 = vld [vmem:[#allocation5 + $0xf20] sm:$0xff]
    %v627 = vld [vmem:[#allocation5 + $0xf28] sm:$0xff]
    %v628 = vld [vmem:[#allocation5 + $0xf30] sm:$0xff]
    %v629 = vld [vmem:[#allocation5 + $0xf38] sm:$0xff]
    %v630 = vld [vmem:[#allocation5 + $0xf40] sm:$0xff]
    %v631 = vld [vmem:[#allocation5 + $0xf48] sm:$0xff]
    %v632 = vld [vmem:[#allocation5 + $0xf50] sm:$0xff]
    %v633 = vld [vmem:[#allocation5 + $0xf58] sm:$0xff]
    %v634 = vld [vmem:[#allocation5 + $0xf60] sm:$0xff]
    %v635 = vld [vmem:[#allocation5 + $0xf68] sm:$0xff]
    %v636 = vld [vmem:[#allocation5 + $0xf70] sm:$0xff]
    %v637 = vld [vmem:[#allocation5 + $0xf78] sm:$0xff]
    %v638 = vld [vmem:[#allocation5 + $0xf80] sm:$0xff]
    %v639 = vld [vmem:[#allocation5 + $0xf88] sm:$0xff]
    %v640 = vld [vmem:[#allocation5 + $0xf90] sm:$0xff]
    %v641 = vld [vmem:[#allocation5 + $0xf98] sm:$0xff]
    %v642 = vld [vmem:[#allocation5 + $0xfa0] sm:$0xff]
    %v643 = vld [vmem:[#allocation5 + $0xfa8] sm:$0xff]
    %v644 = vld [vmem:[#allocation5 + $0xfb0] sm:$0xff]
    %v645 = vld [vmem:[#allocation5 + $0xfb8] sm:$0xff]
    %v646 = vld [vmem:[#allocation5 + $0xfc0] sm:$0xff]
    %v647 = vld [vmem:[#allocation5 + $0xfc8] sm:$0xff]
    %v648 = vld [vmem:[#allocation5 + $0xfd0] sm:$0xff]
    %v649 = vld [vmem:[#allocation5 + $0xfd8] sm:$0xff]
    %v650 = vld [vmem:[#allocation5 + $0xfe0] sm:$0xff]
    %v651 = vld [vmem:[#allocation5 + $0xfe8] sm:$0xff]
    %v652 = vld [vmem:[#allocation5 + $0xff0] sm:$0xff]
    %v653 = vld [vmem:[#allocation5 + $0xff8] sm:$0xff]
    %v654 = vld [vmem:[#allocation5 + $0x1000] sm:$0xff]
    %v655 = vld [vmem:[#allocation5 + $0x1008] sm:$0xff]
    %v656 = vld [vmem:[#allocation5 + $0x1010] sm:$0xff]
    %v657 = vld [vmem:[#allocation5 + $0x1018] sm:$0xff]
    %v658 = vld [vmem:[#allocation5 + $0x1020] sm:$0xff]
    %v659 = vld [vmem:[#allocation5 + $0x1028] sm:$0xff]
    %v660 = vld [vmem:[#allocation5 + $0x1030] sm:$0xff]
    %v661 = vld [vmem:[#allocation5 + $0x1038] sm:$0xff]
    %v662 = vld [vmem:[#allocation5 + $0x1040] sm:$0xff]
    %v663 = vld [vmem:[#allocation5 + $0x1048] sm:$0xff]
    %v664 = vld [vmem:[#allocation5 + $0x1050] sm:$0xff]
    %v665 = vld [vmem:[#allocation5 + $0x1058] sm:$0xff]
    %v666 = vld [vmem:[#allocation5 + $0x1060] sm:$0xff]
    %v667 = vld [vmem:[#allocation5 + $0x1068] sm:$0xff]
    %v668 = vld [vmem:[#allocation5 + $0x1070] sm:$0xff]
    %v669 = vld [vmem:[#allocation5 + $0x1078] sm:$0xff]
    %v670 = vld [vmem:[#allocation5 + $0x1080] sm:$0xff]
    %v671 = vld [vmem:[#allocation5 + $0x1088] sm:$0xff]
    %v672 = vld [vmem:[#allocation5 + $0x1090] sm:$0xff]
    %v673 = vld [vmem:[#allocation5 + $0x1098] sm:$0xff]
    %v674 = vld [vmem:[#allocation5 + $0x10a0] sm:$0xff]
    %v675 = vld [vmem:[#allocation5 + $0x10a8] sm:$0xff]
    %v676 = vld [vmem:[#allocation5 + $0x10b0] sm:$0xff]
    %v677 = vld [vmem:[#allocation5 + $0x10b8] sm:$0xff]
    %v678 = vld [vmem:[#allocation5 + $0x10c0] sm:$0xff]
    %v679 = vld [vmem:[#allocation5 + $0x10c8] sm:$0xff]
    %v680 = vld [vmem:[#allocation5 + $0x10d0] sm:$0xff]
    %v681 = vld [vmem:[#allocation5 + $0x10d8] sm:$0xff]
    %v682 = vld [vmem:[#allocation5 + $0x10e0] sm:$0xff]
    %v683 = vld [vmem:[#allocation5 + $0x10e8] sm:$0xff]
    %v684 = vld [vmem:[#allocation5 + $0x10f0] sm:$0xff]
    %v685 = vld [vmem:[#allocation5 + $0x10f8] sm:$0xff]
    %v686 = vld [vmem:[#allocation5 + $0x1100] sm:$0xff]
    %v687 = vld [vmem:[#allocation5 + $0x1108] sm:$0xff]
    %v688 = vld [vmem:[#allocation5 + $0x1110] sm:$0xff]
    %v689 = vld [vmem:[#allocation5 + $0x1118] sm:$0xff]
    %v690 = vld [vmem:[#allocation5 + $0x1120] sm:$0xff]
    %v691 = vld [vmem:[#allocation5 + $0x1128] sm:$0xff]
    %v692 = vld [vmem:[#allocation5 + $0x1130] sm:$0xff]
    %v693 = vld [vmem:[#allocation5 + $0x1138] sm:$0xff]
    %v694 = vld [vmem:[#allocation5 + $0x1140] sm:$0xff]
    %v695 = vld [vmem:[#allocation5 + $0x1148] sm:$0xff]
    %v696 = vld [vmem:[#allocation5 + $0x1150] sm:$0xff]
    %v697 = vld [vmem:[#allocation5 + $0x1158] sm:$0xff]
    %v698 = vld [vmem:[#allocation5 + $0x1160] sm:$0xff]
    %v699 = vld [vmem:[#allocation5 + $0x1168] sm:$0xff]
    %v700 = vld [vmem:[#allocation5 + $0x1170] sm:$0xff]
    %v701 = vld [vmem:[#allocation5 + $0x1178] sm:$0xff]
    %v702 = vld [vmem:[#allocation5 + $0x1180] sm:$0xff]
    %v703 = vld [vmem:[#allocation5 + $0x1188] sm:$0xff]
    %v704 = vld [vmem:[#allocation5 + $0x1190] sm:$0xff]
    %v705 = vld [vmem:[#allocation5 + $0x1198] sm:$0xff]
    %v706 = vld [vmem:[#allocation5 + $0x11a0] sm:$0xff]
    %v707 = vld [vmem:[#allocation5 + $0x11a8] sm:$0xff]
    %v708 = vld [vmem:[#allocation5 + $0x11b0] sm:$0xff]
    %v709 = vld [vmem:[#allocation5 + $0x11b8] sm:$0xff]
    %v710 = vld [vmem:[#allocation5 + $0x11c0] sm:$0xff]
    %v711 = vld [vmem:[#allocation5 + $0x11c8] sm:$0xff]
    %v712 = vld [vmem:[#allocation5 + $0x11d0] sm:$0xff]
    %v713 = vld [vmem:[#allocation5 + $0x11d8] sm:$0xff]
    %v714 = vld [vmem:[#allocation5 + $0x11e0] sm:$0xff]
    %v715 = vld [vmem:[#allocation5 + $0x11e8] sm:$0xff]
    %v716 = vld [vmem:[#allocation5 + $0x11f0] sm:$0xff]
    %v717 = vld [vmem:[#allocation5 + $0x11f8] sm:$0xff]
    %v718 = vld [vmem:[#allocation5 + $0x1200] sm:$0xff]
    %v719 = vld [vmem:[#allocation5 + $0x1208] sm:$0xff]
    %v720 = vld [vmem:[#allocation5 + $0x1210] sm:$0xff]
    %v721 = vld [vmem:[#allocation5 + $0x1218] sm:$0xff]
    %v722 = vld [vmem:[#allocation5 + $0x1220] sm:$0xff]
    %v723 = vld [vmem:[#allocation5 + $0x1228] sm:$0xff]
    %v724 = vld [vmem:[#allocation5 + $0x1230] sm:$0xff]
    %v725 = vld [vmem:[#allocation5 + $0x1238] sm:$0xff]
    %v726 = vld [vmem:[#allocation5 + $0x1240] sm:$0xff]
    %v727 = vld [vmem:[#allocation5 + $0x1248] sm:$0xff]
    %v728 = vld [vmem:[#allocation5 + $0x1250] sm:$0xff]
    %v729 = vld [vmem:[#allocation5 + $0x1258] sm:$0xff]
    %v730 = vld [vmem:[#allocation5 + $0x1260] sm:$0xff]
    %v731 = vld [vmem:[#allocation5 + $0x1268] sm:$0xff]
    %v732 = vld [vmem:[#allocation5 + $0x1270] sm:$0xff]
    %v733 = vld [vmem:[#allocation5 + $0x1278] sm:$0xff]
    %v734 = vld [vmem:[#allocation5 + $0x1280] sm:$0xff]
    %v735 = vld [vmem:[#allocation5 + $0x1288] sm:$0xff]
    %v736 = vld [vmem:[#allocation5 + $0x1290] sm:$0xff]
    %v737 = vld [vmem:[#allocation5 + $0x1298] sm:$0xff]
    %v738 = vld [vmem:[#allocation5 + $0x12a0] sm:$0xff]
    %v739 = vld [vmem:[#allocation5 + $0x12a8] sm:$0xff]
    %v740 = vld [vmem:[#allocation5 + $0x12b0] sm:$0xff]
    %v741 = vld [vmem:[#allocation5 + $0x12b8] sm:$0xff]
    %v742 = vld [vmem:[#allocation5 + $0x12c0] sm:$0xff]
    %v743 = vld [vmem:[#allocation5 + $0x12c8] sm:$0xff]
    %v744 = vld [vmem:[#allocation5 + $0x12d0] sm:$0xff]
    %v745 = vld [vmem:[#allocation5 + $0x12d8] sm:$0xff]
    %v746 = vld [vmem:[#allocation5 + $0x12e0] sm:$0xff]
    %v747 = vld [vmem:[#allocation5 + $0x12e8] sm:$0xff]
    %v748 = vld [vmem:[#allocation5 + $0x12f0] sm:$0xff]
    %v749 = vld [vmem:[#allocation5 + $0x12f8] sm:$0xff]
    %v750 = vld [vmem:[#allocation5 + $0x1300] sm:$0xff]
    %v751 = vld [vmem:[#allocation5 + $0x1308] sm:$0xff]
    %v752 = vld [vmem:[#allocation5 + $0x1310] sm:$0xff]
    %v753 = vld [vmem:[#allocation5 + $0x1318] sm:$0xff]
    %v754 = vld [vmem:[#allocation5 + $0x1320] sm:$0xff]
    %v755 = vld [vmem:[#allocation5 + $0x1328] sm:$0xff]
    %v756 = vld [vmem:[#allocation5 + $0x1330] sm:$0xff]
    %v757 = vld [vmem:[#allocation5 + $0x1338] sm:$0xff]
    %v758 = vld [vmem:[#allocation5 + $0x1340] sm:$0xff]
    %v759 = vld [vmem:[#allocation5 + $0x1348] sm:$0xff]
    %v760 = vld [vmem:[#allocation5 + $0x1350] sm:$0xff]
    %v761 = vld [vmem:[#allocation5 + $0x1358] sm:$0xff]
    %v762 = vld [vmem:[#allocation5 + $0x1360] sm:$0xff]
    %v763 = vld [vmem:[#allocation5 + $0x1368] sm:$0xff]
    %v764 = vld [vmem:[#allocation5 + $0x1370] sm:$0xff]
    %v765 = vld [vmem:[#allocation5 + $0x1378] sm:$0xff]
    %v766 = vld [vmem:[#allocation5 + $0x1380] sm:$0xff]
    %v767 = vld [vmem:[#allocation5 + $0x1388] sm:$0xff]
    %v768 = vld [vmem:[#allocation5 + $0x1390] sm:$0xff]
    %v769 = vld [vmem:[#allocation5 + $0x1398] sm:$0xff]
    %v770 = vld [vmem:[#allocation5 + $0x13a0] sm:$0xff]
    %v771 = vld [vmem:[#allocation5 + $0x13a8] sm:$0xff]
    %v772 = vld [vmem:[#allocation5 + $0x13b0] sm:$0xff]
    %v773 = vld [vmem:[#allocation5 + $0x13b8] sm:$0xff]
    %v774 = vld [vmem:[#allocation5 + $0x13c0] sm:$0xff]
    %v775 = vld [vmem:[#allocation5 + $0x13c8] sm:$0xff]
    %v776 = vld [vmem:[#allocation5 + $0x13d0] sm:$0xff]
    %v777 = vld [vmem:[#allocation5 + $0x13d8] sm:$0xff]
    %v778 = vld [vmem:[#allocation5 + $0x13e0] sm:$0xff]
    %v779 = vld [vmem:[#allocation5 + $0x13e8] sm:$0xff]
    %v780 = vld [vmem:[#allocation5 + $0x13f0] sm:$0xff]
    %v781 = vld [vmem:[#allocation5 + $0x13f8] sm:$0xff]
    %v782 = vld [vmem:[#allocation5 + $0x1400] sm:$0xff]
    %v783 = vld [vmem:[#allocation5 + $0x1408] sm:$0xff]
    %v784 = vld [vmem:[#allocation5 + $0x1410] sm:$0xff]
    %v785 = vld [vmem:[#allocation5 + $0x1418] sm:$0xff]
    %v786 = vld [vmem:[#allocation5 + $0x1420] sm:$0xff]
    %v787 = vld [vmem:[#allocation5 + $0x1428] sm:$0xff]
    %v788 = vld [vmem:[#allocation5 + $0x1430] sm:$0xff]
    %v789 = vld [vmem:[#allocation5 + $0x1438] sm:$0xff]
    %v790 = vld [vmem:[#allocation5 + $0x1440] sm:$0xff]
    %v791 = vld [vmem:[#allocation5 + $0x1448] sm:$0xff]
    %v792 = vld [vmem:[#allocation5 + $0x1450] sm:$0xff]
    %v793 = vld [vmem:[#allocation5 + $0x1458] sm:$0xff]
    %v794 = vld [vmem:[#allocation5 + $0x1460] sm:$0xff]
    %v795 = vld [vmem:[#allocation5 + $0x1468] sm:$0xff]
    %v796 = vld [vmem:[#allocation5 + $0x1470] sm:$0xff]
    %v797 = vld [vmem:[#allocation5 + $0x1478] sm:$0xff]
    %v798 = vld [vmem:[#allocation5 + $0x1480] sm:$0xff]
    %v799 = vld [vmem:[#allocation5 + $0x1488] sm:$0xff]
    %v800 = vld [vmem:[#allocation5 + $0x1490] sm:$0xff]
    %v801 = vld [vmem:[#allocation5 + $0x1498] sm:$0xff]
    %v802 = vld [vmem:[#allocation5 + $0x14a0] sm:$0xff]
    %v803 = vld [vmem:[#allocation5 + $0x14a8] sm:$0xff]
    %v804 = vld [vmem:[#allocation5 + $0x14b0] sm:$0xff]
    %v805 = vld [vmem:[#allocation5 + $0x14b8] sm:$0xff]
    %v806 = vld [vmem:[#allocation5 + $0x14c0] sm:$0xff]
    %v807 = vld [vmem:[#allocation5 + $0x14c8] sm:$0xff]
    %v808 = vld [vmem:[#allocation5 + $0x14d0] sm:$0xff]
    %v809 = vld [vmem:[#allocation5 + $0x14d8] sm:$0xff]
    %v810 = vld [vmem:[#allocation5 + $0x14e0] sm:$0xff]
    %v811 = vld [vmem:[#allocation5 + $0x14e8] sm:$0xff]
    %v812 = vld [vmem:[#allocation5 + $0x14f0] sm:$0xff]
    %v813 = vld [vmem:[#allocation5 + $0x14f8] sm:$0xff]
    %v814 = vld [vmem:[#allocation5 + $0x1500] sm:$0xff]
    %v815 = vld [vmem:[#allocation5 + $0x1508] sm:$0xff]
    %v816 = vld [vmem:[#allocation5 + $0x1510] sm:$0xff]
    %v817 = vld [vmem:[#allocation5 + $0x1518] sm:$0xff]
    %v818 = vld [vmem:[#allocation5 + $0x1520] sm:$0xff]
    %v819 = vld [vmem:[#allocation5 + $0x1528] sm:$0xff]
    %v820 = vld [vmem:[#allocation5 + $0x1530] sm:$0xff]
    %v821 = vld [vmem:[#allocation5 + $0x1538] sm:$0xff]
    %v822 = vld [vmem:[#allocation5 + $0x1540] sm:$0xff]
    %v823 = vld [vmem:[#allocation5 + $0x1548] sm:$0xff]
    %v824 = vld [vmem:[#allocation5 + $0x1550] sm:$0xff]
    %v825 = vld [vmem:[#allocation5 + $0x1558] sm:$0xff]
    %v826 = vld [vmem:[#allocation5 + $0x1560] sm:$0xff]
    %v827 = vld [vmem:[#allocation5 + $0x1568] sm:$0xff]
    %v828 = vld [vmem:[#allocation5 + $0x1570] sm:$0xff]
    %v829 = vld [vmem:[#allocation5 + $0x1578] sm:$0xff]
    %v830 = vld [vmem:[#allocation5 + $0x1580] sm:$0xff]
    %v831 = vld [vmem:[#allocation5 + $0x1588] sm:$0xff]
    %v832 = vld [vmem:[#allocation5 + $0x1590] sm:$0xff]
    %v833 = vld [vmem:[#allocation5 + $0x1598] sm:$0xff]
    %v834 = vld [vmem:[#allocation5 + $0x15a0] sm:$0xff]
    %v835 = vld [vmem:[#allocation5 + $0x15a8] sm:$0xff]
    %v836 = vld [vmem:[#allocation5 + $0x15b0] sm:$0xff]
    %v837 = vld [vmem:[#allocation5 + $0x15b8] sm:$0xff]
    %v838 = vld [vmem:[#allocation5 + $0x15c0] sm:$0xff]
    %v839 = vld [vmem:[#allocation5 + $0x15c8] sm:$0xff]
    %v840 = vld [vmem:[#allocation5 + $0x15d0] sm:$0xff]
    %v841 = vld [vmem:[#allocation5 + $0x15d8] sm:$0xff]
    %v842 = vld [vmem:[#allocation5 + $0x15e0] sm:$0xff]
    %v843 = vld [vmem:[#allocation5 + $0x15e8] sm:$0xff]
    %v844 = vld [vmem:[#allocation5 + $0x15f0] sm:$0xff]
    %v845 = vld [vmem:[#allocation5 + $0x15f8] sm:$0xff]
    %v846 = vld [vmem:[#allocation5 + $0x1600] sm:$0xff]
    %v847 = vld [vmem:[#allocation5 + $0x1608] sm:$0xff]
    %v848 = vld [vmem:[#allocation5 + $0x1610] sm:$0xff]
    %v849 = vld [vmem:[#allocation5 + $0x1618] sm:$0xff]
    %v850 = vld [vmem:[#allocation5 + $0x1620] sm:$0xff]
    %v851 = vld [vmem:[#allocation5 + $0x1628] sm:$0xff]
    %v852 = vld [vmem:[#allocation5 + $0x1630] sm:$0xff]
    %v853 = vld [vmem:[#allocation5 + $0x1638] sm:$0xff]
    %v854 = vld [vmem:[#allocation5 + $0x1640] sm:$0xff]
    %v855 = vld [vmem:[#allocation5 + $0x1648] sm:$0xff]
    %v856 = vld [vmem:[#allocation5 + $0x1650] sm:$0xff]
    %v857 = vld [vmem:[#allocation5 + $0x1658] sm:$0xff]
    %v858 = vld [vmem:[#allocation5 + $0x1660] sm:$0xff]
    %v859 = vld [vmem:[#allocation5 + $0x1668] sm:$0xff]
    %v860 = vld [vmem:[#allocation5 + $0x1670] sm:$0xff]
    %v861 = vld [vmem:[#allocation5 + $0x1678] sm:$0xff]
    %v862 = vld [vmem:[#allocation5 + $0x1680] sm:$0xff]
    %v863 = vld [vmem:[#allocation5 + $0x1688] sm:$0xff]
    %v864 = vld [vmem:[#allocation5 + $0x1690] sm:$0xff]
    %v865 = vld [vmem:[#allocation5 + $0x1698] sm:$0xff]
    %v866 = vld [vmem:[#allocation5 + $0x16a0] sm:$0xff]
    %v867 = vld [vmem:[#allocation5 + $0x16a8] sm:$0xff]
    %v868 = vld [vmem:[#allocation5 + $0x16b0] sm:$0xff]
    %v869 = vld [vmem:[#allocation5 + $0x16b8] sm:$0xff]
    %v870 = vld [vmem:[#allocation5 + $0x16c0] sm:$0xff]
    %v871 = vld [vmem:[#allocation5 + $0x16c8] sm:$0xff]
    %v872 = vld [vmem:[#allocation5 + $0x16d0] sm:$0xff]
    %v873 = vld [vmem:[#allocation5 + $0x16d8] sm:$0xff]
    %v874 = vld [vmem:[#allocation5 + $0x16e0] sm:$0xff]
    %v875 = vld [vmem:[#allocation5 + $0x16e8] sm:$0xff]
    %v876 = vld [vmem:[#allocation5 + $0x16f0] sm:$0xff]
    %v877 = vld [vmem:[#allocation5 + $0x16f8] sm:$0xff]
    %v878 = vld [vmem:[#allocation5 + $0x1700] sm:$0xff]
    %v879 = vld [vmem:[#allocation5 + $0x1708] sm:$0xff]
    %v880 = vld [vmem:[#allocation5 + $0x1710] sm:$0xff]
    %v881 = vld [vmem:[#allocation5 + $0x1718] sm:$0xff]
    %v882 = vld [vmem:[#allocation5 + $0x1720] sm:$0xff]
    %v883 = vld [vmem:[#allocation5 + $0x1728] sm:$0xff]
    %v884 = vld [vmem:[#allocation5 + $0x1730] sm:$0xff]
    %v885 = vld [vmem:[#allocation5 + $0x1738] sm:$0xff]
    %v886 = vld [vmem:[#allocation5 + $0x1740] sm:$0xff]
    %v887 = vld [vmem:[#allocation5 + $0x1748] sm:$0xff]
    %v888 = vld [vmem:[#allocation5 + $0x1750] sm:$0xff]
    %v889 = vld [vmem:[#allocation5 + $0x1758] sm:$0xff]
    %v890 = vld [vmem:[#allocation5 + $0x1760] sm:$0xff]
    %v891 = vld [vmem:[#allocation5 + $0x1768] sm:$0xff]
    %v892 = vld [vmem:[#allocation5 + $0x1770] sm:$0xff]
    %v893 = vld [vmem:[#allocation5 + $0x1778] sm:$0xff]
    %v894 = vld [vmem:[#allocation5 + $0x1780] sm:$0xff]
    %v895 = vld [vmem:[#allocation5 + $0x1788] sm:$0xff]
    %v896 = vld [vmem:[#allocation5 + $0x1790] sm:$0xff]
    %v897 = vld [vmem:[#allocation5 + $0x1798] sm:$0xff]
    %v898 = vld [vmem:[#allocation5 + $0x17a0] sm:$0xff]
    %v899 = vld [vmem:[#allocation5 + $0x17a8] sm:$0xff]
    %v900 = vld [vmem:[#allocation5 + $0x17b0] sm:$0xff]
    %v901 = vld [vmem:[#allocation5 + $0x17b8] sm:$0xff]
    %v902 = vld [vmem:[#allocation5 + $0x17c0] sm:$0xff]
    %v903 = vld [vmem:[#allocation5 + $0x17c8] sm:$0xff]
    %v904 = vld [vmem:[#allocation5 + $0x17d0] sm:$0xff]
    %v905 = vld [vmem:[#allocation5 + $0x17d8] sm:$0xff]
    %v906 = vld [vmem:[#allocation5 + $0x17e0] sm:$0xff]
    %v907 = vld [vmem:[#allocation5 + $0x17e8] sm:$0xff]
    %v908 = vld [vmem:[#allocation5 + $0x17f0] sm:$0xff]
    %v909 = vld [vmem:[#allocation5 + $0x17f8] sm:$0xff]
    %v934 = vunpack.c.l.b16 %v118
    %v935 = vunpack.c.h.b16 %v118
    %v936 = vunpack.c.l.b16 %v119
    %v937 = vunpack.c.h.b16 %v119
    %v938 = vunpack.c.l.b16 %v120
    %v939 = vunpack.c.h.b16 %v120
    %v940 = vunpack.c.l.b16 %v121
    %v941 = vunpack.c.h.b16 %v121
    %v942 = vunpack.c.l.b16 %v122
    %v943 = vunpack.c.h.b16 %v122
    %v944 = vunpack.c.l.b16 %v123
    %v945 = vunpack.c.h.b16 %v123
    %v946 = vunpack.c.l.b16 %v124
    %v947 = vunpack.c.h.b16 %v124
    %v948 = vunpack.c.l.b16 %v125
    %v949 = vunpack.c.h.b16 %v125
    %v950 = vunpack.c.l.b16 %v126
    %v951 = vunpack.c.h.b16 %v126
    %v952 = vunpack.c.l.b16 %v127
    %v953 = vunpack.c.h.b16 %v127
    %v954 = vunpack.c.l.b16 %v128
    %v955 = vunpack.c.h.b16 %v128
    %v956 = vunpack.c.l.b16 %v129
    %v957 = vunpack.c.h.b16 %v129
    %v958 = vunpack.c.l.b16 %v130
    %v959 = vunpack.c.h.b16 %v130
    %v960 = vunpack.c.l.b16 %v131
    %v961 = vunpack.c.h.b16 %v131
    %v962 = vunpack.c.l.b16 %v132
    %v963 = vunpack.c.h.b16 %v132
    %v964 = vunpack.c.l.b16 %v133
    %v965 = vunpack.c.h.b16 %v133
    %v966 = vunpack.c.l.b16 %v134
    %v967 = vunpack.c.h.b16 %v134
    %v968 = vunpack.c.l.b16 %v135
    %v969 = vunpack.c.h.b16 %v135
    %v970 = vunpack.c.l.b16 %v136
    %v971 = vunpack.c.h.b16 %v136
    %v972 = vunpack.c.l.b16 %v137
    %v973 = vunpack.c.h.b16 %v137
    %v974 = vunpack.c.l.b16 %v138
    %v975 = vunpack.c.h.b16 %v138
    %v976 = vunpack.c.l.b16 %v139
    %v977 = vunpack.c.h.b16 %v139
    %v978 = vunpack.c.l.b16 %v140
    %v979 = vunpack.c.h.b16 %v140
    %v980 = vunpack.c.l.b16 %v141
    %v981 = vunpack.c.h.b16 %v141
    %v982 = vpack.c.b16 %v958, %v934
    %v983 = vpack.c.b16 %v959, %v935
    %v984 = vpack.c.b16 %v960, %v936
    %v985 = vpack.c.b16 %v961, %v937
    %v986 = vpack.c.b16 %v962, %v938
    %v987 = vpack.c.b16 %v963, %v939
    %v988 = vpack.c.b16 %v964, %v940
    %v989 = vpack.c.b16 %v965, %v941
    %v990 = vpack.c.b16 %v966, %v942
    %v991 = vpack.c.b16 %v967, %v943
    %v992 = vpack.c.b16 %v968, %v944
    %v993 = vpack.c.b16 %v969, %v945
    %v994 = vpack.c.b16 %v970, %v946
    %v995 = vpack.c.b16 %v971, %v947
    %v996 = vpack.c.b16 %v972, %v948
    %v997 = vpack.c.b16 %v973, %v949
    %v998 = vpack.c.b16 %v974, %v950
    %v999 = vpack.c.b16 %v975, %v951
    %v1000 = vpack.c.b16 %v976, %v952
    %v1001 = vpack.c.b16 %v977, %v953
    %v1002 = vpack.c.b16 %v978, %v954
    %v1003 = vpack.c.b16 %v979, %v955
    %v1004 = vpack.c.b16 %v980, %v956
    %v1005 = vpack.c.b16 %v981, %v957
    %v1798 = vunpack.c.l.b16 %v142
    %v1799 = vunpack.c.h.b16 %v142
    %v1800 = vunpack.c.l.b16 %v143
    %v1801 = vunpack.c.h.b16 %v143
    %v1802 = vunpack.c.l.b16 %v144
    %v1803 = vunpack.c.h.b16 %v144
    %v1804 = vunpack.c.l.b16 %v145
    %v1805 = vunpack.c.h.b16 %v145
    %v1806 = vunpack.c.l.b16 %v146
    %v1807 = vunpack.c.h.b16 %v146
    %v1808 = vunpack.c.l.b16 %v147
    %v1809 = vunpack.c.h.b16 %v147
    %v1810 = vunpack.c.l.b16 %v148
    %v1811 = vunpack.c.h.b16 %v148
    %v1812 = vunpack.c.l.b16 %v149
    %v1813 = vunpack.c.h.b16 %v149
    %v1814 = vunpack.c.l.b16 %v150
    %v1815 = vunpack.c.h.b16 %v150
    %v1816 = vunpack.c.l.b16 %v151
    %v1817 = vunpack.c.h.b16 %v151
    %v1818 = vunpack.c.l.b16 %v152
    %v1819 = vunpack.c.h.b16 %v152
    %v1820 = vunpack.c.l.b16 %v153
    %v1821 = vunpack.c.h.b16 %v153
    %v1822 = vunpack.c.l.b16 %v154
    %v1823 = vunpack.c.h.b16 %v154
    %v1824 = vunpack.c.l.b16 %v155
    %v1825 = vunpack.c.h.b16 %v155
    %v1826 = vunpack.c.l.b16 %v156
    %v1827 = vunpack.c.h.b16 %v156
    %v1828 = vunpack.c.l.b16 %v157
    %v1829 = vunpack.c.h.b16 %v157
    %v1830 = vunpack.c.l.b16 %v158
    %v1831 = vunpack.c.h.b16 %v158
    %v1832 = vunpack.c.l.b16 %v159
    %v1833 = vunpack.c.h.b16 %v159
    %v1834 = vunpack.c.l.b16 %v160
    %v1835 = vunpack.c.h.b16 %v160
    %v1836 = vunpack.c.l.b16 %v161
    %v1837 = vunpack.c.h.b16 %v161
    %v1838 = vunpack.c.l.b16 %v162
    %v1839 = vunpack.c.h.b16 %v162
    %v1840 = vunpack.c.l.b16 %v163
    %v1841 = vunpack.c.h.b16 %v163
    %v1842 = vunpack.c.l.b16 %v164
    %v1843 = vunpack.c.h.b16 %v164
    %v1844 = vunpack.c.l.b16 %v165
    %v1845 = vunpack.c.h.b16 %v165
    %v1846 = vunpack.c.l.b16 %v166
    %v1847 = vunpack.c.h.b16 %v166
    %v1848 = vunpack.c.l.b16 %v167
    %v1849 = vunpack.c.h.b16 %v167
    %v1850 = vunpack.c.l.b16 %v168
    %v1851 = vunpack.c.h.b16 %v168
    %v1852 = vunpack.c.l.b16 %v169
    %v1853 = vunpack.c.h.b16 %v169
    %v1854 = vunpack.c.l.b16 %v170
    %v1855 = vunpack.c.h.b16 %v170
    %v1856 = vunpack.c.l.b16 %v171
    %v1857 = vunpack.c.h.b16 %v171
    %v1858 = vunpack.c.l.b16 %v172
    %v1859 = vunpack.c.h.b16 %v172
    %v1860 = vunpack.c.l.b16 %v173
    %v1861 = vunpack.c.h.b16 %v173
    %v1862 = vunpack.c.l.b16 %v174
    %v1863 = vunpack.c.h.b16 %v174
    %v1864 = vunpack.c.l.b16 %v175
    %v1865 = vunpack.c.h.b16 %v175
    %v1866 = vunpack.c.l.b16 %v176
    %v1867 = vunpack.c.h.b16 %v176
    %v1868 = vunpack.c.l.b16 %v177
    %v1869 = vunpack.c.h.b16 %v177
    %v1870 = vunpack.c.l.b16 %v178
    %v1871 = vunpack.c.h.b16 %v178
    %v1872 = vunpack.c.l.b16 %v179
    %v1873 = vunpack.c.h.b16 %v179
    %v1874 = vunpack.c.l.b16 %v180
    %v1875 = vunpack.c.h.b16 %v180
    %v1876 = vunpack.c.l.b16 %v181
    %v1877 = vunpack.c.h.b16 %v181
    %v1878 = vunpack.c.l.b16 %v182
    %v1879 = vunpack.c.h.b16 %v182
    %v1880 = vunpack.c.l.b16 %v183
    %v1881 = vunpack.c.h.b16 %v183
    %v1882 = vunpack.c.l.b16 %v184
    %v1883 = vunpack.c.h.b16 %v184
    %v1884 = vunpack.c.l.b16 %v185
    %v1885 = vunpack.c.h.b16 %v185
    %v1886 = vunpack.c.l.b16 %v186
    %v1887 = vunpack.c.h.b16 %v186
    %v1888 = vunpack.c.l.b16 %v187
    %v1889 = vunpack.c.h.b16 %v187
    %v1890 = vunpack.c.l.b16 %v188
    %v1891 = vunpack.c.h.b16 %v188
    %v1892 = vunpack.c.l.b16 %v189
    %v1893 = vunpack.c.h.b16 %v189
    %v1894 = vunpack.c.l.b16 %v190
    %v1895 = vunpack.c.h.b16 %v190
    %v1896 = vunpack.c.l.b16 %v191
    %v1897 = vunpack.c.h.b16 %v191
    %v1898 = vunpack.c.l.b16 %v192
    %v1899 = vunpack.c.h.b16 %v192
    %v1900 = vunpack.c.l.b16 %v193
    %v1901 = vunpack.c.h.b16 %v193
    %v1902 = vunpack.c.l.b16 %v194
    %v1903 = vunpack.c.h.b16 %v194
    %v1904 = vunpack.c.l.b16 %v195
    %v1905 = vunpack.c.h.b16 %v195
    %v1906 = vunpack.c.l.b16 %v196
    %v1907 = vunpack.c.h.b16 %v196
    %v1908 = vunpack.c.l.b16 %v197
    %v1909 = vunpack.c.h.b16 %v197
    %v1910 = vunpack.c.l.b16 %v198
    %v1911 = vunpack.c.h.b16 %v198
    %v1912 = vunpack.c.l.b16 %v199
    %v1913 = vunpack.c.h.b16 %v199
    %v1914 = vunpack.c.l.b16 %v200
    %v1915 = vunpack.c.h.b16 %v200
    %v1916 = vunpack.c.l.b16 %v201
    %v1917 = vunpack.c.h.b16 %v201
    %v1918 = vunpack.c.l.b16 %v202
    %v1919 = vunpack.c.h.b16 %v202
    %v1920 = vunpack.c.l.b16 %v203
    %v1921 = vunpack.c.h.b16 %v203
    %v1922 = vunpack.c.l.b16 %v204
    %v1923 = vunpack.c.h.b16 %v204
    %v1924 = vunpack.c.l.b16 %v205
    %v1925 = vunpack.c.h.b16 %v205
    %v1926 = vunpack.c.l.b16 %v206
    %v1927 = vunpack.c.h.b16 %v206
    %v1928 = vunpack.c.l.b16 %v207
    %v1929 = vunpack.c.h.b16 %v207
    %v1930 = vunpack.c.l.b16 %v208
    %v1931 = vunpack.c.h.b16 %v208
    %v1932 = vunpack.c.l.b16 %v209
    %v1933 = vunpack.c.h.b16 %v209
    %v1934 = vunpack.c.l.b16 %v210
    %v1935 = vunpack.c.h.b16 %v210
    %v1936 = vunpack.c.l.b16 %v211
    %v1937 = vunpack.c.h.b16 %v211
    %v1938 = vunpack.c.l.b16 %v212
    %v1939 = vunpack.c.h.b16 %v212
    %v1940 = vunpack.c.l.b16 %v213
    %v1941 = vunpack.c.h.b16 %v213
    %v1942 = vunpack.c.l.b16 %v214
    %v1943 = vunpack.c.h.b16 %v214
    %v1944 = vunpack.c.l.b16 %v215
    %v1945 = vunpack.c.h.b16 %v215
    %v1946 = vunpack.c.l.b16 %v216
    %v1947 = vunpack.c.h.b16 %v216
    %v1948 = vunpack.c.l.b16 %v217
    %v1949 = vunpack.c.h.b16 %v217
    %v1950 = vunpack.c.l.b16 %v218
    %v1951 = vunpack.c.h.b16 %v218
    %v1952 = vunpack.c.l.b16 %v219
    %v1953 = vunpack.c.h.b16 %v219
    %v1954 = vunpack.c.l.b16 %v220
    %v1955 = vunpack.c.h.b16 %v220
    %v1956 = vunpack.c.l.b16 %v221
    %v1957 = vunpack.c.h.b16 %v221
    %v1958 = vunpack.c.l.b16 %v222
    %v1959 = vunpack.c.h.b16 %v222
    %v1960 = vunpack.c.l.b16 %v223
    %v1961 = vunpack.c.h.b16 %v223
    %v1962 = vunpack.c.l.b16 %v224
    %v1963 = vunpack.c.h.b16 %v224
    %v1964 = vunpack.c.l.b16 %v225
    %v1965 = vunpack.c.h.b16 %v225
    %v1966 = vunpack.c.l.b16 %v226
    %v1967 = vunpack.c.h.b16 %v226
    %v1968 = vunpack.c.l.b16 %v227
    %v1969 = vunpack.c.h.b16 %v227
    %v1970 = vunpack.c.l.b16 %v228
    %v1971 = vunpack.c.h.b16 %v228
    %v1972 = vunpack.c.l.b16 %v229
    %v1973 = vunpack.c.h.b16 %v229
    %v1974 = vunpack.c.l.b16 %v230
    %v1975 = vunpack.c.h.b16 %v230
    %v1976 = vunpack.c.l.b16 %v231
    %v1977 = vunpack.c.h.b16 %v231
    %v1978 = vunpack.c.l.b16 %v232
    %v1979 = vunpack.c.h.b16 %v232
    %v1980 = vunpack.c.l.b16 %v233
    %v1981 = vunpack.c.h.b16 %v233
    %v1982 = vunpack.c.l.b16 %v234
    %v1983 = vunpack.c.h.b16 %v234
    %v1984 = vunpack.c.l.b16 %v235
    %v1985 = vunpack.c.h.b16 %v235
    %v1986 = vunpack.c.l.b16 %v236
    %v1987 = vunpack.c.h.b16 %v236
    %v1988 = vunpack.c.l.b16 %v237
    %v1989 = vunpack.c.h.b16 %v237
    %v1990 = vunpack.c.l.b16 %v238
    %v1991 = vunpack.c.h.b16 %v238
    %v1992 = vunpack.c.l.b16 %v239
    %v1993 = vunpack.c.h.b16 %v239
    %v1994 = vunpack.c.l.b16 %v240
    %v1995 = vunpack.c.h.b16 %v240
    %v1996 = vunpack.c.l.b16 %v241
    %v1997 = vunpack.c.h.b16 %v241
    %v1998 = vunpack.c.l.b16 %v242
    %v1999 = vunpack.c.h.b16 %v242
    %v2000 = vunpack.c.l.b16 %v243
    %v2001 = vunpack.c.h.b16 %v243
    %v2002 = vunpack.c.l.b16 %v244
    %v2003 = vunpack.c.h.b16 %v244
    %v2004 = vunpack.c.l.b16 %v245
    %v2005 = vunpack.c.h.b16 %v245
    %v2006 = vunpack.c.l.b16 %v246
    %v2007 = vunpack.c.h.b16 %v246
    %v2008 = vunpack.c.l.b16 %v247
    %v2009 = vunpack.c.h.b16 %v247
    %v2010 = vunpack.c.l.b16 %v248
    %v2011 = vunpack.c.h.b16 %v248
    %v2012 = vunpack.c.l.b16 %v249
    %v2013 = vunpack.c.h.b16 %v249
    %v2014 = vunpack.c.l.b16 %v250
    %v2015 = vunpack.c.h.b16 %v250
    %v2016 = vunpack.c.l.b16 %v251
    %v2017 = vunpack.c.h.b16 %v251
    %v2018 = vunpack.c.l.b16 %v252
    %v2019 = vunpack.c.h.b16 %v252
    %v2020 = vunpack.c.l.b16 %v253
    %v2021 = vunpack.c.h.b16 %v253
    %v2022 = vunpack.c.l.b16 %v254
    %v2023 = vunpack.c.h.b16 %v254
    %v2024 = vunpack.c.l.b16 %v255
    %v2025 = vunpack.c.h.b16 %v255
    %v2026 = vunpack.c.l.b16 %v256
    %v2027 = vunpack.c.h.b16 %v256
    %v2028 = vunpack.c.l.b16 %v257
    %v2029 = vunpack.c.h.b16 %v257
    %v2030 = vunpack.c.l.b16 %v258
    %v2031 = vunpack.c.h.b16 %v258
    %v2032 = vunpack.c.l.b16 %v259
    %v2033 = vunpack.c.h.b16 %v259
    %v2034 = vunpack.c.l.b16 %v260
    %v2035 = vunpack.c.h.b16 %v260
    %v2036 = vunpack.c.l.b16 %v261
    %v2037 = vunpack.c.h.b16 %v261
    %v2038 = vunpack.c.l.b16 %v262
    %v2039 = vunpack.c.h.b16 %v262
    %v2040 = vunpack.c.l.b16 %v263
    %v2041 = vunpack.c.h.b16 %v263
    %v2042 = vunpack.c.l.b16 %v264
    %v2043 = vunpack.c.h.b16 %v264
    %v2044 = vunpack.c.l.b16 %v265
    %v2045 = vunpack.c.h.b16 %v265
    %v2046 = vunpack.c.l.b16 %v266
    %v2047 = vunpack.c.h.b16 %v266
    %v2048 = vunpack.c.l.b16 %v267
    %v2049 = vunpack.c.h.b16 %v267
    %v2050 = vunpack.c.l.b16 %v268
    %v2051 = vunpack.c.h.b16 %v268
    %v2052 = vunpack.c.l.b16 %v269
    %v2053 = vunpack.c.h.b16 %v269
    %v2054 = vunpack.c.l.b16 %v270
    %v2055 = vunpack.c.h.b16 %v270
    %v2056 = vunpack.c.l.b16 %v271
    %v2057 = vunpack.c.h.b16 %v271
    %v2058 = vunpack.c.l.b16 %v272
    %v2059 = vunpack.c.h.b16 %v272
    %v2060 = vunpack.c.l.b16 %v273
    %v2061 = vunpack.c.h.b16 %v273
    %v2062 = vunpack.c.l.b16 %v274
    %v2063 = vunpack.c.h.b16 %v274
    %v2064 = vunpack.c.l.b16 %v275
    %v2065 = vunpack.c.h.b16 %v275
    %v2066 = vunpack.c.l.b16 %v276
    %v2067 = vunpack.c.h.b16 %v276
    %v2068 = vunpack.c.l.b16 %v277
    %v2069 = vunpack.c.h.b16 %v277
    %v2070 = vunpack.c.l.b16 %v278
    %v2071 = vunpack.c.h.b16 %v278
    %v2072 = vunpack.c.l.b16 %v279
    %v2073 = vunpack.c.h.b16 %v279
    %v2074 = vunpack.c.l.b16 %v280
    %v2075 = vunpack.c.h.b16 %v280
    %v2076 = vunpack.c.l.b16 %v281
    %v2077 = vunpack.c.h.b16 %v281
    %v2078 = vunpack.c.l.b16 %v282
    %v2079 = vunpack.c.h.b16 %v282
    %v2080 = vunpack.c.l.b16 %v283
    %v2081 = vunpack.c.h.b16 %v283
    %v2082 = vunpack.c.l.b16 %v284
    %v2083 = vunpack.c.h.b16 %v284
    %v2084 = vunpack.c.l.b16 %v285
    %v2085 = vunpack.c.h.b16 %v285
    %v2086 = vunpack.c.l.b16 %v286
    %v2087 = vunpack.c.h.b16 %v286
    %v2088 = vunpack.c.l.b16 %v287
    %v2089 = vunpack.c.h.b16 %v287
    %v2090 = vunpack.c.l.b16 %v288
    %v2091 = vunpack.c.h.b16 %v288
    %v2092 = vunpack.c.l.b16 %v289
    %v2093 = vunpack.c.h.b16 %v289
    %v2094 = vunpack.c.l.b16 %v290
    %v2095 = vunpack.c.h.b16 %v290
    %v2096 = vunpack.c.l.b16 %v291
    %v2097 = vunpack.c.h.b16 %v291
    %v2098 = vunpack.c.l.b16 %v292
    %v2099 = vunpack.c.h.b16 %v292
    %v2100 = vunpack.c.l.b16 %v293
    %v2101 = vunpack.c.h.b16 %v293
    %v2102 = vunpack.c.l.b16 %v294
    %v2103 = vunpack.c.h.b16 %v294
    %v2104 = vunpack.c.l.b16 %v295
    %v2105 = vunpack.c.h.b16 %v295
    %v2106 = vunpack.c.l.b16 %v296
    %v2107 = vunpack.c.h.b16 %v296
    %v2108 = vunpack.c.l.b16 %v297
    %v2109 = vunpack.c.h.b16 %v297
    %v2110 = vunpack.c.l.b16 %v298
    %v2111 = vunpack.c.h.b16 %v298
    %v2112 = vunpack.c.l.b16 %v299
    %v2113 = vunpack.c.h.b16 %v299
    %v2114 = vunpack.c.l.b16 %v300
    %v2115 = vunpack.c.h.b16 %v300
    %v2116 = vunpack.c.l.b16 %v301
    %v2117 = vunpack.c.h.b16 %v301
    %v2118 = vunpack.c.l.b16 %v302
    %v2119 = vunpack.c.h.b16 %v302
    %v2120 = vunpack.c.l.b16 %v303
    %v2121 = vunpack.c.h.b16 %v303
    %v2122 = vunpack.c.l.b16 %v304
    %v2123 = vunpack.c.h.b16 %v304
    %v2124 = vunpack.c.l.b16 %v305
    %v2125 = vunpack.c.h.b16 %v305
    %v2126 = vunpack.c.l.b16 %v306
    %v2127 = vunpack.c.h.b16 %v306
    %v2128 = vunpack.c.l.b16 %v307
    %v2129 = vunpack.c.h.b16 %v307
    %v2130 = vunpack.c.l.b16 %v308
    %v2131 = vunpack.c.h.b16 %v308
    %v2132 = vunpack.c.l.b16 %v309
    %v2133 = vunpack.c.h.b16 %v309
    %v2134 = vunpack.c.l.b16 %v310
    %v2135 = vunpack.c.h.b16 %v310
    %v2136 = vunpack.c.l.b16 %v311
    %v2137 = vunpack.c.h.b16 %v311
    %v2138 = vunpack.c.l.b16 %v312
    %v2139 = vunpack.c.h.b16 %v312
    %v2140 = vunpack.c.l.b16 %v313
    %v2141 = vunpack.c.h.b16 %v313
    %v2142 = vunpack.c.l.b16 %v314
    %v2143 = vunpack.c.h.b16 %v314
    %v2144 = vunpack.c.l.b16 %v315
    %v2145 = vunpack.c.h.b16 %v315
    %v2146 = vunpack.c.l.b16 %v316
    %v2147 = vunpack.c.h.b16 %v316
    %v2148 = vunpack.c.l.b16 %v317
    %v2149 = vunpack.c.h.b16 %v317
    %v2150 = vunpack.c.l.b16 %v318
    %v2151 = vunpack.c.h.b16 %v318
    %v2152 = vunpack.c.l.b16 %v319
    %v2153 = vunpack.c.h.b16 %v319
    %v2154 = vunpack.c.l.b16 %v320
    %v2155 = vunpack.c.h.b16 %v320
    %v2156 = vunpack.c.l.b16 %v321
    %v2157 = vunpack.c.h.b16 %v321
    %v2158 = vunpack.c.l.b16 %v322
    %v2159 = vunpack.c.h.b16 %v322
    %v2160 = vunpack.c.l.b16 %v323
    %v2161 = vunpack.c.h.b16 %v323
    %v2162 = vunpack.c.l.b16 %v324
    %v2163 = vunpack.c.h.b16 %v324
    %v2164 = vunpack.c.l.b16 %v325
    %v2165 = vunpack.c.h.b16 %v325
    %v2166 = vunpack.c.l.b16 %v326
    %v2167 = vunpack.c.h.b16 %v326
    %v2168 = vunpack.c.l.b16 %v327
    %v2169 = vunpack.c.h.b16 %v327
    %v2170 = vunpack.c.l.b16 %v328
    %v2171 = vunpack.c.h.b16 %v328
    %v2172 = vunpack.c.l.b16 %v329
    %v2173 = vunpack.c.h.b16 %v329
    %v2174 = vunpack.c.l.b16 %v330
    %v2175 = vunpack.c.h.b16 %v330
    %v2176 = vunpack.c.l.b16 %v331
    %v2177 = vunpack.c.h.b16 %v331
    %v2178 = vunpack.c.l.b16 %v332
    %v2179 = vunpack.c.h.b16 %v332
    %v2180 = vunpack.c.l.b16 %v333
    %v2181 = vunpack.c.h.b16 %v333
    %v2182 = vunpack.c.l.b16 %v334
    %v2183 = vunpack.c.h.b16 %v334
    %v2184 = vunpack.c.l.b16 %v335
    %v2185 = vunpack.c.h.b16 %v335
    %v2186 = vunpack.c.l.b16 %v336
    %v2187 = vunpack.c.h.b16 %v336
    %v2188 = vunpack.c.l.b16 %v337
    %v2189 = vunpack.c.h.b16 %v337
    %v2190 = vunpack.c.l.b16 %v338
    %v2191 = vunpack.c.h.b16 %v338
    %v2192 = vunpack.c.l.b16 %v339
    %v2193 = vunpack.c.h.b16 %v339
    %v2194 = vunpack.c.l.b16 %v340
    %v2195 = vunpack.c.h.b16 %v340
    %v2196 = vunpack.c.l.b16 %v341
    %v2197 = vunpack.c.h.b16 %v341
    %v2198 = vunpack.c.l.b16 %v342
    %v2199 = vunpack.c.h.b16 %v342
    %v2200 = vunpack.c.l.b16 %v343
    %v2201 = vunpack.c.h.b16 %v343
    %v2202 = vunpack.c.l.b16 %v344
    %v2203 = vunpack.c.h.b16 %v344
    %v2204 = vunpack.c.l.b16 %v345
    %v2205 = vunpack.c.h.b16 %v345
    %v2206 = vunpack.c.l.b16 %v346
    %v2207 = vunpack.c.h.b16 %v346
    %v2208 = vunpack.c.l.b16 %v347
    %v2209 = vunpack.c.h.b16 %v347
    %v2210 = vunpack.c.l.b16 %v348
    %v2211 = vunpack.c.h.b16 %v348
    %v2212 = vunpack.c.l.b16 %v349
    %v2213 = vunpack.c.h.b16 %v349
    %v2214 = vunpack.c.l.b16 %v350
    %v2215 = vunpack.c.h.b16 %v350
    %v2216 = vunpack.c.l.b16 %v351
    %v2217 = vunpack.c.h.b16 %v351
    %v2218 = vunpack.c.l.b16 %v352
    %v2219 = vunpack.c.h.b16 %v352
    %v2220 = vunpack.c.l.b16 %v353
    %v2221 = vunpack.c.h.b16 %v353
    %v2222 = vunpack.c.l.b16 %v354
    %v2223 = vunpack.c.h.b16 %v354
    %v2224 = vunpack.c.l.b16 %v355
    %v2225 = vunpack.c.h.b16 %v355
    %v2226 = vunpack.c.l.b16 %v356
    %v2227 = vunpack.c.h.b16 %v356
    %v2228 = vunpack.c.l.b16 %v357
    %v2229 = vunpack.c.h.b16 %v357
    %v2230 = vunpack.c.l.b16 %v358
    %v2231 = vunpack.c.h.b16 %v358
    %v2232 = vunpack.c.l.b16 %v359
    %v2233 = vunpack.c.h.b16 %v359
    %v2234 = vunpack.c.l.b16 %v360
    %v2235 = vunpack.c.h.b16 %v360
    %v2236 = vunpack.c.l.b16 %v361
    %v2237 = vunpack.c.h.b16 %v361
    %v2238 = vunpack.c.l.b16 %v362
    %v2239 = vunpack.c.h.b16 %v362
    %v2240 = vunpack.c.l.b16 %v363
    %v2241 = vunpack.c.h.b16 %v363
    %v2242 = vunpack.c.l.b16 %v364
    %v2243 = vunpack.c.h.b16 %v364
    %v2244 = vunpack.c.l.b16 %v365
    %v2245 = vunpack.c.h.b16 %v365
    %v2246 = vunpack.c.l.b16 %v366
    %v2247 = vunpack.c.h.b16 %v366
    %v2248 = vunpack.c.l.b16 %v367
    %v2249 = vunpack.c.h.b16 %v367
    %v2250 = vunpack.c.l.b16 %v368
    %v2251 = vunpack.c.h.b16 %v368
    %v2252 = vunpack.c.l.b16 %v369
    %v2253 = vunpack.c.h.b16 %v369
    %v2254 = vunpack.c.l.b16 %v370
    %v2255 = vunpack.c.h.b16 %v370
    %v2256 = vunpack.c.l.b16 %v371
    %v2257 = vunpack.c.h.b16 %v371
    %v2258 = vunpack.c.l.b16 %v372
    %v2259 = vunpack.c.h.b16 %v372
    %v2260 = vunpack.c.l.b16 %v373
    %v2261 = vunpack.c.h.b16 %v373
    %v2262 = vunpack.c.l.b16 %v374
    %v2263 = vunpack.c.h.b16 %v374
    %v2264 = vunpack.c.l.b16 %v375
    %v2265 = vunpack.c.h.b16 %v375
    %v2266 = vunpack.c.l.b16 %v376
    %v2267 = vunpack.c.h.b16 %v376
    %v2268 = vunpack.c.l.b16 %v377
    %v2269 = vunpack.c.h.b16 %v377
    %v2270 = vunpack.c.l.b16 %v378
    %v2271 = vunpack.c.h.b16 %v378
    %v2272 = vunpack.c.l.b16 %v379
    %v2273 = vunpack.c.h.b16 %v379
    %v2274 = vunpack.c.l.b16 %v380
    %v2275 = vunpack.c.h.b16 %v380
    %v2276 = vunpack.c.l.b16 %v381
    %v2277 = vunpack.c.h.b16 %v381
    %v2278 = vunpack.c.l.b16 %v382
    %v2279 = vunpack.c.h.b16 %v382
    %v2280 = vunpack.c.l.b16 %v383
    %v2281 = vunpack.c.h.b16 %v383
    %v2282 = vunpack.c.l.b16 %v384
    %v2283 = vunpack.c.h.b16 %v384
    %v2284 = vunpack.c.l.b16 %v385
    %v2285 = vunpack.c.h.b16 %v385
    %v2286 = vunpack.c.l.b16 %v386
    %v2287 = vunpack.c.h.b16 %v386
    %v2288 = vunpack.c.l.b16 %v387
    %v2289 = vunpack.c.h.b16 %v387
    %v2290 = vunpack.c.l.b16 %v388
    %v2291 = vunpack.c.h.b16 %v388
    %v2292 = vunpack.c.l.b16 %v389
    %v2293 = vunpack.c.h.b16 %v389
    %v2294 = vunpack.c.l.b16 %v390
    %v2295 = vunpack.c.h.b16 %v390
    %v2296 = vunpack.c.l.b16 %v391
    %v2297 = vunpack.c.h.b16 %v391
    %v2298 = vunpack.c.l.b16 %v392
    %v2299 = vunpack.c.h.b16 %v392
    %v2300 = vunpack.c.l.b16 %v393
    %v2301 = vunpack.c.h.b16 %v393
    %v2302 = vunpack.c.l.b16 %v394
    %v2303 = vunpack.c.h.b16 %v394
    %v2304 = vunpack.c.l.b16 %v395
    %v2305 = vunpack.c.h.b16 %v395
    %v2306 = vunpack.c.l.b16 %v396
    %v2307 = vunpack.c.h.b16 %v396
    %v2308 = vunpack.c.l.b16 %v397
    %v2309 = vunpack.c.h.b16 %v397
    %v2310 = vunpack.c.l.b16 %v398
    %v2311 = vunpack.c.h.b16 %v398
    %v2312 = vunpack.c.l.b16 %v399
    %v2313 = vunpack.c.h.b16 %v399
    %v2314 = vunpack.c.l.b16 %v400
    %v2315 = vunpack.c.h.b16 %v400
    %v2316 = vunpack.c.l.b16 %v401
    %v2317 = vunpack.c.h.b16 %v401
    %v2318 = vunpack.c.l.b16 %v402
    %v2319 = vunpack.c.h.b16 %v402
    %v2320 = vunpack.c.l.b16 %v403
    %v2321 = vunpack.c.h.b16 %v403
    %v2322 = vunpack.c.l.b16 %v404
    %v2323 = vunpack.c.h.b16 %v404
    %v2324 = vunpack.c.l.b16 %v405
    %v2325 = vunpack.c.h.b16 %v405
    %v2326 = vunpack.c.l.b16 %v406
    %v2327 = vunpack.c.h.b16 %v406
    %v2328 = vunpack.c.l.b16 %v407
    %v2329 = vunpack.c.h.b16 %v407
    %v2330 = vunpack.c.l.b16 %v408
    %v2331 = vunpack.c.h.b16 %v408
    %v2332 = vunpack.c.l.b16 %v409
    %v2333 = vunpack.c.h.b16 %v409
    %v2334 = vunpack.c.l.b16 %v410
    %v2335 = vunpack.c.h.b16 %v410
    %v2336 = vunpack.c.l.b16 %v411
    %v2337 = vunpack.c.h.b16 %v411
    %v2338 = vunpack.c.l.b16 %v412
    %v2339 = vunpack.c.h.b16 %v412
    %v2340 = vunpack.c.l.b16 %v413
    %v2341 = vunpack.c.h.b16 %v413
    %v2342 = vunpack.c.l.b16 %v414
    %v2343 = vunpack.c.h.b16 %v414
    %v2344 = vunpack.c.l.b16 %v415
    %v2345 = vunpack.c.h.b16 %v415
    %v2346 = vunpack.c.l.b16 %v416
    %v2347 = vunpack.c.h.b16 %v416
    %v2348 = vunpack.c.l.b16 %v417
    %v2349 = vunpack.c.h.b16 %v417
    %v2350 = vunpack.c.l.b16 %v418
    %v2351 = vunpack.c.h.b16 %v418
    %v2352 = vunpack.c.l.b16 %v419
    %v2353 = vunpack.c.h.b16 %v419
    %v2354 = vunpack.c.l.b16 %v420
    %v2355 = vunpack.c.h.b16 %v420
    %v2356 = vunpack.c.l.b16 %v421
    %v2357 = vunpack.c.h.b16 %v421
    %v2358 = vunpack.c.l.b16 %v422
    %v2359 = vunpack.c.h.b16 %v422
    %v2360 = vunpack.c.l.b16 %v423
    %v2361 = vunpack.c.h.b16 %v423
    %v2362 = vunpack.c.l.b16 %v424
    %v2363 = vunpack.c.h.b16 %v424
    %v2364 = vunpack.c.l.b16 %v425
    %v2365 = vunpack.c.h.b16 %v425
    %v2366 = vunpack.c.l.b16 %v426
    %v2367 = vunpack.c.h.b16 %v426
    %v2368 = vunpack.c.l.b16 %v427
    %v2369 = vunpack.c.h.b16 %v427
    %v2370 = vunpack.c.l.b16 %v428
    %v2371 = vunpack.c.h.b16 %v428
    %v2372 = vunpack.c.l.b16 %v429
    %v2373 = vunpack.c.h.b16 %v429
    %v2374 = vunpack.c.l.b16 %v430
    %v2375 = vunpack.c.h.b16 %v430
    %v2376 = vunpack.c.l.b16 %v431
    %v2377 = vunpack.c.h.b16 %v431
    %v2378 = vunpack.c.l.b16 %v432
    %v2379 = vunpack.c.h.b16 %v432
    %v2380 = vunpack.c.l.b16 %v433
    %v2381 = vunpack.c.h.b16 %v433
    %v2382 = vunpack.c.l.b16 %v434
    %v2383 = vunpack.c.h.b16 %v434
    %v2384 = vunpack.c.l.b16 %v435
    %v2385 = vunpack.c.h.b16 %v435
    %v2386 = vunpack.c.l.b16 %v436
    %v2387 = vunpack.c.h.b16 %v436
    %v2388 = vunpack.c.l.b16 %v437
    %v2389 = vunpack.c.h.b16 %v437
    %v2390 = vunpack.c.l.b16 %v438
    %v2391 = vunpack.c.h.b16 %v438
    %v2392 = vunpack.c.l.b16 %v439
    %v2393 = vunpack.c.h.b16 %v439
    %v2394 = vunpack.c.l.b16 %v440
    %v2395 = vunpack.c.h.b16 %v440
    %v2396 = vunpack.c.l.b16 %v441
    %v2397 = vunpack.c.h.b16 %v441
    %v2398 = vunpack.c.l.b16 %v442
    %v2399 = vunpack.c.h.b16 %v442
    %v2400 = vunpack.c.l.b16 %v443
    %v2401 = vunpack.c.h.b16 %v443
    %v2402 = vunpack.c.l.b16 %v444
    %v2403 = vunpack.c.h.b16 %v444
    %v2404 = vunpack.c.l.b16 %v445
    %v2405 = vunpack.c.h.b16 %v445
    %v2406 = vunpack.c.l.b16 %v446
    %v2407 = vunpack.c.h.b16 %v446
    %v2408 = vunpack.c.l.b16 %v447
    %v2409 = vunpack.c.h.b16 %v447
    %v2410 = vunpack.c.l.b16 %v448
    %v2411 = vunpack.c.h.b16 %v448
    %v2412 = vunpack.c.l.b16 %v449
    %v2413 = vunpack.c.h.b16 %v449
    %v2414 = vunpack.c.l.b16 %v450
    %v2415 = vunpack.c.h.b16 %v450
    %v2416 = vunpack.c.l.b16 %v451
    %v2417 = vunpack.c.h.b16 %v451
    %v2418 = vunpack.c.l.b16 %v452
    %v2419 = vunpack.c.h.b16 %v452
    %v2420 = vunpack.c.l.b16 %v453
    %v2421 = vunpack.c.h.b16 %v453
    %v2422 = vunpack.c.l.b16 %v454
    %v2423 = vunpack.c.h.b16 %v454
    %v2424 = vunpack.c.l.b16 %v455
    %v2425 = vunpack.c.h.b16 %v455
    %v2426 = vunpack.c.l.b16 %v456
    %v2427 = vunpack.c.h.b16 %v456
    %v2428 = vunpack.c.l.b16 %v457
    %v2429 = vunpack.c.h.b16 %v457
    %v2430 = vunpack.c.l.b16 %v458
    %v2431 = vunpack.c.h.b16 %v458
    %v2432 = vunpack.c.l.b16 %v459
    %v2433 = vunpack.c.h.b16 %v459
    %v2434 = vunpack.c.l.b16 %v460
    %v2435 = vunpack.c.h.b16 %v460
    %v2436 = vunpack.c.l.b16 %v461
    %v2437 = vunpack.c.h.b16 %v461
    %v2438 = vunpack.c.l.b16 %v462
    %v2439 = vunpack.c.h.b16 %v462
    %v2440 = vunpack.c.l.b16 %v463
    %v2441 = vunpack.c.h.b16 %v463
    %v2442 = vunpack.c.l.b16 %v464
    %v2443 = vunpack.c.h.b16 %v464
    %v2444 = vunpack.c.l.b16 %v465
    %v2445 = vunpack.c.h.b16 %v465
    %v2446 = vunpack.c.l.b16 %v466
    %v2447 = vunpack.c.h.b16 %v466
    %v2448 = vunpack.c.l.b16 %v467
    %v2449 = vunpack.c.h.b16 %v467
    %v2450 = vunpack.c.l.b16 %v468
    %v2451 = vunpack.c.h.b16 %v468
    %v2452 = vunpack.c.l.b16 %v469
    %v2453 = vunpack.c.h.b16 %v469
    %v2454 = vunpack.c.l.b16 %v470
    %v2455 = vunpack.c.h.b16 %v470
    %v2456 = vunpack.c.l.b16 %v471
    %v2457 = vunpack.c.h.b16 %v471
    %v2458 = vunpack.c.l.b16 %v472
    %v2459 = vunpack.c.h.b16 %v472
    %v2460 = vunpack.c.l.b16 %v473
    %v2461 = vunpack.c.h.b16 %v473
    %v2462 = vunpack.c.l.b16 %v474
    %v2463 = vunpack.c.h.b16 %v474
    %v2464 = vunpack.c.l.b16 %v475
    %v2465 = vunpack.c.h.b16 %v475
    %v2466 = vunpack.c.l.b16 %v476
    %v2467 = vunpack.c.h.b16 %v476
    %v2468 = vunpack.c.l.b16 %v477
    %v2469 = vunpack.c.h.b16 %v477
    %v2470 = vunpack.c.l.b16 %v478
    %v2471 = vunpack.c.h.b16 %v478
    %v2472 = vunpack.c.l.b16 %v479
    %v2473 = vunpack.c.h.b16 %v479
    %v2474 = vunpack.c.l.b16 %v480
    %v2475 = vunpack.c.h.b16 %v480
    %v2476 = vunpack.c.l.b16 %v481
    %v2477 = vunpack.c.h.b16 %v481
    %v2478 = vunpack.c.l.b16 %v482
    %v2479 = vunpack.c.h.b16 %v482
    %v2480 = vunpack.c.l.b16 %v483
    %v2481 = vunpack.c.h.b16 %v483
    %v2482 = vunpack.c.l.b16 %v484
    %v2483 = vunpack.c.h.b16 %v484
    %v2484 = vunpack.c.l.b16 %v485
    %v2485 = vunpack.c.h.b16 %v485
    %v2486 = vunpack.c.l.b16 %v486
    %v2487 = vunpack.c.h.b16 %v486
    %v2488 = vunpack.c.l.b16 %v487
    %v2489 = vunpack.c.h.b16 %v487
    %v2490 = vunpack.c.l.b16 %v488
    %v2491 = vunpack.c.h.b16 %v488
    %v2492 = vunpack.c.l.b16 %v489
    %v2493 = vunpack.c.h.b16 %v489
    %v2494 = vunpack.c.l.b16 %v490
    %v2495 = vunpack.c.h.b16 %v490
    %v2496 = vunpack.c.l.b16 %v491
    %v2497 = vunpack.c.h.b16 %v491
    %v2498 = vunpack.c.l.b16 %v492
    %v2499 = vunpack.c.h.b16 %v492
    %v2500 = vunpack.c.l.b16 %v493
    %v2501 = vunpack.c.h.b16 %v493
    %v2502 = vunpack.c.l.b16 %v494
    %v2503 = vunpack.c.h.b16 %v494
    %v2504 = vunpack.c.l.b16 %v495
    %v2505 = vunpack.c.h.b16 %v495
    %v2506 = vunpack.c.l.b16 %v496
    %v2507 = vunpack.c.h.b16 %v496
    %v2508 = vunpack.c.l.b16 %v497
    %v2509 = vunpack.c.h.b16 %v497
    %v2510 = vunpack.c.l.b16 %v498
    %v2511 = vunpack.c.h.b16 %v498
    %v2512 = vunpack.c.l.b16 %v499
    %v2513 = vunpack.c.h.b16 %v499
    %v2514 = vunpack.c.l.b16 %v500
    %v2515 = vunpack.c.h.b16 %v500
    %v2516 = vunpack.c.l.b16 %v501
    %v2517 = vunpack.c.h.b16 %v501
    %v2518 = vunpack.c.l.b16 %v502
    %v2519 = vunpack.c.h.b16 %v502
    %v2520 = vunpack.c.l.b16 %v503
    %v2521 = vunpack.c.h.b16 %v503
    %v2522 = vunpack.c.l.b16 %v504
    %v2523 = vunpack.c.h.b16 %v504
    %v2524 = vunpack.c.l.b16 %v505
    %v2525 = vunpack.c.h.b16 %v505
    %v2526 = vunpack.c.l.b16 %v506
    %v2527 = vunpack.c.h.b16 %v506
    %v2528 = vunpack.c.l.b16 %v507
    %v2529 = vunpack.c.h.b16 %v507
    %v2530 = vunpack.c.l.b16 %v508
    %v2531 = vunpack.c.h.b16 %v508
    %v2532 = vunpack.c.l.b16 %v509
    %v2533 = vunpack.c.h.b16 %v509
    %v2534 = vunpack.c.l.b16 %v510
    %v2535 = vunpack.c.h.b16 %v510
    %v2536 = vunpack.c.l.b16 %v511
    %v2537 = vunpack.c.h.b16 %v511
    %v2538 = vunpack.c.l.b16 %v512
    %v2539 = vunpack.c.h.b16 %v512
    %v2540 = vunpack.c.l.b16 %v513
    %v2541 = vunpack.c.h.b16 %v513
    %v2542 = vunpack.c.l.b16 %v514
    %v2543 = vunpack.c.h.b16 %v514
    %v2544 = vunpack.c.l.b16 %v515
    %v2545 = vunpack.c.h.b16 %v515
    %v2546 = vunpack.c.l.b16 %v516
    %v2547 = vunpack.c.h.b16 %v516
    %v2548 = vunpack.c.l.b16 %v517
    %v2549 = vunpack.c.h.b16 %v517
    %v2550 = vunpack.c.l.b16 %v518
    %v2551 = vunpack.c.h.b16 %v518
    %v2552 = vunpack.c.l.b16 %v519
    %v2553 = vunpack.c.h.b16 %v519
    %v2554 = vunpack.c.l.b16 %v520
    %v2555 = vunpack.c.h.b16 %v520
    %v2556 = vunpack.c.l.b16 %v521
    %v2557 = vunpack.c.h.b16 %v521
    %v2558 = vunpack.c.l.b16 %v522
    %v2559 = vunpack.c.h.b16 %v522
    %v2560 = vunpack.c.l.b16 %v523
    %v2561 = vunpack.c.h.b16 %v523
    %v2562 = vunpack.c.l.b16 %v524
    %v2563 = vunpack.c.h.b16 %v524
    %v2564 = vunpack.c.l.b16 %v525
    %v2565 = vunpack.c.h.b16 %v525
    %v2566 = vunpack.c.l.b16 %v526
    %v2567 = vunpack.c.h.b16 %v526
    %v2568 = vunpack.c.l.b16 %v527
    %v2569 = vunpack.c.h.b16 %v527
    %v2570 = vunpack.c.l.b16 %v528
    %v2571 = vunpack.c.h.b16 %v528
    %v2572 = vunpack.c.l.b16 %v529
    %v2573 = vunpack.c.h.b16 %v529
    %v2574 = vunpack.c.l.b16 %v530
    %v2575 = vunpack.c.h.b16 %v530
    %v2576 = vunpack.c.l.b16 %v531
    %v2577 = vunpack.c.h.b16 %v531
    %v2578 = vunpack.c.l.b16 %v532
    %v2579 = vunpack.c.h.b16 %v532
    %v2580 = vunpack.c.l.b16 %v533
    %v2581 = vunpack.c.h.b16 %v533
    %v2582 = vunpack.c.l.b16 %v534
    %v2583 = vunpack.c.h.b16 %v534
    %v2584 = vunpack.c.l.b16 %v535
    %v2585 = vunpack.c.h.b16 %v535
    %v2586 = vunpack.c.l.b16 %v536
    %v2587 = vunpack.c.h.b16 %v536
    %v2588 = vunpack.c.l.b16 %v537
    %v2589 = vunpack.c.h.b16 %v537
    %v2590 = vunpack.c.l.b16 %v538
    %v2591 = vunpack.c.h.b16 %v538
    %v2592 = vunpack.c.l.b16 %v539
    %v2593 = vunpack.c.h.b16 %v539
    %v2594 = vunpack.c.l.b16 %v540
    %v2595 = vunpack.c.h.b16 %v540
    %v2596 = vunpack.c.l.b16 %v541
    %v2597 = vunpack.c.h.b16 %v541
    %v2598 = vunpack.c.l.b16 %v542
    %v2599 = vunpack.c.h.b16 %v542
    %v2600 = vunpack.c.l.b16 %v543
    %v2601 = vunpack.c.h.b16 %v543
    %v2602 = vunpack.c.l.b16 %v544
    %v2603 = vunpack.c.h.b16 %v544
    %v2604 = vunpack.c.l.b16 %v545
    %v2605 = vunpack.c.h.b16 %v545
    %v2606 = vunpack.c.l.b16 %v546
    %v2607 = vunpack.c.h.b16 %v546
    %v2608 = vunpack.c.l.b16 %v547
    %v2609 = vunpack.c.h.b16 %v547
    %v2610 = vunpack.c.l.b16 %v548
    %v2611 = vunpack.c.h.b16 %v548
    %v2612 = vunpack.c.l.b16 %v549
    %v2613 = vunpack.c.h.b16 %v549
    %v2614 = vunpack.c.l.b16 %v550
    %v2615 = vunpack.c.h.b16 %v550
    %v2616 = vunpack.c.l.b16 %v551
    %v2617 = vunpack.c.h.b16 %v551
    %v2618 = vunpack.c.l.b16 %v552
    %v2619 = vunpack.c.h.b16 %v552
    %v2620 = vunpack.c.l.b16 %v553
    %v2621 = vunpack.c.h.b16 %v553
    %v2622 = vunpack.c.l.b16 %v554
    %v2623 = vunpack.c.h.b16 %v554
    %v2624 = vunpack.c.l.b16 %v555
    %v2625 = vunpack.c.h.b16 %v555
    %v2626 = vunpack.c.l.b16 %v556
    %v2627 = vunpack.c.h.b16 %v556
    %v2628 = vunpack.c.l.b16 %v557
    %v2629 = vunpack.c.h.b16 %v557
    %v2630 = vunpack.c.l.b16 %v558
    %v2631 = vunpack.c.h.b16 %v558
    %v2632 = vunpack.c.l.b16 %v559
    %v2633 = vunpack.c.h.b16 %v559
    %v2634 = vunpack.c.l.b16 %v560
    %v2635 = vunpack.c.h.b16 %v560
    %v2636 = vunpack.c.l.b16 %v561
    %v2637 = vunpack.c.h.b16 %v561
    %v2638 = vunpack.c.l.b16 %v562
    %v2639 = vunpack.c.h.b16 %v562
    %v2640 = vunpack.c.l.b16 %v563
    %v2641 = vunpack.c.h.b16 %v563
    %v2642 = vunpack.c.l.b16 %v564
    %v2643 = vunpack.c.h.b16 %v564
    %v2644 = vunpack.c.l.b16 %v565
    %v2645 = vunpack.c.h.b16 %v565
    %v2646 = vunpack.c.l.b16 %v566
    %v2647 = vunpack.c.h.b16 %v566
    %v2648 = vunpack.c.l.b16 %v567
    %v2649 = vunpack.c.h.b16 %v567
    %v2650 = vunpack.c.l.b16 %v568
    %v2651 = vunpack.c.h.b16 %v568
    %v2652 = vunpack.c.l.b16 %v569
    %v2653 = vunpack.c.h.b16 %v569
    %v2654 = vunpack.c.l.b16 %v570
    %v2655 = vunpack.c.h.b16 %v570
    %v2656 = vunpack.c.l.b16 %v571
    %v2657 = vunpack.c.h.b16 %v571
    %v2658 = vunpack.c.l.b16 %v572
    %v2659 = vunpack.c.h.b16 %v572
    %v2660 = vunpack.c.l.b16 %v573
    %v2661 = vunpack.c.h.b16 %v573
    %v2662 = vunpack.c.l.b16 %v574
    %v2663 = vunpack.c.h.b16 %v574
    %v2664 = vunpack.c.l.b16 %v575
    %v2665 = vunpack.c.h.b16 %v575
    %v2666 = vunpack.c.l.b16 %v576
    %v2667 = vunpack.c.h.b16 %v576
    %v2668 = vunpack.c.l.b16 %v577
    %v2669 = vunpack.c.h.b16 %v577
    %v2670 = vunpack.c.l.b16 %v578
    %v2671 = vunpack.c.h.b16 %v578
    %v2672 = vunpack.c.l.b16 %v579
    %v2673 = vunpack.c.h.b16 %v579
    %v2674 = vunpack.c.l.b16 %v580
    %v2675 = vunpack.c.h.b16 %v580
    %v2676 = vunpack.c.l.b16 %v581
    %v2677 = vunpack.c.h.b16 %v581
    %v2678 = vunpack.c.l.b16 %v582
    %v2679 = vunpack.c.h.b16 %v582
    %v2680 = vunpack.c.l.b16 %v583
    %v2681 = vunpack.c.h.b16 %v583
    %v2682 = vunpack.c.l.b16 %v584
    %v2683 = vunpack.c.h.b16 %v584
    %v2684 = vunpack.c.l.b16 %v585
    %v2685 = vunpack.c.h.b16 %v585
    %v2686 = vunpack.c.l.b16 %v586
    %v2687 = vunpack.c.h.b16 %v586
    %v2688 = vunpack.c.l.b16 %v587
    %v2689 = vunpack.c.h.b16 %v587
    %v2690 = vunpack.c.l.b16 %v588
    %v2691 = vunpack.c.h.b16 %v588
    %v2692 = vunpack.c.l.b16 %v589
    %v2693 = vunpack.c.h.b16 %v589
    %v2694 = vunpack.c.l.b16 %v590
    %v2695 = vunpack.c.h.b16 %v590
    %v2696 = vunpack.c.l.b16 %v591
    %v2697 = vunpack.c.h.b16 %v591
    %v2698 = vunpack.c.l.b16 %v592
    %v2699 = vunpack.c.h.b16 %v592
    %v2700 = vunpack.c.l.b16 %v593
    %v2701 = vunpack.c.h.b16 %v593
    %v2702 = vunpack.c.l.b16 %v594
    %v2703 = vunpack.c.h.b16 %v594
    %v2704 = vunpack.c.l.b16 %v595
    %v2705 = vunpack.c.h.b16 %v595
    %v2706 = vunpack.c.l.b16 %v596
    %v2707 = vunpack.c.h.b16 %v596
    %v2708 = vunpack.c.l.b16 %v597
    %v2709 = vunpack.c.h.b16 %v597
    %v2710 = vunpack.c.l.b16 %v598
    %v2711 = vunpack.c.h.b16 %v598
    %v2712 = vunpack.c.l.b16 %v599
    %v2713 = vunpack.c.h.b16 %v599
    %v2714 = vunpack.c.l.b16 %v600
    %v2715 = vunpack.c.h.b16 %v600
    %v2716 = vunpack.c.l.b16 %v601
    %v2717 = vunpack.c.h.b16 %v601
    %v2718 = vunpack.c.l.b16 %v602
    %v2719 = vunpack.c.h.b16 %v602
    %v2720 = vunpack.c.l.b16 %v603
    %v2721 = vunpack.c.h.b16 %v603
    %v2722 = vunpack.c.l.b16 %v604
    %v2723 = vunpack.c.h.b16 %v604
    %v2724 = vunpack.c.l.b16 %v605
    %v2725 = vunpack.c.h.b16 %v605
    %v2726 = vunpack.c.l.b16 %v606
    %v2727 = vunpack.c.h.b16 %v606
    %v2728 = vunpack.c.l.b16 %v607
    %v2729 = vunpack.c.h.b16 %v607
    %v2730 = vunpack.c.l.b16 %v608
    %v2731 = vunpack.c.h.b16 %v608
    %v2732 = vunpack.c.l.b16 %v609
    %v2733 = vunpack.c.h.b16 %v609
    %v2734 = vunpack.c.l.b16 %v610
    %v2735 = vunpack.c.h.b16 %v610
    %v2736 = vunpack.c.l.b16 %v611
    %v2737 = vunpack.c.h.b16 %v611
    %v2738 = vunpack.c.l.b16 %v612
    %v2739 = vunpack.c.h.b16 %v612
    %v2740 = vunpack.c.l.b16 %v613
    %v2741 = vunpack.c.h.b16 %v613
    %v2742 = vunpack.c.l.b16 %v614
    %v2743 = vunpack.c.h.b16 %v614
    %v2744 = vunpack.c.l.b16 %v615
    %v2745 = vunpack.c.h.b16 %v615
    %v2746 = vunpack.c.l.b16 %v616
    %v2747 = vunpack.c.h.b16 %v616
    %v2748 = vunpack.c.l.b16 %v617
    %v2749 = vunpack.c.h.b16 %v617
    %v2750 = vunpack.c.l.b16 %v618
    %v2751 = vunpack.c.h.b16 %v618
    %v2752 = vunpack.c.l.b16 %v619
    %v2753 = vunpack.c.h.b16 %v619
    %v2754 = vunpack.c.l.b16 %v620
    %v2755 = vunpack.c.h.b16 %v620
    %v2756 = vunpack.c.l.b16 %v621
    %v2757 = vunpack.c.h.b16 %v621
    %v2758 = vunpack.c.l.b16 %v622
    %v2759 = vunpack.c.h.b16 %v622
    %v2760 = vunpack.c.l.b16 %v623
    %v2761 = vunpack.c.h.b16 %v623
    %v2762 = vunpack.c.l.b16 %v624
    %v2763 = vunpack.c.h.b16 %v624
    %v2764 = vunpack.c.l.b16 %v625
    %v2765 = vunpack.c.h.b16 %v625
    %v2766 = vunpack.c.l.b16 %v626
    %v2767 = vunpack.c.h.b16 %v626
    %v2768 = vunpack.c.l.b16 %v627
    %v2769 = vunpack.c.h.b16 %v627
    %v2770 = vunpack.c.l.b16 %v628
    %v2771 = vunpack.c.h.b16 %v628
    %v2772 = vunpack.c.l.b16 %v629
    %v2773 = vunpack.c.h.b16 %v629
    %v2774 = vunpack.c.l.b16 %v630
    %v2775 = vunpack.c.h.b16 %v630
    %v2776 = vunpack.c.l.b16 %v631
    %v2777 = vunpack.c.h.b16 %v631
    %v2778 = vunpack.c.l.b16 %v632
    %v2779 = vunpack.c.h.b16 %v632
    %v2780 = vunpack.c.l.b16 %v633
    %v2781 = vunpack.c.h.b16 %v633
    %v2782 = vunpack.c.l.b16 %v634
    %v2783 = vunpack.c.h.b16 %v634
    %v2784 = vunpack.c.l.b16 %v635
    %v2785 = vunpack.c.h.b16 %v635
    %v2786 = vunpack.c.l.b16 %v636
    %v2787 = vunpack.c.h.b16 %v636
    %v2788 = vunpack.c.l.b16 %v637
    %v2789 = vunpack.c.h.b16 %v637
    %v2790 = vunpack.c.l.b16 %v638
    %v2791 = vunpack.c.h.b16 %v638
    %v2792 = vunpack.c.l.b16 %v639
    %v2793 = vunpack.c.h.b16 %v639
    %v2794 = vunpack.c.l.b16 %v640
    %v2795 = vunpack.c.h.b16 %v640
    %v2796 = vunpack.c.l.b16 %v641
    %v2797 = vunpack.c.h.b16 %v641
    %v2798 = vunpack.c.l.b16 %v642
    %v2799 = vunpack.c.h.b16 %v642
    %v2800 = vunpack.c.l.b16 %v643
    %v2801 = vunpack.c.h.b16 %v643
    %v2802 = vunpack.c.l.b16 %v644
    %v2803 = vunpack.c.h.b16 %v644
    %v2804 = vunpack.c.l.b16 %v645
    %v2805 = vunpack.c.h.b16 %v645
    %v2806 = vunpack.c.l.b16 %v646
    %v2807 = vunpack.c.h.b16 %v646
    %v2808 = vunpack.c.l.b16 %v647
    %v2809 = vunpack.c.h.b16 %v647
    %v2810 = vunpack.c.l.b16 %v648
    %v2811 = vunpack.c.h.b16 %v648
    %v2812 = vunpack.c.l.b16 %v649
    %v2813 = vunpack.c.h.b16 %v649
    %v2814 = vunpack.c.l.b16 %v650
    %v2815 = vunpack.c.h.b16 %v650
    %v2816 = vunpack.c.l.b16 %v651
    %v2817 = vunpack.c.h.b16 %v651
    %v2818 = vunpack.c.l.b16 %v652
    %v2819 = vunpack.c.h.b16 %v652
    %v2820 = vunpack.c.l.b16 %v653
    %v2821 = vunpack.c.h.b16 %v653
    %v2822 = vunpack.c.l.b16 %v654
    %v2823 = vunpack.c.h.b16 %v654
    %v2824 = vunpack.c.l.b16 %v655
    %v2825 = vunpack.c.h.b16 %v655
    %v2826 = vunpack.c.l.b16 %v656
    %v2827 = vunpack.c.h.b16 %v656
    %v2828 = vunpack.c.l.b16 %v657
    %v2829 = vunpack.c.h.b16 %v657
    %v2830 = vunpack.c.l.b16 %v658
    %v2831 = vunpack.c.h.b16 %v658
    %v2832 = vunpack.c.l.b16 %v659
    %v2833 = vunpack.c.h.b16 %v659
    %v2834 = vunpack.c.l.b16 %v660
    %v2835 = vunpack.c.h.b16 %v660
    %v2836 = vunpack.c.l.b16 %v661
    %v2837 = vunpack.c.h.b16 %v661
    %v2838 = vunpack.c.l.b16 %v662
    %v2839 = vunpack.c.h.b16 %v662
    %v2840 = vunpack.c.l.b16 %v663
    %v2841 = vunpack.c.h.b16 %v663
    %v2842 = vunpack.c.l.b16 %v664
    %v2843 = vunpack.c.h.b16 %v664
    %v2844 = vunpack.c.l.b16 %v665
    %v2845 = vunpack.c.h.b16 %v665
    %v2846 = vunpack.c.l.b16 %v666
    %v2847 = vunpack.c.h.b16 %v666
    %v2848 = vunpack.c.l.b16 %v667
    %v2849 = vunpack.c.h.b16 %v667
    %v2850 = vunpack.c.l.b16 %v668
    %v2851 = vunpack.c.h.b16 %v668
    %v2852 = vunpack.c.l.b16 %v669
    %v2853 = vunpack.c.h.b16 %v669
    %v2854 = vunpack.c.l.b16 %v670
    %v2855 = vunpack.c.h.b16 %v670
    %v2856 = vunpack.c.l.b16 %v671
    %v2857 = vunpack.c.h.b16 %v671
    %v2858 = vunpack.c.l.b16 %v672
    %v2859 = vunpack.c.h.b16 %v672
    %v2860 = vunpack.c.l.b16 %v673
    %v2861 = vunpack.c.h.b16 %v673
    %v2862 = vunpack.c.l.b16 %v674
    %v2863 = vunpack.c.h.b16 %v674
    %v2864 = vunpack.c.l.b16 %v675
    %v2865 = vunpack.c.h.b16 %v675
    %v2866 = vunpack.c.l.b16 %v676
    %v2867 = vunpack.c.h.b16 %v676
    %v2868 = vunpack.c.l.b16 %v677
    %v2869 = vunpack.c.h.b16 %v677
    %v2870 = vunpack.c.l.b16 %v678
    %v2871 = vunpack.c.h.b16 %v678
    %v2872 = vunpack.c.l.b16 %v679
    %v2873 = vunpack.c.h.b16 %v679
    %v2874 = vunpack.c.l.b16 %v680
    %v2875 = vunpack.c.h.b16 %v680
    %v2876 = vunpack.c.l.b16 %v681
    %v2877 = vunpack.c.h.b16 %v681
    %v2878 = vunpack.c.l.b16 %v682
    %v2879 = vunpack.c.h.b16 %v682
    %v2880 = vunpack.c.l.b16 %v683
    %v2881 = vunpack.c.h.b16 %v683
    %v2882 = vunpack.c.l.b16 %v684
    %v2883 = vunpack.c.h.b16 %v684
    %v2884 = vunpack.c.l.b16 %v685
    %v2885 = vunpack.c.h.b16 %v685
    %v2886 = vunpack.c.l.b16 %v686
    %v2887 = vunpack.c.h.b16 %v686
    %v2888 = vunpack.c.l.b16 %v687
    %v2889 = vunpack.c.h.b16 %v687
    %v2890 = vunpack.c.l.b16 %v688
    %v2891 = vunpack.c.h.b16 %v688
    %v2892 = vunpack.c.l.b16 %v689
    %v2893 = vunpack.c.h.b16 %v689
    %v2894 = vunpack.c.l.b16 %v690
    %v2895 = vunpack.c.h.b16 %v690
    %v2896 = vunpack.c.l.b16 %v691
    %v2897 = vunpack.c.h.b16 %v691
    %v2898 = vunpack.c.l.b16 %v692
    %v2899 = vunpack.c.h.b16 %v692
    %v2900 = vunpack.c.l.b16 %v693
    %v2901 = vunpack.c.h.b16 %v693
    %v2902 = vunpack.c.l.b16 %v694
    %v2903 = vunpack.c.h.b16 %v694
    %v2904 = vunpack.c.l.b16 %v695
    %v2905 = vunpack.c.h.b16 %v695
    %v2906 = vunpack.c.l.b16 %v696
    %v2907 = vunpack.c.h.b16 %v696
    %v2908 = vunpack.c.l.b16 %v697
    %v2909 = vunpack.c.h.b16 %v697
    %v2910 = vunpack.c.l.b16 %v698
    %v2911 = vunpack.c.h.b16 %v698
    %v2912 = vunpack.c.l.b16 %v699
    %v2913 = vunpack.c.h.b16 %v699
    %v2914 = vunpack.c.l.b16 %v700
    %v2915 = vunpack.c.h.b16 %v700
    %v2916 = vunpack.c.l.b16 %v701
    %v2917 = vunpack.c.h.b16 %v701
    %v2918 = vunpack.c.l.b16 %v702
    %v2919 = vunpack.c.h.b16 %v702
    %v2920 = vunpack.c.l.b16 %v703
    %v2921 = vunpack.c.h.b16 %v703
    %v2922 = vunpack.c.l.b16 %v704
    %v2923 = vunpack.c.h.b16 %v704
    %v2924 = vunpack.c.l.b16 %v705
    %v2925 = vunpack.c.h.b16 %v705
    %v2926 = vunpack.c.l.b16 %v706
    %v2927 = vunpack.c.h.b16 %v706
    %v2928 = vunpack.c.l.b16 %v707
    %v2929 = vunpack.c.h.b16 %v707
    %v2930 = vunpack.c.l.b16 %v708
    %v2931 = vunpack.c.h.b16 %v708
    %v2932 = vunpack.c.l.b16 %v709
    %v2933 = vunpack.c.h.b16 %v709
    %v2934 = vunpack.c.l.b16 %v710
    %v2935 = vunpack.c.h.b16 %v710
    %v2936 = vunpack.c.l.b16 %v711
    %v2937 = vunpack.c.h.b16 %v711
    %v2938 = vunpack.c.l.b16 %v712
    %v2939 = vunpack.c.h.b16 %v712
    %v2940 = vunpack.c.l.b16 %v713
    %v2941 = vunpack.c.h.b16 %v713
    %v2942 = vunpack.c.l.b16 %v714
    %v2943 = vunpack.c.h.b16 %v714
    %v2944 = vunpack.c.l.b16 %v715
    %v2945 = vunpack.c.h.b16 %v715
    %v2946 = vunpack.c.l.b16 %v716
    %v2947 = vunpack.c.h.b16 %v716
    %v2948 = vunpack.c.l.b16 %v717
    %v2949 = vunpack.c.h.b16 %v717
    %v2950 = vunpack.c.l.b16 %v718
    %v2951 = vunpack.c.h.b16 %v718
    %v2952 = vunpack.c.l.b16 %v719
    %v2953 = vunpack.c.h.b16 %v719
    %v2954 = vunpack.c.l.b16 %v720
    %v2955 = vunpack.c.h.b16 %v720
    %v2956 = vunpack.c.l.b16 %v721
    %v2957 = vunpack.c.h.b16 %v721
    %v2958 = vunpack.c.l.b16 %v722
    %v2959 = vunpack.c.h.b16 %v722
    %v2960 = vunpack.c.l.b16 %v723
    %v2961 = vunpack.c.h.b16 %v723
    %v2962 = vunpack.c.l.b16 %v724
    %v2963 = vunpack.c.h.b16 %v724
    %v2964 = vunpack.c.l.b16 %v725
    %v2965 = vunpack.c.h.b16 %v725
    %v2966 = vunpack.c.l.b16 %v726
    %v2967 = vunpack.c.h.b16 %v726
    %v2968 = vunpack.c.l.b16 %v727
    %v2969 = vunpack.c.h.b16 %v727
    %v2970 = vunpack.c.l.b16 %v728
    %v2971 = vunpack.c.h.b16 %v728
    %v2972 = vunpack.c.l.b16 %v729
    %v2973 = vunpack.c.h.b16 %v729
    %v2974 = vunpack.c.l.b16 %v730
    %v2975 = vunpack.c.h.b16 %v730
    %v2976 = vunpack.c.l.b16 %v731
    %v2977 = vunpack.c.h.b16 %v731
    %v2978 = vunpack.c.l.b16 %v732
    %v2979 = vunpack.c.h.b16 %v732
    %v2980 = vunpack.c.l.b16 %v733
    %v2981 = vunpack.c.h.b16 %v733
    %v2982 = vunpack.c.l.b16 %v734
    %v2983 = vunpack.c.h.b16 %v734
    %v2984 = vunpack.c.l.b16 %v735
    %v2985 = vunpack.c.h.b16 %v735
    %v2986 = vunpack.c.l.b16 %v736
    %v2987 = vunpack.c.h.b16 %v736
    %v2988 = vunpack.c.l.b16 %v737
    %v2989 = vunpack.c.h.b16 %v737
    %v2990 = vunpack.c.l.b16 %v738
    %v2991 = vunpack.c.h.b16 %v738
    %v2992 = vunpack.c.l.b16 %v739
    %v2993 = vunpack.c.h.b16 %v739
    %v2994 = vunpack.c.l.b16 %v740
    %v2995 = vunpack.c.h.b16 %v740
    %v2996 = vunpack.c.l.b16 %v741
    %v2997 = vunpack.c.h.b16 %v741
    %v2998 = vunpack.c.l.b16 %v742
    %v2999 = vunpack.c.h.b16 %v742
    %v3000 = vunpack.c.l.b16 %v743
    %v3001 = vunpack.c.h.b16 %v743
    %v3002 = vunpack.c.l.b16 %v744
    %v3003 = vunpack.c.h.b16 %v744
    %v3004 = vunpack.c.l.b16 %v745
    %v3005 = vunpack.c.h.b16 %v745
    %v3006 = vunpack.c.l.b16 %v746
    %v3007 = vunpack.c.h.b16 %v746
    %v3008 = vunpack.c.l.b16 %v747
    %v3009 = vunpack.c.h.b16 %v747
    %v3010 = vunpack.c.l.b16 %v748
    %v3011 = vunpack.c.h.b16 %v748
    %v3012 = vunpack.c.l.b16 %v749
    %v3013 = vunpack.c.h.b16 %v749
    %v3014 = vunpack.c.l.b16 %v750
    %v3015 = vunpack.c.h.b16 %v750
    %v3016 = vunpack.c.l.b16 %v751
    %v3017 = vunpack.c.h.b16 %v751
    %v3018 = vunpack.c.l.b16 %v752
    %v3019 = vunpack.c.h.b16 %v752
    %v3020 = vunpack.c.l.b16 %v753
    %v3021 = vunpack.c.h.b16 %v753
    %v3022 = vunpack.c.l.b16 %v754
    %v3023 = vunpack.c.h.b16 %v754
    %v3024 = vunpack.c.l.b16 %v755
    %v3025 = vunpack.c.h.b16 %v755
    %v3026 = vunpack.c.l.b16 %v756
    %v3027 = vunpack.c.h.b16 %v756
    %v3028 = vunpack.c.l.b16 %v757
    %v3029 = vunpack.c.h.b16 %v757
    %v3030 = vunpack.c.l.b16 %v758
    %v3031 = vunpack.c.h.b16 %v758
    %v3032 = vunpack.c.l.b16 %v759
    %v3033 = vunpack.c.h.b16 %v759
    %v3034 = vunpack.c.l.b16 %v760
    %v3035 = vunpack.c.h.b16 %v760
    %v3036 = vunpack.c.l.b16 %v761
    %v3037 = vunpack.c.h.b16 %v761
    %v3038 = vunpack.c.l.b16 %v762
    %v3039 = vunpack.c.h.b16 %v762
    %v3040 = vunpack.c.l.b16 %v763
    %v3041 = vunpack.c.h.b16 %v763
    %v3042 = vunpack.c.l.b16 %v764
    %v3043 = vunpack.c.h.b16 %v764
    %v3044 = vunpack.c.l.b16 %v765
    %v3045 = vunpack.c.h.b16 %v765
    %v3046 = vunpack.c.l.b16 %v766
    %v3047 = vunpack.c.h.b16 %v766
    %v3048 = vunpack.c.l.b16 %v767
    %v3049 = vunpack.c.h.b16 %v767
    %v3050 = vunpack.c.l.b16 %v768
    %v3051 = vunpack.c.h.b16 %v768
    %v3052 = vunpack.c.l.b16 %v769
    %v3053 = vunpack.c.h.b16 %v769
    %v3054 = vunpack.c.l.b16 %v770
    %v3055 = vunpack.c.h.b16 %v770
    %v3056 = vunpack.c.l.b16 %v771
    %v3057 = vunpack.c.h.b16 %v771
    %v3058 = vunpack.c.l.b16 %v772
    %v3059 = vunpack.c.h.b16 %v772
    %v3060 = vunpack.c.l.b16 %v773
    %v3061 = vunpack.c.h.b16 %v773
    %v3062 = vunpack.c.l.b16 %v774
    %v3063 = vunpack.c.h.b16 %v774
    %v3064 = vunpack.c.l.b16 %v775
    %v3065 = vunpack.c.h.b16 %v775
    %v3066 = vunpack.c.l.b16 %v776
    %v3067 = vunpack.c.h.b16 %v776
    %v3068 = vunpack.c.l.b16 %v777
    %v3069 = vunpack.c.h.b16 %v777
    %v3070 = vunpack.c.l.b16 %v778
    %v3071 = vunpack.c.h.b16 %v778
    %v3072 = vunpack.c.l.b16 %v779
    %v3073 = vunpack.c.h.b16 %v779
    %v3074 = vunpack.c.l.b16 %v780
    %v3075 = vunpack.c.h.b16 %v780
    %v3076 = vunpack.c.l.b16 %v781
    %v3077 = vunpack.c.h.b16 %v781
    %v3078 = vunpack.c.l.b16 %v782
    %v3079 = vunpack.c.h.b16 %v782
    %v3080 = vunpack.c.l.b16 %v783
    %v3081 = vunpack.c.h.b16 %v783
    %v3082 = vunpack.c.l.b16 %v784
    %v3083 = vunpack.c.h.b16 %v784
    %v3084 = vunpack.c.l.b16 %v785
    %v3085 = vunpack.c.h.b16 %v785
    %v3086 = vunpack.c.l.b16 %v786
    %v3087 = vunpack.c.h.b16 %v786
    %v3088 = vunpack.c.l.b16 %v787
    %v3089 = vunpack.c.h.b16 %v787
    %v3090 = vunpack.c.l.b16 %v788
    %v3091 = vunpack.c.h.b16 %v788
    %v3092 = vunpack.c.l.b16 %v789
    %v3093 = vunpack.c.h.b16 %v789
    %v3094 = vunpack.c.l.b16 %v790
    %v3095 = vunpack.c.h.b16 %v790
    %v3096 = vunpack.c.l.b16 %v791
    %v3097 = vunpack.c.h.b16 %v791
    %v3098 = vunpack.c.l.b16 %v792
    %v3099 = vunpack.c.h.b16 %v792
    %v3100 = vunpack.c.l.b16 %v793
    %v3101 = vunpack.c.h.b16 %v793
    %v3102 = vunpack.c.l.b16 %v794
    %v3103 = vunpack.c.h.b16 %v794
    %v3104 = vunpack.c.l.b16 %v795
    %v3105 = vunpack.c.h.b16 %v795
    %v3106 = vunpack.c.l.b16 %v796
    %v3107 = vunpack.c.h.b16 %v796
    %v3108 = vunpack.c.l.b16 %v797
    %v3109 = vunpack.c.h.b16 %v797
    %v3110 = vunpack.c.l.b16 %v798
    %v3111 = vunpack.c.h.b16 %v798
    %v3112 = vunpack.c.l.b16 %v799
    %v3113 = vunpack.c.h.b16 %v799
    %v3114 = vunpack.c.l.b16 %v800
    %v3115 = vunpack.c.h.b16 %v800
    %v3116 = vunpack.c.l.b16 %v801
    %v3117 = vunpack.c.h.b16 %v801
    %v3118 = vunpack.c.l.b16 %v802
    %v3119 = vunpack.c.h.b16 %v802
    %v3120 = vunpack.c.l.b16 %v803
    %v3121 = vunpack.c.h.b16 %v803
    %v3122 = vunpack.c.l.b16 %v804
    %v3123 = vunpack.c.h.b16 %v804
    %v3124 = vunpack.c.l.b16 %v805
    %v3125 = vunpack.c.h.b16 %v805
    %v3126 = vunpack.c.l.b16 %v806
    %v3127 = vunpack.c.h.b16 %v806
    %v3128 = vunpack.c.l.b16 %v807
    %v3129 = vunpack.c.h.b16 %v807
    %v3130 = vunpack.c.l.b16 %v808
    %v3131 = vunpack.c.h.b16 %v808
    %v3132 = vunpack.c.l.b16 %v809
    %v3133 = vunpack.c.h.b16 %v809
    %v3134 = vunpack.c.l.b16 %v810
    %v3135 = vunpack.c.h.b16 %v810
    %v3136 = vunpack.c.l.b16 %v811
    %v3137 = vunpack.c.h.b16 %v811
    %v3138 = vunpack.c.l.b16 %v812
    %v3139 = vunpack.c.h.b16 %v812
    %v3140 = vunpack.c.l.b16 %v813
    %v3141 = vunpack.c.h.b16 %v813
    %v3142 = vunpack.c.l.b16 %v814
    %v3143 = vunpack.c.h.b16 %v814
    %v3144 = vunpack.c.l.b16 %v815
    %v3145 = vunpack.c.h.b16 %v815
    %v3146 = vunpack.c.l.b16 %v816
    %v3147 = vunpack.c.h.b16 %v816
    %v3148 = vunpack.c.l.b16 %v817
    %v3149 = vunpack.c.h.b16 %v817
    %v3150 = vunpack.c.l.b16 %v818
    %v3151 = vunpack.c.h.b16 %v818
    %v3152 = vunpack.c.l.b16 %v819
    %v3153 = vunpack.c.h.b16 %v819
    %v3154 = vunpack.c.l.b16 %v820
    %v3155 = vunpack.c.h.b16 %v820
    %v3156 = vunpack.c.l.b16 %v821
    %v3157 = vunpack.c.h.b16 %v821
    %v3158 = vunpack.c.l.b16 %v822
    %v3159 = vunpack.c.h.b16 %v822
    %v3160 = vunpack.c.l.b16 %v823
    %v3161 = vunpack.c.h.b16 %v823
    %v3162 = vunpack.c.l.b16 %v824
    %v3163 = vunpack.c.h.b16 %v824
    %v3164 = vunpack.c.l.b16 %v825
    %v3165 = vunpack.c.h.b16 %v825
    %v3166 = vunpack.c.l.b16 %v826
    %v3167 = vunpack.c.h.b16 %v826
    %v3168 = vunpack.c.l.b16 %v827
    %v3169 = vunpack.c.h.b16 %v827
    %v3170 = vunpack.c.l.b16 %v828
    %v3171 = vunpack.c.h.b16 %v828
    %v3172 = vunpack.c.l.b16 %v829
    %v3173 = vunpack.c.h.b16 %v829
    %v3174 = vunpack.c.l.b16 %v830
    %v3175 = vunpack.c.h.b16 %v830
    %v3176 = vunpack.c.l.b16 %v831
    %v3177 = vunpack.c.h.b16 %v831
    %v3178 = vunpack.c.l.b16 %v832
    %v3179 = vunpack.c.h.b16 %v832
    %v3180 = vunpack.c.l.b16 %v833
    %v3181 = vunpack.c.h.b16 %v833
    %v3182 = vunpack.c.l.b16 %v834
    %v3183 = vunpack.c.h.b16 %v834
    %v3184 = vunpack.c.l.b16 %v835
    %v3185 = vunpack.c.h.b16 %v835
    %v3186 = vunpack.c.l.b16 %v836
    %v3187 = vunpack.c.h.b16 %v836
    %v3188 = vunpack.c.l.b16 %v837
    %v3189 = vunpack.c.h.b16 %v837
    %v3190 = vunpack.c.l.b16 %v838
    %v3191 = vunpack.c.h.b16 %v838
    %v3192 = vunpack.c.l.b16 %v839
    %v3193 = vunpack.c.h.b16 %v839
    %v3194 = vunpack.c.l.b16 %v840
    %v3195 = vunpack.c.h.b16 %v840
    %v3196 = vunpack.c.l.b16 %v841
    %v3197 = vunpack.c.h.b16 %v841
    %v3198 = vunpack.c.l.b16 %v842
    %v3199 = vunpack.c.h.b16 %v842
    %v3200 = vunpack.c.l.b16 %v843
    %v3201 = vunpack.c.h.b16 %v843
    %v3202 = vunpack.c.l.b16 %v844
    %v3203 = vunpack.c.h.b16 %v844
    %v3204 = vunpack.c.l.b16 %v845
    %v3205 = vunpack.c.h.b16 %v845
    %v3206 = vunpack.c.l.b16 %v846
    %v3207 = vunpack.c.h.b16 %v846
    %v3208 = vunpack.c.l.b16 %v847
    %v3209 = vunpack.c.h.b16 %v847
    %v3210 = vunpack.c.l.b16 %v848
    %v3211 = vunpack.c.h.b16 %v848
    %v3212 = vunpack.c.l.b16 %v849
    %v3213 = vunpack.c.h.b16 %v849
    %v3214 = vunpack.c.l.b16 %v850
    %v3215 = vunpack.c.h.b16 %v850
    %v3216 = vunpack.c.l.b16 %v851
    %v3217 = vunpack.c.h.b16 %v851
    %v3218 = vunpack.c.l.b16 %v852
    %v3219 = vunpack.c.h.b16 %v852
    %v3220 = vunpack.c.l.b16 %v853
    %v3221 = vunpack.c.h.b16 %v853
    %v3222 = vunpack.c.l.b16 %v854
    %v3223 = vunpack.c.h.b16 %v854
    %v3224 = vunpack.c.l.b16 %v855
    %v3225 = vunpack.c.h.b16 %v855
    %v3226 = vunpack.c.l.b16 %v856
    %v3227 = vunpack.c.h.b16 %v856
    %v3228 = vunpack.c.l.b16 %v857
    %v3229 = vunpack.c.h.b16 %v857
    %v3230 = vunpack.c.l.b16 %v858
    %v3231 = vunpack.c.h.b16 %v858
    %v3232 = vunpack.c.l.b16 %v859
    %v3233 = vunpack.c.h.b16 %v859
    %v3234 = vunpack.c.l.b16 %v860
    %v3235 = vunpack.c.h.b16 %v860
    %v3236 = vunpack.c.l.b16 %v861
    %v3237 = vunpack.c.h.b16 %v861
    %v3238 = vunpack.c.l.b16 %v862
    %v3239 = vunpack.c.h.b16 %v862
    %v3240 = vunpack.c.l.b16 %v863
    %v3241 = vunpack.c.h.b16 %v863
    %v3242 = vunpack.c.l.b16 %v864
    %v3243 = vunpack.c.h.b16 %v864
    %v3244 = vunpack.c.l.b16 %v865
    %v3245 = vunpack.c.h.b16 %v865
    %v3246 = vunpack.c.l.b16 %v866
    %v3247 = vunpack.c.h.b16 %v866
    %v3248 = vunpack.c.l.b16 %v867
    %v3249 = vunpack.c.h.b16 %v867
    %v3250 = vunpack.c.l.b16 %v868
    %v3251 = vunpack.c.h.b16 %v868
    %v3252 = vunpack.c.l.b16 %v869
    %v3253 = vunpack.c.h.b16 %v869
    %v3254 = vunpack.c.l.b16 %v870
    %v3255 = vunpack.c.h.b16 %v870
    %v3256 = vunpack.c.l.b16 %v871
    %v3257 = vunpack.c.h.b16 %v871
    %v3258 = vunpack.c.l.b16 %v872
    %v3259 = vunpack.c.h.b16 %v872
    %v3260 = vunpack.c.l.b16 %v873
    %v3261 = vunpack.c.h.b16 %v873
    %v3262 = vunpack.c.l.b16 %v874
    %v3263 = vunpack.c.h.b16 %v874
    %v3264 = vunpack.c.l.b16 %v875
    %v3265 = vunpack.c.h.b16 %v875
    %v3266 = vunpack.c.l.b16 %v876
    %v3267 = vunpack.c.h.b16 %v876
    %v3268 = vunpack.c.l.b16 %v877
    %v3269 = vunpack.c.h.b16 %v877
    %v3270 = vunpack.c.l.b16 %v878
    %v3271 = vunpack.c.h.b16 %v878
    %v3272 = vunpack.c.l.b16 %v879
    %v3273 = vunpack.c.h.b16 %v879
    %v3274 = vunpack.c.l.b16 %v880
    %v3275 = vunpack.c.h.b16 %v880
    %v3276 = vunpack.c.l.b16 %v881
    %v3277 = vunpack.c.h.b16 %v881
    %v3278 = vunpack.c.l.b16 %v882
    %v3279 = vunpack.c.h.b16 %v882
    %v3280 = vunpack.c.l.b16 %v883
    %v3281 = vunpack.c.h.b16 %v883
    %v3282 = vunpack.c.l.b16 %v884
    %v3283 = vunpack.c.h.b16 %v884
    %v3284 = vunpack.c.l.b16 %v885
    %v3285 = vunpack.c.h.b16 %v885
    %v3286 = vunpack.c.l.b16 %v886
    %v3287 = vunpack.c.h.b16 %v886
    %v3288 = vunpack.c.l.b16 %v887
    %v3289 = vunpack.c.h.b16 %v887
    %v3290 = vunpack.c.l.b16 %v888
    %v3291 = vunpack.c.h.b16 %v888
    %v3292 = vunpack.c.l.b16 %v889
    %v3293 = vunpack.c.h.b16 %v889
    %v3294 = vunpack.c.l.b16 %v890
    %v3295 = vunpack.c.h.b16 %v890
    %v3296 = vunpack.c.l.b16 %v891
    %v3297 = vunpack.c.h.b16 %v891
    %v3298 = vunpack.c.l.b16 %v892
    %v3299 = vunpack.c.h.b16 %v892
    %v3300 = vunpack.c.l.b16 %v893
    %v3301 = vunpack.c.h.b16 %v893
    %v3302 = vunpack.c.l.b16 %v894
    %v3303 = vunpack.c.h.b16 %v894
    %v3304 = vunpack.c.l.b16 %v895
    %v3305 = vunpack.c.h.b16 %v895
    %v3306 = vunpack.c.l.b16 %v896
    %v3307 = vunpack.c.h.b16 %v896
    %v3308 = vunpack.c.l.b16 %v897
    %v3309 = vunpack.c.h.b16 %v897
    %v3310 = vunpack.c.l.b16 %v898
    %v3311 = vunpack.c.h.b16 %v898
    %v3312 = vunpack.c.l.b16 %v899
    %v3313 = vunpack.c.h.b16 %v899
    %v3314 = vunpack.c.l.b16 %v900
    %v3315 = vunpack.c.h.b16 %v900
    %v3316 = vunpack.c.l.b16 %v901
    %v3317 = vunpack.c.h.b16 %v901
    %v3318 = vunpack.c.l.b16 %v902
    %v3319 = vunpack.c.h.b16 %v902
    %v3320 = vunpack.c.l.b16 %v903
    %v3321 = vunpack.c.h.b16 %v903
    %v3322 = vunpack.c.l.b16 %v904
    %v3323 = vunpack.c.h.b16 %v904
    %v3324 = vunpack.c.l.b16 %v905
    %v3325 = vunpack.c.h.b16 %v905
    %v3326 = vunpack.c.l.b16 %v906
    %v3327 = vunpack.c.h.b16 %v906
    %v3328 = vunpack.c.l.b16 %v907
    %v3329 = vunpack.c.h.b16 %v907
    %v3330 = vunpack.c.l.b16 %v908
    %v3331 = vunpack.c.h.b16 %v908
    %v3332 = vunpack.c.l.b16 %v909
    %v3333 = vunpack.c.h.b16 %v909
    %v3334 = vpack.c.b16 %v1802, %v1798
    %v3335 = vpack.c.b16 %v1803, %v1799
    %v3336 = vpack.c.b16 %v1804, %v1800
    %v3337 = vpack.c.b16 %v1805, %v1801
    %v3338 = vpack.c.b16 %v1810, %v1806
    %v3339 = vpack.c.b16 %v1811, %v1807
    %v3340 = vpack.c.b16 %v1812, %v1808
    %v3341 = vpack.c.b16 %v1813, %v1809
    %v3342 = vpack.c.b16 %v1818, %v1814
    %v3343 = vpack.c.b16 %v1819, %v1815
    %v3344 = vpack.c.b16 %v1820, %v1816
    %v3345 = vpack.c.b16 %v1821, %v1817
    %v3346 = vpack.c.b16 %v1826, %v1822
    %v3347 = vpack.c.b16 %v1827, %v1823
    %v3348 = vpack.c.b16 %v1828, %v1824
    %v3349 = vpack.c.b16 %v1829, %v1825
    %v3350 = vpack.c.b16 %v1834, %v1830
    %v3351 = vpack.c.b16 %v1835, %v1831
    %v3352 = vpack.c.b16 %v1836, %v1832
    %v3353 = vpack.c.b16 %v1837, %v1833
    %v3354 = vpack.c.b16 %v1842, %v1838
    %v3355 = vpack.c.b16 %v1843, %v1839
    %v3356 = vpack.c.b16 %v1844, %v1840
    %v3357 = vpack.c.b16 %v1845, %v1841
    %v3358 = vpack.c.b16 %v1850, %v1846
    %v3359 = vpack.c.b16 %v1851, %v1847
    %v3360 = vpack.c.b16 %v1852, %v1848
    %v3361 = vpack.c.b16 %v1853, %v1849
    %v3362 = vpack.c.b16 %v1858, %v1854
    %v3363 = vpack.c.b16 %v1859, %v1855
    %v3364 = vpack.c.b16 %v1860, %v1856
    %v3365 = vpack.c.b16 %v1861, %v1857
    %v3366 = vpack.c.b16 %v1866, %v1862
    %v3367 = vpack.c.b16 %v1867, %v1863
    %v3368 = vpack.c.b16 %v1868, %v1864
    %v3369 = vpack.c.b16 %v1869, %v1865
    %v3370 = vpack.c.b16 %v1874, %v1870
    %v3371 = vpack.c.b16 %v1875, %v1871
    %v3372 = vpack.c.b16 %v1876, %v1872
    %v3373 = vpack.c.b16 %v1877, %v1873
    %v3374 = vpack.c.b16 %v1882, %v1878
    %v3375 = vpack.c.b16 %v1883, %v1879
    %v3376 = vpack.c.b16 %v1884, %v1880
    %v3377 = vpack.c.b16 %v1885, %v1881
    %v3378 = vpack.c.b16 %v1890, %v1886
    %v3379 = vpack.c.b16 %v1891, %v1887
    %v3380 = vpack.c.b16 %v1892, %v1888
    %v3381 = vpack.c.b16 %v1893, %v1889
    %v3382 = vpack.c.b16 %v1898, %v1894
    %v3383 = vpack.c.b16 %v1899, %v1895
    %v3384 = vpack.c.b16 %v1900, %v1896
    %v3385 = vpack.c.b16 %v1901, %v1897
    %v3386 = vpack.c.b16 %v1906, %v1902
    %v3387 = vpack.c.b16 %v1907, %v1903
    %v3388 = vpack.c.b16 %v1908, %v1904
    %v3389 = vpack.c.b16 %v1909, %v1905
    %v3390 = vpack.c.b16 %v1914, %v1910
    %v3391 = vpack.c.b16 %v1915, %v1911
    %v3392 = vpack.c.b16 %v1916, %v1912
    %v3393 = vpack.c.b16 %v1917, %v1913
    %v3394 = vpack.c.b16 %v1922, %v1918
    %v3395 = vpack.c.b16 %v1923, %v1919
    %v3396 = vpack.c.b16 %v1924, %v1920
    %v3397 = vpack.c.b16 %v1925, %v1921
    %v3398 = vpack.c.b16 %v1930, %v1926
    %v3399 = vpack.c.b16 %v1931, %v1927
    %v3400 = vpack.c.b16 %v1932, %v1928
    %v3401 = vpack.c.b16 %v1933, %v1929
    %v3402 = vpack.c.b16 %v1938, %v1934
    %v3403 = vpack.c.b16 %v1939, %v1935
    %v3404 = vpack.c.b16 %v1940, %v1936
    %v3405 = vpack.c.b16 %v1941, %v1937
    %v3406 = vpack.c.b16 %v1946, %v1942
    %v3407 = vpack.c.b16 %v1947, %v1943
    %v3408 = vpack.c.b16 %v1948, %v1944
    %v3409 = vpack.c.b16 %v1949, %v1945
    %v3410 = vpack.c.b16 %v1954, %v1950
    %v3411 = vpack.c.b16 %v1955, %v1951
    %v3412 = vpack.c.b16 %v1956, %v1952
    %v3413 = vpack.c.b16 %v1957, %v1953
    %v3414 = vpack.c.b16 %v1962, %v1958
    %v3415 = vpack.c.b16 %v1963, %v1959
    %v3416 = vpack.c.b16 %v1964, %v1960
    %v3417 = vpack.c.b16 %v1965, %v1961
    %v3418 = vpack.c.b16 %v1970, %v1966
    %v3419 = vpack.c.b16 %v1971, %v1967
    %v3420 = vpack.c.b16 %v1972, %v1968
    %v3421 = vpack.c.b16 %v1973, %v1969
    %v3422 = vpack.c.b16 %v1978, %v1974
    %v3423 = vpack.c.b16 %v1979, %v1975
    %v3424 = vpack.c.b16 %v1980, %v1976
    %v3425 = vpack.c.b16 %v1981, %v1977
    %v3426 = vpack.c.b16 %v1986, %v1982
    %v3427 = vpack.c.b16 %v1987, %v1983
    %v3428 = vpack.c.b16 %v1988, %v1984
    %v3429 = vpack.c.b16 %v1989, %v1985
    %v3430 = vpack.c.b16 %v1994, %v1990
    %v3431 = vpack.c.b16 %v1995, %v1991
    %v3432 = vpack.c.b16 %v1996, %v1992
    %v3433 = vpack.c.b16 %v1997, %v1993
    %v3434 = vpack.c.b16 %v2002, %v1998
    %v3435 = vpack.c.b16 %v2003, %v1999
    %v3436 = vpack.c.b16 %v2004, %v2000
    %v3437 = vpack.c.b16 %v2005, %v2001
    %v3438 = vpack.c.b16 %v2010, %v2006
    %v3439 = vpack.c.b16 %v2011, %v2007
    %v3440 = vpack.c.b16 %v2012, %v2008
    %v3441 = vpack.c.b16 %v2013, %v2009
    %v3442 = vpack.c.b16 %v2018, %v2014
    %v3443 = vpack.c.b16 %v2019, %v2015
    %v3444 = vpack.c.b16 %v2020, %v2016
    %v3445 = vpack.c.b16 %v2021, %v2017
    %v3446 = vpack.c.b16 %v2026, %v2022
    %v3447 = vpack.c.b16 %v2027, %v2023
    %v3448 = vpack.c.b16 %v2028, %v2024
    %v3449 = vpack.c.b16 %v2029, %v2025
    %v3450 = vpack.c.b16 %v2034, %v2030
    %v3451 = vpack.c.b16 %v2035, %v2031
    %v3452 = vpack.c.b16 %v2036, %v2032
    %v3453 = vpack.c.b16 %v2037, %v2033
    %v3454 = vpack.c.b16 %v2042, %v2038
    %v3455 = vpack.c.b16 %v2043, %v2039
    %v3456 = vpack.c.b16 %v2044, %v2040
    %v3457 = vpack.c.b16 %v2045, %v2041
    %v3458 = vpack.c.b16 %v2050, %v2046
    %v3459 = vpack.c.b16 %v2051, %v2047
    %v3460 = vpack.c.b16 %v2052, %v2048
    %v3461 = vpack.c.b16 %v2053, %v2049
    %v3462 = vpack.c.b16 %v2058, %v2054
    %v3463 = vpack.c.b16 %v2059, %v2055
    %v3464 = vpack.c.b16 %v2060, %v2056
    %v3465 = vpack.c.b16 %v2061, %v2057
    %v3466 = vpack.c.b16 %v2066, %v2062
    %v3467 = vpack.c.b16 %v2067, %v2063
    %v3468 = vpack.c.b16 %v2068, %v2064
    %v3469 = vpack.c.b16 %v2069, %v2065
    %v3470 = vpack.c.b16 %v2074, %v2070
    %v3471 = vpack.c.b16 %v2075, %v2071
    %v3472 = vpack.c.b16 %v2076, %v2072
    %v3473 = vpack.c.b16 %v2077, %v2073
    %v3474 = vpack.c.b16 %v2082, %v2078
    %v3475 = vpack.c.b16 %v2083, %v2079
    %v3476 = vpack.c.b16 %v2084, %v2080
    %v3477 = vpack.c.b16 %v2085, %v2081
    %v3478 = vpack.c.b16 %v2090, %v2086
    %v3479 = vpack.c.b16 %v2091, %v2087
    %v3480 = vpack.c.b16 %v2092, %v2088
    %v3481 = vpack.c.b16 %v2093, %v2089
    %v3482 = vpack.c.b16 %v2098, %v2094
    %v3483 = vpack.c.b16 %v2099, %v2095
    %v3484 = vpack.c.b16 %v2100, %v2096
    %v3485 = vpack.c.b16 %v2101, %v2097
    %v3486 = vpack.c.b16 %v2106, %v2102
    %v3487 = vpack.c.b16 %v2107, %v2103
    %v3488 = vpack.c.b16 %v2108, %v2104
    %v3489 = vpack.c.b16 %v2109, %v2105
    %v3490 = vpack.c.b16 %v2114, %v2110
    %v3491 = vpack.c.b16 %v2115, %v2111
    %v3492 = vpack.c.b16 %v2116, %v2112
    %v3493 = vpack.c.b16 %v2117, %v2113
    %v3494 = vpack.c.b16 %v2122, %v2118
    %v3495 = vpack.c.b16 %v2123, %v2119
    %v3496 = vpack.c.b16 %v2124, %v2120
    %v3497 = vpack.c.b16 %v2125, %v2121
    %v3498 = vpack.c.b16 %v2130, %v2126
    %v3499 = vpack.c.b16 %v2131, %v2127
    %v3500 = vpack.c.b16 %v2132, %v2128
    %v3501 = vpack.c.b16 %v2133, %v2129
    %v3502 = vpack.c.b16 %v2138, %v2134
    %v3503 = vpack.c.b16 %v2139, %v2135
    %v3504 = vpack.c.b16 %v2140, %v2136
    %v3505 = vpack.c.b16 %v2141, %v2137
    %v3506 = vpack.c.b16 %v2146, %v2142
    %v3507 = vpack.c.b16 %v2147, %v2143
    %v3508 = vpack.c.b16 %v2148, %v2144
    %v3509 = vpack.c.b16 %v2149, %v2145
    %v3510 = vpack.c.b16 %v2154, %v2150
    %v3511 = vpack.c.b16 %v2155, %v2151
    %v3512 = vpack.c.b16 %v2156, %v2152
    %v3513 = vpack.c.b16 %v2157, %v2153
    %v3514 = vpack.c.b16 %v2162, %v2158
    %v3515 = vpack.c.b16 %v2163, %v2159
    %v3516 = vpack.c.b16 %v2164, %v2160
    %v3517 = vpack.c.b16 %v2165, %v2161
    %v3518 = vpack.c.b16 %v2170, %v2166
    %v3519 = vpack.c.b16 %v2171, %v2167
    %v3520 = vpack.c.b16 %v2172, %v2168
    %v3521 = vpack.c.b16 %v2173, %v2169
    %v3522 = vpack.c.b16 %v2178, %v2174
    %v3523 = vpack.c.b16 %v2179, %v2175
    %v3524 = vpack.c.b16 %v2180, %v2176
    %v3525 = vpack.c.b16 %v2181, %v2177
    %v3526 = vpack.c.b16 %v2186, %v2182
    %v3527 = vpack.c.b16 %v2187, %v2183
    %v3528 = vpack.c.b16 %v2188, %v2184
    %v3529 = vpack.c.b16 %v2189, %v2185
    %v3530 = vpack.c.b16 %v2194, %v2190
    %v3531 = vpack.c.b16 %v2195, %v2191
    %v3532 = vpack.c.b16 %v2196, %v2192
    %v3533 = vpack.c.b16 %v2197, %v2193
    %v3534 = vpack.c.b16 %v2202, %v2198
    %v3535 = vpack.c.b16 %v2203, %v2199
    %v3536 = vpack.c.b16 %v2204, %v2200
    %v3537 = vpack.c.b16 %v2205, %v2201
    %v3538 = vpack.c.b16 %v2210, %v2206
    %v3539 = vpack.c.b16 %v2211, %v2207
    %v3540 = vpack.c.b16 %v2212, %v2208
    %v3541 = vpack.c.b16 %v2213, %v2209
    %v3542 = vpack.c.b16 %v2218, %v2214
    %v3543 = vpack.c.b16 %v2219, %v2215
    %v3544 = vpack.c.b16 %v2220, %v2216
    %v3545 = vpack.c.b16 %v2221, %v2217
    %v3546 = vpack.c.b16 %v2226, %v2222
    %v3547 = vpack.c.b16 %v2227, %v2223
    %v3548 = vpack.c.b16 %v2228, %v2224
    %v3549 = vpack.c.b16 %v2229, %v2225
    %v3550 = vpack.c.b16 %v2234, %v2230
    %v3551 = vpack.c.b16 %v2235, %v2231
    %v3552 = vpack.c.b16 %v2236, %v2232
    %v3553 = vpack.c.b16 %v2237, %v2233
    %v3554 = vpack.c.b16 %v2242, %v2238
    %v3555 = vpack.c.b16 %v2243, %v2239
    %v3556 = vpack.c.b16 %v2244, %v2240
    %v3557 = vpack.c.b16 %v2245, %v2241
    %v3558 = vpack.c.b16 %v2250, %v2246
    %v3559 = vpack.c.b16 %v2251, %v2247
    %v3560 = vpack.c.b16 %v2252, %v2248
    %v3561 = vpack.c.b16 %v2253, %v2249
    %v3562 = vpack.c.b16 %v2258, %v2254
    %v3563 = vpack.c.b16 %v2259, %v2255
    %v3564 = vpack.c.b16 %v2260, %v2256
    %v3565 = vpack.c.b16 %v2261, %v2257
    %v3566 = vpack.c.b16 %v2266, %v2262
    %v3567 = vpack.c.b16 %v2267, %v2263
    %v3568 = vpack.c.b16 %v2268, %v2264
    %v3569 = vpack.c.b16 %v2269, %v2265
    %v3570 = vpack.c.b16 %v2274, %v2270
    %v3571 = vpack.c.b16 %v2275, %v2271
    %v3572 = vpack.c.b16 %v2276, %v2272
    %v3573 = vpack.c.b16 %v2277, %v2273
    %v3574 = vpack.c.b16 %v2282, %v2278
    %v3575 = vpack.c.b16 %v2283, %v2279
    %v3576 = vpack.c.b16 %v2284, %v2280
    %v3577 = vpack.c.b16 %v2285, %v2281
    %v3578 = vpack.c.b16 %v2290, %v2286
    %v3579 = vpack.c.b16 %v2291, %v2287
    %v3580 = vpack.c.b16 %v2292, %v2288
    %v3581 = vpack.c.b16 %v2293, %v2289
    %v3582 = vpack.c.b16 %v2298, %v2294
    %v3583 = vpack.c.b16 %v2299, %v2295
    %v3584 = vpack.c.b16 %v2300, %v2296
    %v3585 = vpack.c.b16 %v2301, %v2297
    %v3586 = vpack.c.b16 %v2306, %v2302
    %v3587 = vpack.c.b16 %v2307, %v2303
    %v3588 = vpack.c.b16 %v2308, %v2304
    %v3589 = vpack.c.b16 %v2309, %v2305
    %v3590 = vpack.c.b16 %v2314, %v2310
    %v3591 = vpack.c.b16 %v2315, %v2311
    %v3592 = vpack.c.b16 %v2316, %v2312
    %v3593 = vpack.c.b16 %v2317, %v2313
    %v3594 = vpack.c.b16 %v2322, %v2318
    %v3595 = vpack.c.b16 %v2323, %v2319
    %v3596 = vpack.c.b16 %v2324, %v2320
    %v3597 = vpack.c.b16 %v2325, %v2321
    %v3598 = vpack.c.b16 %v2330, %v2326
    %v3599 = vpack.c.b16 %v2331, %v2327
    %v3600 = vpack.c.b16 %v2332, %v2328
    %v3601 = vpack.c.b16 %v2333, %v2329
    %v3602 = vpack.c.b16 %v2338, %v2334
    %v3603 = vpack.c.b16 %v2339, %v2335
    %v3604 = vpack.c.b16 %v2340, %v2336
    %v3605 = vpack.c.b16 %v2341, %v2337
    %v3606 = vpack.c.b16 %v2346, %v2342
    %v3607 = vpack.c.b16 %v2347, %v2343
    %v3608 = vpack.c.b16 %v2348, %v2344
    %v3609 = vpack.c.b16 %v2349, %v2345
    %v3610 = vpack.c.b16 %v2354, %v2350
    %v3611 = vpack.c.b16 %v2355, %v2351
    %v3612 = vpack.c.b16 %v2356, %v2352
    %v3613 = vpack.c.b16 %v2357, %v2353
    %v3614 = vpack.c.b16 %v2362, %v2358
    %v3615 = vpack.c.b16 %v2363, %v2359
    %v3616 = vpack.c.b16 %v2364, %v2360
    %v3617 = vpack.c.b16 %v2365, %v2361
    %v3618 = vpack.c.b16 %v2370, %v2366
    %v3619 = vpack.c.b16 %v2371, %v2367
    %v3620 = vpack.c.b16 %v2372, %v2368
    %v3621 = vpack.c.b16 %v2373, %v2369
    %v3622 = vpack.c.b16 %v2378, %v2374
    %v3623 = vpack.c.b16 %v2379, %v2375
    %v3624 = vpack.c.b16 %v2380, %v2376
    %v3625 = vpack.c.b16 %v2381, %v2377
    %v3626 = vpack.c.b16 %v2386, %v2382
    %v3627 = vpack.c.b16 %v2387, %v2383
    %v3628 = vpack.c.b16 %v2388, %v2384
    %v3629 = vpack.c.b16 %v2389, %v2385
    %v3630 = vpack.c.b16 %v2394, %v2390
    %v3631 = vpack.c.b16 %v2395, %v2391
    %v3632 = vpack.c.b16 %v2396, %v2392
    %v3633 = vpack.c.b16 %v2397, %v2393
    %v3634 = vpack.c.b16 %v2402, %v2398
    %v3635 = vpack.c.b16 %v2403, %v2399
    %v3636 = vpack.c.b16 %v2404, %v2400
    %v3637 = vpack.c.b16 %v2405, %v2401
    %v3638 = vpack.c.b16 %v2410, %v2406
    %v3639 = vpack.c.b16 %v2411, %v2407
    %v3640 = vpack.c.b16 %v2412, %v2408
    %v3641 = vpack.c.b16 %v2413, %v2409
    %v3642 = vpack.c.b16 %v2418, %v2414
    %v3643 = vpack.c.b16 %v2419, %v2415
    %v3644 = vpack.c.b16 %v2420, %v2416
    %v3645 = vpack.c.b16 %v2421, %v2417
    %v3646 = vpack.c.b16 %v2426, %v2422
    %v3647 = vpack.c.b16 %v2427, %v2423
    %v3648 = vpack.c.b16 %v2428, %v2424
    %v3649 = vpack.c.b16 %v2429, %v2425
    %v3650 = vpack.c.b16 %v2434, %v2430
    %v3651 = vpack.c.b16 %v2435, %v2431
    %v3652 = vpack.c.b16 %v2436, %v2432
    %v3653 = vpack.c.b16 %v2437, %v2433
    %v3654 = vpack.c.b16 %v2442, %v2438
    %v3655 = vpack.c.b16 %v2443, %v2439
    %v3656 = vpack.c.b16 %v2444, %v2440
    %v3657 = vpack.c.b16 %v2445, %v2441
    %v3658 = vpack.c.b16 %v2450, %v2446
    %v3659 = vpack.c.b16 %v2451, %v2447
    %v3660 = vpack.c.b16 %v2452, %v2448
    %v3661 = vpack.c.b16 %v2453, %v2449
    %v3662 = vpack.c.b16 %v2458, %v2454
    %v3663 = vpack.c.b16 %v2459, %v2455
    %v3664 = vpack.c.b16 %v2460, %v2456
    %v3665 = vpack.c.b16 %v2461, %v2457
    %v3666 = vpack.c.b16 %v2466, %v2462
    %v3667 = vpack.c.b16 %v2467, %v2463
    %v3668 = vpack.c.b16 %v2468, %v2464
    %v3669 = vpack.c.b16 %v2469, %v2465
    %v3670 = vpack.c.b16 %v2474, %v2470
    %v3671 = vpack.c.b16 %v2475, %v2471
    %v3672 = vpack.c.b16 %v2476, %v2472
    %v3673 = vpack.c.b16 %v2477, %v2473
    %v3674 = vpack.c.b16 %v2482, %v2478
    %v3675 = vpack.c.b16 %v2483, %v2479
    %v3676 = vpack.c.b16 %v2484, %v2480
    %v3677 = vpack.c.b16 %v2485, %v2481
    %v3678 = vpack.c.b16 %v2490, %v2486
    %v3679 = vpack.c.b16 %v2491, %v2487
    %v3680 = vpack.c.b16 %v2492, %v2488
    %v3681 = vpack.c.b16 %v2493, %v2489
    %v3682 = vpack.c.b16 %v2498, %v2494
    %v3683 = vpack.c.b16 %v2499, %v2495
    %v3684 = vpack.c.b16 %v2500, %v2496
    %v3685 = vpack.c.b16 %v2501, %v2497
    %v3686 = vpack.c.b16 %v2506, %v2502
    %v3687 = vpack.c.b16 %v2507, %v2503
    %v3688 = vpack.c.b16 %v2508, %v2504
    %v3689 = vpack.c.b16 %v2509, %v2505
    %v3690 = vpack.c.b16 %v2514, %v2510
    %v3691 = vpack.c.b16 %v2515, %v2511
    %v3692 = vpack.c.b16 %v2516, %v2512
    %v3693 = vpack.c.b16 %v2517, %v2513
    %v3694 = vpack.c.b16 %v2522, %v2518
    %v3695 = vpack.c.b16 %v2523, %v2519
    %v3696 = vpack.c.b16 %v2524, %v2520
    %v3697 = vpack.c.b16 %v2525, %v2521
    %v3698 = vpack.c.b16 %v2530, %v2526
    %v3699 = vpack.c.b16 %v2531, %v2527
    %v3700 = vpack.c.b16 %v2532, %v2528
    %v3701 = vpack.c.b16 %v2533, %v2529
    %v3702 = vpack.c.b16 %v2538, %v2534
    %v3703 = vpack.c.b16 %v2539, %v2535
    %v3704 = vpack.c.b16 %v2540, %v2536
    %v3705 = vpack.c.b16 %v2541, %v2537
    %v3706 = vpack.c.b16 %v2546, %v2542
    %v3707 = vpack.c.b16 %v2547, %v2543
    %v3708 = vpack.c.b16 %v2548, %v2544
    %v3709 = vpack.c.b16 %v2549, %v2545
    %v3710 = vpack.c.b16 %v2554, %v2550
    %v3711 = vpack.c.b16 %v2555, %v2551
    %v3712 = vpack.c.b16 %v2556, %v2552
    %v3713 = vpack.c.b16 %v2557, %v2553
    %v3714 = vpack.c.b16 %v2562, %v2558
    %v3715 = vpack.c.b16 %v2563, %v2559
    %v3716 = vpack.c.b16 %v2564, %v2560
    %v3717 = vpack.c.b16 %v2565, %v2561
    %v3718 = vpack.c.b16 %v2570, %v2566
    %v3719 = vpack.c.b16 %v2571, %v2567
    %v3720 = vpack.c.b16 %v2572, %v2568
    %v3721 = vpack.c.b16 %v2573, %v2569
    %v3722 = vpack.c.b16 %v2578, %v2574
    %v3723 = vpack.c.b16 %v2579, %v2575
    %v3724 = vpack.c.b16 %v2580, %v2576
    %v3725 = vpack.c.b16 %v2581, %v2577
    %v3726 = vpack.c.b16 %v2586, %v2582
    %v3727 = vpack.c.b16 %v2587, %v2583
    %v3728 = vpack.c.b16 %v2588, %v2584
    %v3729 = vpack.c.b16 %v2589, %v2585
    %v3730 = vpack.c.b16 %v2594, %v2590
    %v3731 = vpack.c.b16 %v2595, %v2591
    %v3732 = vpack.c.b16 %v2596, %v2592
    %v3733 = vpack.c.b16 %v2597, %v2593
    %v3734 = vpack.c.b16 %v2602, %v2598
    %v3735 = vpack.c.b16 %v2603, %v2599
    %v3736 = vpack.c.b16 %v2604, %v2600
    %v3737 = vpack.c.b16 %v2605, %v2601
    %v3738 = vpack.c.b16 %v2610, %v2606
    %v3739 = vpack.c.b16 %v2611, %v2607
    %v3740 = vpack.c.b16 %v2612, %v2608
    %v3741 = vpack.c.b16 %v2613, %v2609
    %v3742 = vpack.c.b16 %v2618, %v2614
    %v3743 = vpack.c.b16 %v2619, %v2615
    %v3744 = vpack.c.b16 %v2620, %v2616
    %v3745 = vpack.c.b16 %v2621, %v2617
    %v3746 = vpack.c.b16 %v2626, %v2622
    %v3747 = vpack.c.b16 %v2627, %v2623
    %v3748 = vpack.c.b16 %v2628, %v2624
    %v3749 = vpack.c.b16 %v2629, %v2625
    %v3750 = vpack.c.b16 %v2634, %v2630
    %v3751 = vpack.c.b16 %v2635, %v2631
    %v3752 = vpack.c.b16 %v2636, %v2632
    %v3753 = vpack.c.b16 %v2637, %v2633
    %v3754 = vpack.c.b16 %v2642, %v2638
    %v3755 = vpack.c.b16 %v2643, %v2639
    %v3756 = vpack.c.b16 %v2644, %v2640
    %v3757 = vpack.c.b16 %v2645, %v2641
    %v3758 = vpack.c.b16 %v2650, %v2646
    %v3759 = vpack.c.b16 %v2651, %v2647
    %v3760 = vpack.c.b16 %v2652, %v2648
    %v3761 = vpack.c.b16 %v2653, %v2649
    %v3762 = vpack.c.b16 %v2658, %v2654
    %v3763 = vpack.c.b16 %v2659, %v2655
    %v3764 = vpack.c.b16 %v2660, %v2656
    %v3765 = vpack.c.b16 %v2661, %v2657
    %v3766 = vpack.c.b16 %v2666, %v2662
    %v3767 = vpack.c.b16 %v2667, %v2663
    %v3768 = vpack.c.b16 %v2668, %v2664
    %v3769 = vpack.c.b16 %v2669, %v2665
    %v3770 = vpack.c.b16 %v2674, %v2670
    %v3771 = vpack.c.b16 %v2675, %v2671
    %v3772 = vpack.c.b16 %v2676, %v2672
    %v3773 = vpack.c.b16 %v2677, %v2673
    %v3774 = vpack.c.b16 %v2682, %v2678
    %v3775 = vpack.c.b16 %v2683, %v2679
    %v3776 = vpack.c.b16 %v2684, %v2680
    %v3777 = vpack.c.b16 %v2685, %v2681
    %v3778 = vpack.c.b16 %v2690, %v2686
    %v3779 = vpack.c.b16 %v2691, %v2687
    %v3780 = vpack.c.b16 %v2692, %v2688
    %v3781 = vpack.c.b16 %v2693, %v2689
    %v3782 = vpack.c.b16 %v2698, %v2694
    %v3783 = vpack.c.b16 %v2699, %v2695
    %v3784 = vpack.c.b16 %v2700, %v2696
    %v3785 = vpack.c.b16 %v2701, %v2697
    %v3786 = vpack.c.b16 %v2706, %v2702
    %v3787 = vpack.c.b16 %v2707, %v2703
    %v3788 = vpack.c.b16 %v2708, %v2704
    %v3789 = vpack.c.b16 %v2709, %v2705
    %v3790 = vpack.c.b16 %v2714, %v2710
    %v3791 = vpack.c.b16 %v2715, %v2711
    %v3792 = vpack.c.b16 %v2716, %v2712
    %v3793 = vpack.c.b16 %v2717, %v2713
    %v3794 = vpack.c.b16 %v2722, %v2718
    %v3795 = vpack.c.b16 %v2723, %v2719
    %v3796 = vpack.c.b16 %v2724, %v2720
    %v3797 = vpack.c.b16 %v2725, %v2721
    %v3798 = vpack.c.b16 %v2730, %v2726
    %v3799 = vpack.c.b16 %v2731, %v2727
    %v3800 = vpack.c.b16 %v2732, %v2728
    %v3801 = vpack.c.b16 %v2733, %v2729
    %v3802 = vpack.c.b16 %v2738, %v2734
    %v3803 = vpack.c.b16 %v2739, %v2735
    %v3804 = vpack.c.b16 %v2740, %v2736
    %v3805 = vpack.c.b16 %v2741, %v2737
    %v3806 = vpack.c.b16 %v2746, %v2742
    %v3807 = vpack.c.b16 %v2747, %v2743
    %v3808 = vpack.c.b16 %v2748, %v2744
    %v3809 = vpack.c.b16 %v2749, %v2745
    %v3810 = vpack.c.b16 %v2754, %v2750
    %v3811 = vpack.c.b16 %v2755, %v2751
    %v3812 = vpack.c.b16 %v2756, %v2752
    %v3813 = vpack.c.b16 %v2757, %v2753
    %v3814 = vpack.c.b16 %v2762, %v2758
    %v3815 = vpack.c.b16 %v2763, %v2759
    %v3816 = vpack.c.b16 %v2764, %v2760
    %v3817 = vpack.c.b16 %v2765, %v2761
    %v3818 = vpack.c.b16 %v2770, %v2766
    %v3819 = vpack.c.b16 %v2771, %v2767
    %v3820 = vpack.c.b16 %v2772, %v2768
    %v3821 = vpack.c.b16 %v2773, %v2769
    %v3822 = vpack.c.b16 %v2778, %v2774
    %v3823 = vpack.c.b16 %v2779, %v2775
    %v3824 = vpack.c.b16 %v2780, %v2776
    %v3825 = vpack.c.b16 %v2781, %v2777
    %v3826 = vpack.c.b16 %v2786, %v2782
    %v3827 = vpack.c.b16 %v2787, %v2783
    %v3828 = vpack.c.b16 %v2788, %v2784
    %v3829 = vpack.c.b16 %v2789, %v2785
    %v3830 = vpack.c.b16 %v2794, %v2790
    %v3831 = vpack.c.b16 %v2795, %v2791
    %v3832 = vpack.c.b16 %v2796, %v2792
    %v3833 = vpack.c.b16 %v2797, %v2793
    %v3834 = vpack.c.b16 %v2802, %v2798
    %v3835 = vpack.c.b16 %v2803, %v2799
    %v3836 = vpack.c.b16 %v2804, %v2800
    %v3837 = vpack.c.b16 %v2805, %v2801
    %v3838 = vpack.c.b16 %v2810, %v2806
    %v3839 = vpack.c.b16 %v2811, %v2807
    %v3840 = vpack.c.b16 %v2812, %v2808
    %v3841 = vpack.c.b16 %v2813, %v2809
    %v3842 = vpack.c.b16 %v2818, %v2814
    %v3843 = vpack.c.b16 %v2819, %v2815
    %v3844 = vpack.c.b16 %v2820, %v2816
    %v3845 = vpack.c.b16 %v2821, %v2817
    %v3846 = vpack.c.b16 %v2826, %v2822
    %v3847 = vpack.c.b16 %v2827, %v2823
    %v3848 = vpack.c.b16 %v2828, %v2824
    %v3849 = vpack.c.b16 %v2829, %v2825
    %v3850 = vpack.c.b16 %v2834, %v2830
    %v3851 = vpack.c.b16 %v2835, %v2831
    %v3852 = vpack.c.b16 %v2836, %v2832
    %v3853 = vpack.c.b16 %v2837, %v2833
    %v3854 = vpack.c.b16 %v2842, %v2838
    %v3855 = vpack.c.b16 %v2843, %v2839
    %v3856 = vpack.c.b16 %v2844, %v2840
    %v3857 = vpack.c.b16 %v2845, %v2841
    %v3858 = vpack.c.b16 %v2850, %v2846
    %v3859 = vpack.c.b16 %v2851, %v2847
    %v3860 = vpack.c.b16 %v2852, %v2848
    %v3861 = vpack.c.b16 %v2853, %v2849
    %v3862 = vpack.c.b16 %v2858, %v2854
    %v3863 = vpack.c.b16 %v2859, %v2855
    %v3864 = vpack.c.b16 %v2860, %v2856
    %v3865 = vpack.c.b16 %v2861, %v2857
    %v3866 = vpack.c.b16 %v2866, %v2862
    %v3867 = vpack.c.b16 %v2867, %v2863
    %v3868 = vpack.c.b16 %v2868, %v2864
    %v3869 = vpack.c.b16 %v2869, %v2865
    %v3870 = vpack.c.b16 %v2874, %v2870
    %v3871 = vpack.c.b16 %v2875, %v2871
    %v3872 = vpack.c.b16 %v2876, %v2872
    %v3873 = vpack.c.b16 %v2877, %v2873
    %v3874 = vpack.c.b16 %v2882, %v2878
    %v3875 = vpack.c.b16 %v2883, %v2879
    %v3876 = vpack.c.b16 %v2884, %v2880
    %v3877 = vpack.c.b16 %v2885, %v2881
    %v3878 = vpack.c.b16 %v2890, %v2886
    %v3879 = vpack.c.b16 %v2891, %v2887
    %v3880 = vpack.c.b16 %v2892, %v2888
    %v3881 = vpack.c.b16 %v2893, %v2889
    %v3882 = vpack.c.b16 %v2898, %v2894
    %v3883 = vpack.c.b16 %v2899, %v2895
    %v3884 = vpack.c.b16 %v2900, %v2896
    %v3885 = vpack.c.b16 %v2901, %v2897
    %v3886 = vpack.c.b16 %v2906, %v2902
    %v3887 = vpack.c.b16 %v2907, %v2903
    %v3888 = vpack.c.b16 %v2908, %v2904
    %v3889 = vpack.c.b16 %v2909, %v2905
    %v3890 = vpack.c.b16 %v2914, %v2910
    %v3891 = vpack.c.b16 %v2915, %v2911
    %v3892 = vpack.c.b16 %v2916, %v2912
    %v3893 = vpack.c.b16 %v2917, %v2913
    %v3894 = vpack.c.b16 %v2922, %v2918
    %v3895 = vpack.c.b16 %v2923, %v2919
    %v3896 = vpack.c.b16 %v2924, %v2920
    %v3897 = vpack.c.b16 %v2925, %v2921
    %v3898 = vpack.c.b16 %v2930, %v2926
    %v3899 = vpack.c.b16 %v2931, %v2927
    %v3900 = vpack.c.b16 %v2932, %v2928
    %v3901 = vpack.c.b16 %v2933, %v2929
    %v3902 = vpack.c.b16 %v2938, %v2934
    %v3903 = vpack.c.b16 %v2939, %v2935
    %v3904 = vpack.c.b16 %v2940, %v2936
    %v3905 = vpack.c.b16 %v2941, %v2937
    %v3906 = vpack.c.b16 %v2946, %v2942
    %v3907 = vpack.c.b16 %v2947, %v2943
    %v3908 = vpack.c.b16 %v2948, %v2944
    %v3909 = vpack.c.b16 %v2949, %v2945
    %v3910 = vpack.c.b16 %v2954, %v2950
    %v3911 = vpack.c.b16 %v2955, %v2951
    %v3912 = vpack.c.b16 %v2956, %v2952
    %v3913 = vpack.c.b16 %v2957, %v2953
    %v3914 = vpack.c.b16 %v2962, %v2958
    %v3915 = vpack.c.b16 %v2963, %v2959
    %v3916 = vpack.c.b16 %v2964, %v2960
    %v3917 = vpack.c.b16 %v2965, %v2961
    %v3918 = vpack.c.b16 %v2970, %v2966
    %v3919 = vpack.c.b16 %v2971, %v2967
    %v3920 = vpack.c.b16 %v2972, %v2968
    %v3921 = vpack.c.b16 %v2973, %v2969
    %v3922 = vpack.c.b16 %v2978, %v2974
    %v3923 = vpack.c.b16 %v2979, %v2975
    %v3924 = vpack.c.b16 %v2980, %v2976
    %v3925 = vpack.c.b16 %v2981, %v2977
    %v3926 = vpack.c.b16 %v2986, %v2982
    %v3927 = vpack.c.b16 %v2987, %v2983
    %v3928 = vpack.c.b16 %v2988, %v2984
    %v3929 = vpack.c.b16 %v2989, %v2985
    %v3930 = vpack.c.b16 %v2994, %v2990
    %v3931 = vpack.c.b16 %v2995, %v2991
    %v3932 = vpack.c.b16 %v2996, %v2992
    %v3933 = vpack.c.b16 %v2997, %v2993
    %v3934 = vpack.c.b16 %v3002, %v2998
    %v3935 = vpack.c.b16 %v3003, %v2999
    %v3936 = vpack.c.b16 %v3004, %v3000
    %v3937 = vpack.c.b16 %v3005, %v3001
    %v3938 = vpack.c.b16 %v3010, %v3006
    %v3939 = vpack.c.b16 %v3011, %v3007
    %v3940 = vpack.c.b16 %v3012, %v3008
    %v3941 = vpack.c.b16 %v3013, %v3009
    %v3942 = vpack.c.b16 %v3018, %v3014
    %v3943 = vpack.c.b16 %v3019, %v3015
    %v3944 = vpack.c.b16 %v3020, %v3016
    %v3945 = vpack.c.b16 %v3021, %v3017
    %v3946 = vpack.c.b16 %v3026, %v3022
    %v3947 = vpack.c.b16 %v3027, %v3023
    %v3948 = vpack.c.b16 %v3028, %v3024
    %v3949 = vpack.c.b16 %v3029, %v3025
    %v3950 = vpack.c.b16 %v3034, %v3030
    %v3951 = vpack.c.b16 %v3035, %v3031
    %v3952 = vpack.c.b16 %v3036, %v3032
    %v3953 = vpack.c.b16 %v3037, %v3033
    %v3954 = vpack.c.b16 %v3042, %v3038
    %v3955 = vpack.c.b16 %v3043, %v3039
    %v3956 = vpack.c.b16 %v3044, %v3040
    %v3957 = vpack.c.b16 %v3045, %v3041
    %v3958 = vpack.c.b16 %v3050, %v3046
    %v3959 = vpack.c.b16 %v3051, %v3047
    %v3960 = vpack.c.b16 %v3052, %v3048
    %v3961 = vpack.c.b16 %v3053, %v3049
    %v3962 = vpack.c.b16 %v3058, %v3054
    %v3963 = vpack.c.b16 %v3059, %v3055
    %v3964 = vpack.c.b16 %v3060, %v3056
    %v3965 = vpack.c.b16 %v3061, %v3057
    %v3966 = vpack.c.b16 %v3066, %v3062
    %v3967 = vpack.c.b16 %v3067, %v3063
    %v3968 = vpack.c.b16 %v3068, %v3064
    %v3969 = vpack.c.b16 %v3069, %v3065
    %v3970 = vpack.c.b16 %v3074, %v3070
    %v3971 = vpack.c.b16 %v3075, %v3071
    %v3972 = vpack.c.b16 %v3076, %v3072
    %v3973 = vpack.c.b16 %v3077, %v3073
    %v3974 = vpack.c.b16 %v3082, %v3078
    %v3975 = vpack.c.b16 %v3083, %v3079
    %v3976 = vpack.c.b16 %v3084, %v3080
    %v3977 = vpack.c.b16 %v3085, %v3081
    %v3978 = vpack.c.b16 %v3090, %v3086
    %v3979 = vpack.c.b16 %v3091, %v3087
    %v3980 = vpack.c.b16 %v3092, %v3088
    %v3981 = vpack.c.b16 %v3093, %v3089
    %v3982 = vpack.c.b16 %v3098, %v3094
    %v3983 = vpack.c.b16 %v3099, %v3095
    %v3984 = vpack.c.b16 %v3100, %v3096
    %v3985 = vpack.c.b16 %v3101, %v3097
    %v3986 = vpack.c.b16 %v3106, %v3102
    %v3987 = vpack.c.b16 %v3107, %v3103
    %v3988 = vpack.c.b16 %v3108, %v3104
    %v3989 = vpack.c.b16 %v3109, %v3105
    %v3990 = vpack.c.b16 %v3114, %v3110
    %v3991 = vpack.c.b16 %v3115, %v3111
    %v3992 = vpack.c.b16 %v3116, %v3112
    %v3993 = vpack.c.b16 %v3117, %v3113
    %v3994 = vpack.c.b16 %v3122, %v3118
    %v3995 = vpack.c.b16 %v3123, %v3119
    %v3996 = vpack.c.b16 %v3124, %v3120
    %v3997 = vpack.c.b16 %v3125, %v3121
    %v3998 = vpack.c.b16 %v3130, %v3126
    %v3999 = vpack.c.b16 %v3131, %v3127
    %v4000 = vpack.c.b16 %v3132, %v3128
    %v4001 = vpack.c.b16 %v3133, %v3129
    %v4002 = vpack.c.b16 %v3138, %v3134
    %v4003 = vpack.c.b16 %v3139, %v3135
    %v4004 = vpack.c.b16 %v3140, %v3136
    %v4005 = vpack.c.b16 %v3141, %v3137
    %v4006 = vpack.c.b16 %v3146, %v3142
    %v4007 = vpack.c.b16 %v3147, %v3143
    %v4008 = vpack.c.b16 %v3148, %v3144
    %v4009 = vpack.c.b16 %v3149, %v3145
    %v4010 = vpack.c.b16 %v3154, %v3150
    %v4011 = vpack.c.b16 %v3155, %v3151
    %v4012 = vpack.c.b16 %v3156, %v3152
    %v4013 = vpack.c.b16 %v3157, %v3153
    %v4014 = vpack.c.b16 %v3162, %v3158
    %v4015 = vpack.c.b16 %v3163, %v3159
    %v4016 = vpack.c.b16 %v3164, %v3160
    %v4017 = vpack.c.b16 %v3165, %v3161
    %v4018 = vpack.c.b16 %v3170, %v3166
    %v4019 = vpack.c.b16 %v3171, %v3167
    %v4020 = vpack.c.b16 %v3172, %v3168
    %v4021 = vpack.c.b16 %v3173, %v3169
    %v4022 = vpack.c.b16 %v3178, %v3174
    %v4023 = vpack.c.b16 %v3179, %v3175
    %v4024 = vpack.c.b16 %v3180, %v3176
    %v4025 = vpack.c.b16 %v3181, %v3177
    %v4026 = vpack.c.b16 %v3186, %v3182
    %v4027 = vpack.c.b16 %v3187, %v3183
    %v4028 = vpack.c.b16 %v3188, %v3184
    %v4029 = vpack.c.b16 %v3189, %v3185
    %v4030 = vpack.c.b16 %v3194, %v3190
    %v4031 = vpack.c.b16 %v3195, %v3191
    %v4032 = vpack.c.b16 %v3196, %v3192
    %v4033 = vpack.c.b16 %v3197, %v3193
    %v4034 = vpack.c.b16 %v3202, %v3198
    %v4035 = vpack.c.b16 %v3203, %v3199
    %v4036 = vpack.c.b16 %v3204, %v3200
    %v4037 = vpack.c.b16 %v3205, %v3201
    %v4038 = vpack.c.b16 %v3210, %v3206
    %v4039 = vpack.c.b16 %v3211, %v3207
    %v4040 = vpack.c.b16 %v3212, %v3208
    %v4041 = vpack.c.b16 %v3213, %v3209
    %v4042 = vpack.c.b16 %v3218, %v3214
    %v4043 = vpack.c.b16 %v3219, %v3215
    %v4044 = vpack.c.b16 %v3220, %v3216
    %v4045 = vpack.c.b16 %v3221, %v3217
    %v4046 = vpack.c.b16 %v3226, %v3222
    %v4047 = vpack.c.b16 %v3227, %v3223
    %v4048 = vpack.c.b16 %v3228, %v3224
    %v4049 = vpack.c.b16 %v3229, %v3225
    %v4050 = vpack.c.b16 %v3234, %v3230
    %v4051 = vpack.c.b16 %v3235, %v3231
    %v4052 = vpack.c.b16 %v3236, %v3232
    %v4053 = vpack.c.b16 %v3237, %v3233
    %v4054 = vpack.c.b16 %v3242, %v3238
    %v4055 = vpack.c.b16 %v3243, %v3239
    %v4056 = vpack.c.b16 %v3244, %v3240
    %v4057 = vpack.c.b16 %v3245, %v3241
    %v4058 = vpack.c.b16 %v3250, %v3246
    %v4059 = vpack.c.b16 %v3251, %v3247
    %v4060 = vpack.c.b16 %v3252, %v3248
    %v4061 = vpack.c.b16 %v3253, %v3249
    %v4062 = vpack.c.b16 %v3258, %v3254
    %v4063 = vpack.c.b16 %v3259, %v3255
    %v4064 = vpack.c.b16 %v3260, %v3256
    %v4065 = vpack.c.b16 %v3261, %v3257
    %v4066 = vpack.c.b16 %v3266, %v3262
    %v4067 = vpack.c.b16 %v3267, %v3263
    %v4068 = vpack.c.b16 %v3268, %v3264
    %v4069 = vpack.c.b16 %v3269, %v3265
    %v4070 = vpack.c.b16 %v3274, %v3270
    %v4071 = vpack.c.b16 %v3275, %v3271
    %v4072 = vpack.c.b16 %v3276, %v3272
    %v4073 = vpack.c.b16 %v3277, %v3273
    %v4074 = vpack.c.b16 %v3282, %v3278
    %v4075 = vpack.c.b16 %v3283, %v3279
    %v4076 = vpack.c.b16 %v3284, %v3280
    %v4077 = vpack.c.b16 %v3285, %v3281
    %v4078 = vpack.c.b16 %v3290, %v3286
    %v4079 = vpack.c.b16 %v3291, %v3287
    %v4080 = vpack.c.b16 %v3292, %v3288
    %v4081 = vpack.c.b16 %v3293, %v3289
    %v4082 = vpack.c.b16 %v3298, %v3294
    %v4083 = vpack.c.b16 %v3299, %v3295
    %v4084 = vpack.c.b16 %v3300, %v3296
    %v4085 = vpack.c.b16 %v3301, %v3297
    %v4086 = vpack.c.b16 %v3306, %v3302
    %v4087 = vpack.c.b16 %v3307, %v3303
    %v4088 = vpack.c.b16 %v3308, %v3304
    %v4089 = vpack.c.b16 %v3309, %v3305
    %v4090 = vpack.c.b16 %v3314, %v3310
    %v4091 = vpack.c.b16 %v3315, %v3311
    %v4092 = vpack.c.b16 %v3316, %v3312
    %v4093 = vpack.c.b16 %v3317, %v3313
    %v4094 = vpack.c.b16 %v3322, %v3318
    %v4095 = vpack.c.b16 %v3323, %v3319
    %v4096 = vpack.c.b16 %v3324, %v3320
    %v4097 = vpack.c.b16 %v3325, %v3321
    %v4098 = vpack.c.b16 %v3330, %v3326
    %v4099 = vpack.c.b16 %v3331, %v3327
    %v4100 = vpack.c.b16 %v3332, %v3328
    %v4101 = vpack.c.b16 %v3333, %v3329
    %4870 = vmatpush.bf16.msra.mxu0 %v3362
    %4871 = vmatpush.bf16.msra.mxu0 %v3358
    %4872 = vmatpush.bf16.msra.mxu0 %v3354
    %4873 = vmatpush.bf16.msra.mxu0 %v3350
    %4874 = vmatpush.bf16.msra.mxu0 %v3346
    %4875 = vmatpush.bf16.msra.mxu0 %v3342
    %4876 = vmatpush.bf16.msra.mxu0 %v3338
    %4877 = vmatpush.bf16.msra.mxu0 %v3334
    %4878 = vmatmul.bf16.gmra.mxu0 %v982
    %v4879 = vpop.f32.mrf.mxu0
    %v4880 = vadd.f32 0.0, %v4879
    %v4881 = vpop.f32.mrf.mxu0
    %v4882 = vadd.f32 0.0, %v4881
    %4883 = vdwg.mxu0
    %4884 = vmatpush.bf16.msra.mxu0 %v3394
    %4885 = vmatpush.bf16.msra.mxu0 %v3390
    %4886 = vmatpush.bf16.msra.mxu0 %v3386
    %4887 = vmatpush.bf16.msra.mxu0 %v3382
    %4888 = vmatpush.bf16.msra.mxu0 %v3378
    %4889 = vmatpush.bf16.msra.mxu0 %v3374
    %4890 = vmatpush.bf16.msra.mxu0 %v3370
    %4891 = vmatpush.bf16.msra.mxu0 %v3366
    %4892 = vmatmul.bf16.gmra.mxu0 %v983
    %v4893 = vpop.f32.mrf.mxu0
    %v4894 = vadd.f32 %v4880, %v4893
    %v4895 = vpop.f32.mrf.mxu0
    %v4896 = vadd.f32 %v4882, %v4895
    %4897 = vdwg.mxu0
    %4898 = vmatpush.bf16.msra.mxu0 %v3426
    %4899 = vmatpush.bf16.msra.mxu0 %v3422
    %4900 = vmatpush.bf16.msra.mxu0 %v3418
    %4901 = vmatpush.bf16.msra.mxu0 %v3414
    %4902 = vmatpush.bf16.msra.mxu0 %v3410
    %4903 = vmatpush.bf16.msra.mxu0 %v3406
    %4904 = vmatpush.bf16.msra.mxu0 %v3402
    %4905 = vmatpush.bf16.msra.mxu0 %v3398
    %4906 = vmatmul.bf16.gmra.mxu0 %v984
    %v4907 = vpop.f32.mrf.mxu0
    %v4908 = vadd.f32 %v4894, %v4907
    %v4909 = vpop.f32.mrf.mxu0
    %v4910 = vadd.f32 %v4896, %v4909
    %4911 = vdwg.mxu0
    %4912 = vmatpush.bf16.msra.mxu0 %v3458
    %4913 = vmatpush.bf16.msra.mxu0 %v3454
    %4914 = vmatpush.bf16.msra.mxu0 %v3450
    %4915 = vmatpush.bf16.msra.mxu0 %v3446
    %4916 = vmatpush.bf16.msra.mxu0 %v3442
    %4917 = vmatpush.bf16.msra.mxu0 %v3438
    %4918 = vmatpush.bf16.msra.mxu0 %v3434
    %4919 = vmatpush.bf16.msra.mxu0 %v3430
    %4920 = vmatmul.bf16.gmra.mxu0 %v985
    %v4921 = vpop.f32.mrf.mxu0
    %v4922 = vadd.f32 %v4908, %v4921
    %v4923 = vpop.f32.mrf.mxu0
    %v4924 = vadd.f32 %v4910, %v4923
    %4925 = vdwg.mxu0
    %4926 = vmatpush.bf16.msra.mxu0 %v3490
    %4927 = vmatpush.bf16.msra.mxu0 %v3486
    %4928 = vmatpush.bf16.msra.mxu0 %v3482
    %4929 = vmatpush.bf16.msra.mxu0 %v3478
    %4930 = vmatpush.bf16.msra.mxu0 %v3474
    %4931 = vmatpush.bf16.msra.mxu0 %v3470
    %4932 = vmatpush.bf16.msra.mxu0 %v3466
    %4933 = vmatpush.bf16.msra.mxu0 %v3462
    %4934 = vmatmul.bf16.gmra.mxu0 %v986
    %v4935 = vpop.f32.mrf.mxu0
    %v4936 = vadd.f32 %v4922, %v4935
    %v4937 = vpop.f32.mrf.mxu0
    %v4938 = vadd.f32 %v4924, %v4937
    %4939 = vdwg.mxu0
    %4940 = vmatpush.bf16.msra.mxu0 %v3522
    %4941 = vmatpush.bf16.msra.mxu0 %v3518
    %4942 = vmatpush.bf16.msra.mxu0 %v3514
    %4943 = vmatpush.bf16.msra.mxu0 %v3510
    %4944 = vmatpush.bf16.msra.mxu0 %v3506
    %4945 = vmatpush.bf16.msra.mxu0 %v3502
    %4946 = vmatpush.bf16.msra.mxu0 %v3498
    %4947 = vmatpush.bf16.msra.mxu0 %v3494
    %4948 = vmatmul.bf16.gmra.mxu0 %v987
    %v4949 = vpop.f32.mrf.mxu0
    %v4950 = vadd.f32 %v4936, %v4949
    %v4951 = vpop.f32.mrf.mxu0
    %v4952 = vadd.f32 %v4938, %v4951
    %4953 = vdwg.mxu0
    %4954 = vmatpush.bf16.msra.mxu0 %v3554
    %4955 = vmatpush.bf16.msra.mxu0 %v3550
    %4956 = vmatpush.bf16.msra.mxu0 %v3546
    %4957 = vmatpush.bf16.msra.mxu0 %v3542
    %4958 = vmatpush.bf16.msra.mxu0 %v3538
    %4959 = vmatpush.bf16.msra.mxu0 %v3534
    %4960 = vmatpush.bf16.msra.mxu0 %v3530
    %4961 = vmatpush.bf16.msra.mxu0 %v3526
    %4962 = vmatmul.bf16.gmra.mxu0 %v988
    %v4963 = vpop.f32.mrf.mxu0
    %v4964 = vadd.f32 %v4950, %v4963
    %v4965 = vpop.f32.mrf.mxu0
    %v4966 = vadd.f32 %v4952, %v4965
    %4967 = vdwg.mxu0
    %4968 = vmatpush.bf16.msra.mxu0 %v3586
    %4969 = vmatpush.bf16.msra.mxu0 %v3582
    %4970 = vmatpush.bf16.msra.mxu0 %v3578
    %4971 = vmatpush.bf16.msra.mxu0 %v3574
    %4972 = vmatpush.bf16.msra.mxu0 %v3570
    %4973 = vmatpush.bf16.msra.mxu0 %v3566
    %4974 = vmatpush.bf16.msra.mxu0 %v3562
    %4975 = vmatpush.bf16.msra.mxu0 %v3558
    %4976 = vmatmul.bf16.gmra.mxu0 %v989
    %v4977 = vpop.f32.mrf.mxu0
    %v4978 = vadd.f32 %v4964, %v4977
    %v4979 = vpop.f32.mrf.mxu0
    %v4980 = vadd.f32 %v4966, %v4979
    %4981 = vdwg.mxu0
    %4982 = vmatpush.bf16.msra.mxu0 %v3618
    %4983 = vmatpush.bf16.msra.mxu0 %v3614
    %4984 = vmatpush.bf16.msra.mxu0 %v3610
    %4985 = vmatpush.bf16.msra.mxu0 %v3606
    %4986 = vmatpush.bf16.msra.mxu0 %v3602
    %4987 = vmatpush.bf16.msra.mxu0 %v3598
    %4988 = vmatpush.bf16.msra.mxu0 %v3594
    %4989 = vmatpush.bf16.msra.mxu0 %v3590
    %4990 = vmatmul.bf16.gmra.mxu0 %v990
    %v4991 = vpop.f32.mrf.mxu0
    %v4992 = vadd.f32 %v4978, %v4991
    %v4993 = vpop.f32.mrf.mxu0
    %v4994 = vadd.f32 %v4980, %v4993
    %4995 = vdwg.mxu0
    %4996 = vmatpush.bf16.msra.mxu0 %v3650
    %4997 = vmatpush.bf16.msra.mxu0 %v3646
    %4998 = vmatpush.bf16.msra.mxu0 %v3642
    %4999 = vmatpush.bf16.msra.mxu0 %v3638
    %5000 = vmatpush.bf16.msra.mxu0 %v3634
    %5001 = vmatpush.bf16.msra.mxu0 %v3630
    %5002 = vmatpush.bf16.msra.mxu0 %v3626
    %5003 = vmatpush.bf16.msra.mxu0 %v3622
    %5004 = vmatmul.bf16.gmra.mxu0 %v991
    %v5005 = vpop.f32.mrf.mxu0
    %v5006 = vadd.f32 %v4992, %v5005
    %v5007 = vpop.f32.mrf.mxu0
    %v5008 = vadd.f32 %v4994, %v5007
    %5009 = vdwg.mxu0
    %5010 = vmatpush.bf16.msra.mxu0 %v3682
    %5011 = vmatpush.bf16.msra.mxu0 %v3678
    %5012 = vmatpush.bf16.msra.mxu0 %v3674
    %5013 = vmatpush.bf16.msra.mxu0 %v3670
    %5014 = vmatpush.bf16.msra.mxu0 %v3666
    %5015 = vmatpush.bf16.msra.mxu0 %v3662
    %5016 = vmatpush.bf16.msra.mxu0 %v3658
    %5017 = vmatpush.bf16.msra.mxu0 %v3654
    %5018 = vmatmul.bf16.gmra.mxu0 %v992
    %v5019 = vpop.f32.mrf.mxu0
    %v5020 = vadd.f32 %v5006, %v5019
    %v5021 = vpop.f32.mrf.mxu0
    %v5022 = vadd.f32 %v5008, %v5021
    %5023 = vdwg.mxu0
    %5024 = vmatpush.bf16.msra.mxu0 %v3714
    %5025 = vmatpush.bf16.msra.mxu0 %v3710
    %5026 = vmatpush.bf16.msra.mxu0 %v3706
    %5027 = vmatpush.bf16.msra.mxu0 %v3702
    %5028 = vmatpush.bf16.msra.mxu0 %v3698
    %5029 = vmatpush.bf16.msra.mxu0 %v3694
    %5030 = vmatpush.bf16.msra.mxu0 %v3690
    %5031 = vmatpush.bf16.msra.mxu0 %v3686
    %5032 = vmatmul.bf16.gmra.mxu0 %v993
    %v5033 = vpop.f32.mrf.mxu0
    %v5034 = vadd.f32 %v5020, %v5033
    %v5035 = vpop.f32.mrf.mxu0
    %v5036 = vadd.f32 %v5022, %v5035
    %5037 = vdwg.mxu0
    %5038 = vmatpush.bf16.msra.mxu0 %v3746
    %5039 = vmatpush.bf16.msra.mxu0 %v3742
    %5040 = vmatpush.bf16.msra.mxu0 %v3738
    %5041 = vmatpush.bf16.msra.mxu0 %v3734
    %5042 = vmatpush.bf16.msra.mxu0 %v3730
    %5043 = vmatpush.bf16.msra.mxu0 %v3726
    %5044 = vmatpush.bf16.msra.mxu0 %v3722
    %5045 = vmatpush.bf16.msra.mxu0 %v3718
    %5046 = vmatmul.bf16.gmra.mxu0 %v994
    %v5047 = vpop.f32.mrf.mxu0
    %v5048 = vadd.f32 %v5034, %v5047
    %v5049 = vpop.f32.mrf.mxu0
    %v5050 = vadd.f32 %v5036, %v5049
    %5051 = vdwg.mxu0
    %5052 = vmatpush.bf16.msra.mxu0 %v3778
    %5053 = vmatpush.bf16.msra.mxu0 %v3774
    %5054 = vmatpush.bf16.msra.mxu0 %v3770
    %5055 = vmatpush.bf16.msra.mxu0 %v3766
    %5056 = vmatpush.bf16.msra.mxu0 %v3762
    %5057 = vmatpush.bf16.msra.mxu0 %v3758
    %5058 = vmatpush.bf16.msra.mxu0 %v3754
    %5059 = vmatpush.bf16.msra.mxu0 %v3750
    %5060 = vmatmul.bf16.gmra.mxu0 %v995
    %v5061 = vpop.f32.mrf.mxu0
    %v5062 = vadd.f32 %v5048, %v5061
    %v5063 = vpop.f32.mrf.mxu0
    %v5064 = vadd.f32 %v5050, %v5063
    %5065 = vdwg.mxu0
    %5066 = vmatpush.bf16.msra.mxu0 %v3810
    %5067 = vmatpush.bf16.msra.mxu0 %v3806
    %5068 = vmatpush.bf16.msra.mxu0 %v3802
    %5069 = vmatpush.bf16.msra.mxu0 %v3798
    %5070 = vmatpush.bf16.msra.mxu0 %v3794
    %5071 = vmatpush.bf16.msra.mxu0 %v3790
    %5072 = vmatpush.bf16.msra.mxu0 %v3786
    %5073 = vmatpush.bf16.msra.mxu0 %v3782
    %5074 = vmatmul.bf16.gmra.mxu0 %v996
    %v5075 = vpop.f32.mrf.mxu0
    %v5076 = vadd.f32 %v5062, %v5075
    %v5077 = vpop.f32.mrf.mxu0
    %v5078 = vadd.f32 %v5064, %v5077
    %5079 = vdwg.mxu0
    %5080 = vmatpush.bf16.msra.mxu0 %v3842
    %5081 = vmatpush.bf16.msra.mxu0 %v3838
    %5082 = vmatpush.bf16.msra.mxu0 %v3834
    %5083 = vmatpush.bf16.msra.mxu0 %v3830
    %5084 = vmatpush.bf16.msra.mxu0 %v3826
    %5085 = vmatpush.bf16.msra.mxu0 %v3822
    %5086 = vmatpush.bf16.msra.mxu0 %v3818
    %5087 = vmatpush.bf16.msra.mxu0 %v3814
    %5088 = vmatmul.bf16.gmra.mxu0 %v997
    %v5089 = vpop.f32.mrf.mxu0
    %v5090 = vadd.f32 %v5076, %v5089
    %v5091 = vpop.f32.mrf.mxu0
    %v5092 = vadd.f32 %v5078, %v5091
    %5093 = vdwg.mxu0
    %5094 = vmatpush.bf16.msra.mxu0 %v3874
    %5095 = vmatpush.bf16.msra.mxu0 %v3870
    %5096 = vmatpush.bf16.msra.mxu0 %v3866
    %5097 = vmatpush.bf16.msra.mxu0 %v3862
    %5098 = vmatpush.bf16.msra.mxu0 %v3858
    %5099 = vmatpush.bf16.msra.mxu0 %v3854
    %5100 = vmatpush.bf16.msra.mxu0 %v3850
    %5101 = vmatpush.bf16.msra.mxu0 %v3846
    %5102 = vmatmul.bf16.gmra.mxu0 %v998
    %v5103 = vpop.f32.mrf.mxu0
    %v5104 = vadd.f32 %v5090, %v5103
    %v5105 = vpop.f32.mrf.mxu0
    %v5106 = vadd.f32 %v5092, %v5105
    %5107 = vdwg.mxu0
    %5108 = vmatpush.bf16.msra.mxu0 %v3906
    %5109 = vmatpush.bf16.msra.mxu0 %v3902
    %5110 = vmatpush.bf16.msra.mxu0 %v3898
    %5111 = vmatpush.bf16.msra.mxu0 %v3894
    %5112 = vmatpush.bf16.msra.mxu0 %v3890
    %5113 = vmatpush.bf16.msra.mxu0 %v3886
    %5114 = vmatpush.bf16.msra.mxu0 %v3882
    %5115 = vmatpush.bf16.msra.mxu0 %v3878
    %5116 = vmatmul.bf16.gmra.mxu0 %v999
    %v5117 = vpop.f32.mrf.mxu0
    %v5118 = vadd.f32 %v5104, %v5117
    %v5119 = vpop.f32.mrf.mxu0
    %v5120 = vadd.f32 %v5106, %v5119
    %5121 = vdwg.mxu0
    %5122 = vmatpush.bf16.msra.mxu0 %v3938
    %5123 = vmatpush.bf16.msra.mxu0 %v3934
    %5124 = vmatpush.bf16.msra.mxu0 %v3930
    %5125 = vmatpush.bf16.msra.mxu0 %v3926
    %5126 = vmatpush.bf16.msra.mxu0 %v3922
    %5127 = vmatpush.bf16.msra.mxu0 %v3918
    %5128 = vmatpush.bf16.msra.mxu0 %v3914
    %5129 = vmatpush.bf16.msra.mxu0 %v3910
    %5130 = vmatmul.bf16.gmra.mxu0 %v1000
    %v5131 = vpop.f32.mrf.mxu0
    %v5132 = vadd.f32 %v5118, %v5131
    %v5133 = vpop.f32.mrf.mxu0
    %v5134 = vadd.f32 %v5120, %v5133
    %5135 = vdwg.mxu0
    %5136 = vmatpush.bf16.msra.mxu0 %v3970
    %5137 = vmatpush.bf16.msra.mxu0 %v3966
    %5138 = vmatpush.bf16.msra.mxu0 %v3962
    %5139 = vmatpush.bf16.msra.mxu0 %v3958
    %5140 = vmatpush.bf16.msra.mxu0 %v3954
    %5141 = vmatpush.bf16.msra.mxu0 %v3950
    %5142 = vmatpush.bf16.msra.mxu0 %v3946
    %5143 = vmatpush.bf16.msra.mxu0 %v3942
    %5144 = vmatmul.bf16.gmra.mxu0 %v1001
    %v5145 = vpop.f32.mrf.mxu0
    %v5146 = vadd.f32 %v5132, %v5145
    %v5147 = vpop.f32.mrf.mxu0
    %v5148 = vadd.f32 %v5134, %v5147
    %5149 = vdwg.mxu0
    %5150 = vmatpush.bf16.msra.mxu0 %v4002
    %5151 = vmatpush.bf16.msra.mxu0 %v3998
    %5152 = vmatpush.bf16.msra.mxu0 %v3994
    %5153 = vmatpush.bf16.msra.mxu0 %v3990
    %5154 = vmatpush.bf16.msra.mxu0 %v3986
    %5155 = vmatpush.bf16.msra.mxu0 %v3982
    %5156 = vmatpush.bf16.msra.mxu0 %v3978
    %5157 = vmatpush.bf16.msra.mxu0 %v3974
    %5158 = vmatmul.bf16.gmra.mxu0 %v1002
    %v5159 = vpop.f32.mrf.mxu0
    %v5160 = vadd.f32 %v5146, %v5159
    %v5161 = vpop.f32.mrf.mxu0
    %v5162 = vadd.f32 %v5148, %v5161
    %5163 = vdwg.mxu0
    %5164 = vmatpush.bf16.msra.mxu0 %v4034
    %5165 = vmatpush.bf16.msra.mxu0 %v4030
    %5166 = vmatpush.bf16.msra.mxu0 %v4026
    %5167 = vmatpush.bf16.msra.mxu0 %v4022
    %5168 = vmatpush.bf16.msra.mxu0 %v4018
    %5169 = vmatpush.bf16.msra.mxu0 %v4014
    %5170 = vmatpush.bf16.msra.mxu0 %v4010
    %5171 = vmatpush.bf16.msra.mxu0 %v4006
    %5172 = vmatmul.bf16.gmra.mxu0 %v1003
    %v5173 = vpop.f32.mrf.mxu0
    %v5174 = vadd.f32 %v5160, %v5173
    %v5175 = vpop.f32.mrf.mxu0
    %v5176 = vadd.f32 %v5162, %v5175
    %5177 = vdwg.mxu0
    %5178 = vmatpush.bf16.msra.mxu0 %v4066
    %5179 = vmatpush.bf16.msra.mxu0 %v4062
    %5180 = vmatpush.bf16.msra.mxu0 %v4058
    %5181 = vmatpush.bf16.msra.mxu0 %v4054
    %5182 = vmatpush.bf16.msra.mxu0 %v4050
    %5183 = vmatpush.bf16.msra.mxu0 %v4046
    %5184 = vmatpush.bf16.msra.mxu0 %v4042
    %5185 = vmatpush.bf16.msra.mxu0 %v4038
    %5186 = vmatmul.bf16.gmra.mxu0 %v1004
    %v5187 = vpop.f32.mrf.mxu0
    %v5188 = vadd.f32 %v5174, %v5187
    %v5189 = vpop.f32.mrf.mxu0
    %v5190 = vadd.f32 %v5176, %v5189
    %5191 = vdwg.mxu0
    %5192 = vmatpush.bf16.msra.mxu0 %v4098
    %5193 = vmatpush.bf16.msra.mxu0 %v4094
    %5194 = vmatpush.bf16.msra.mxu0 %v4090
    %5195 = vmatpush.bf16.msra.mxu0 %v4086
    %5196 = vmatpush.bf16.msra.mxu0 %v4082
    %5197 = vmatpush.bf16.msra.mxu0 %v4078
    %5198 = vmatpush.bf16.msra.mxu0 %v4074
    %5199 = vmatpush.bf16.msra.mxu0 %v4070
    %5200 = vmatmul.bf16.gmra.mxu0 %v1005
    %v5201 = vpop.f32.mrf.mxu0
    %v5202 = vadd.f32 %v5188, %v5201
    %v5203 = vpop.f32.mrf.mxu0
    %v5204 = vadd.f32 %v5190, %v5203
    %5205 = vdwg.mxu0
    %5206 = vmatpush.bf16.msra.mxu0 %v3363
    %5207 = vmatpush.bf16.msra.mxu0 %v3359
    %5208 = vmatpush.bf16.msra.mxu0 %v3355
    %5209 = vmatpush.bf16.msra.mxu0 %v3351
    %5210 = vmatpush.bf16.msra.mxu0 %v3347
    %5211 = vmatpush.bf16.msra.mxu0 %v3343
    %5212 = vmatpush.bf16.msra.mxu0 %v3339
    %5213 = vmatpush.bf16.msra.mxu0 %v3335
    %5214 = vmatmul.bf16.gmra.mxu0 %v982
    %v5215 = vpop.f32.mrf.mxu0
    %v5216 = vadd.f32 0.0, %v5215
    %v5217 = vpop.f32.mrf.mxu0
    %v5218 = vadd.f32 0.0, %v5217
    %5219 = vdwg.mxu0
    %5220 = vmatpush.bf16.msra.mxu0 %v3395
    %5221 = vmatpush.bf16.msra.mxu0 %v3391
    %5222 = vmatpush.bf16.msra.mxu0 %v3387
    %5223 = vmatpush.bf16.msra.mxu0 %v3383
    %5224 = vmatpush.bf16.msra.mxu0 %v3379
    %5225 = vmatpush.bf16.msra.mxu0 %v3375
    %5226 = vmatpush.bf16.msra.mxu0 %v3371
    %5227 = vmatpush.bf16.msra.mxu0 %v3367
    %5228 = vmatmul.bf16.gmra.mxu0 %v983
    %v5229 = vpop.f32.mrf.mxu0
    %v5230 = vadd.f32 %v5216, %v5229
    %v5231 = vpop.f32.mrf.mxu0
    %v5232 = vadd.f32 %v5218, %v5231
    %5233 = vdwg.mxu0
    %5234 = vmatpush.bf16.msra.mxu0 %v3427
    %5235 = vmatpush.bf16.msra.mxu0 %v3423
    %5236 = vmatpush.bf16.msra.mxu0 %v3419
    %5237 = vmatpush.bf16.msra.mxu0 %v3415
    %5238 = vmatpush.bf16.msra.mxu0 %v3411
    %5239 = vmatpush.bf16.msra.mxu0 %v3407
    %5240 = vmatpush.bf16.msra.mxu0 %v3403
    %5241 = vmatpush.bf16.msra.mxu0 %v3399
    %5242 = vmatmul.bf16.gmra.mxu0 %v984
    %v5243 = vpop.f32.mrf.mxu0
    %v5244 = vadd.f32 %v5230, %v5243
    %v5245 = vpop.f32.mrf.mxu0
    %v5246 = vadd.f32 %v5232, %v5245
    %5247 = vdwg.mxu0
    %5248 = vmatpush.bf16.msra.mxu0 %v3459
    %5249 = vmatpush.bf16.msra.mxu0 %v3455
    %5250 = vmatpush.bf16.msra.mxu0 %v3451
    %5251 = vmatpush.bf16.msra.mxu0 %v3447
    %5252 = vmatpush.bf16.msra.mxu0 %v3443
    %5253 = vmatpush.bf16.msra.mxu0 %v3439
    %5254 = vmatpush.bf16.msra.mxu0 %v3435
    %5255 = vmatpush.bf16.msra.mxu0 %v3431
    %5256 = vmatmul.bf16.gmra.mxu0 %v985
    %v5257 = vpop.f32.mrf.mxu0
    %v5258 = vadd.f32 %v5244, %v5257
    %v5259 = vpop.f32.mrf.mxu0
    %v5260 = vadd.f32 %v5246, %v5259
    %5261 = vdwg.mxu0
    %5262 = vmatpush.bf16.msra.mxu0 %v3491
    %5263 = vmatpush.bf16.msra.mxu0 %v3487
    %5264 = vmatpush.bf16.msra.mxu0 %v3483
    %5265 = vmatpush.bf16.msra.mxu0 %v3479
    %5266 = vmatpush.bf16.msra.mxu0 %v3475
    %5267 = vmatpush.bf16.msra.mxu0 %v3471
    %5268 = vmatpush.bf16.msra.mxu0 %v3467
    %5269 = vmatpush.bf16.msra.mxu0 %v3463
    %5270 = vmatmul.bf16.gmra.mxu0 %v986
    %v5271 = vpop.f32.mrf.mxu0
    %v5272 = vadd.f32 %v5258, %v5271
    %v5273 = vpop.f32.mrf.mxu0
    %v5274 = vadd.f32 %v5260, %v5273
    %5275 = vdwg.mxu0
    %5276 = vmatpush.bf16.msra.mxu0 %v3523
    %5277 = vmatpush.bf16.msra.mxu0 %v3519
    %5278 = vmatpush.bf16.msra.mxu0 %v3515
    %5279 = vmatpush.bf16.msra.mxu0 %v3511
    %5280 = vmatpush.bf16.msra.mxu0 %v3507
    %5281 = vmatpush.bf16.msra.mxu0 %v3503
    %5282 = vmatpush.bf16.msra.mxu0 %v3499
    %5283 = vmatpush.bf16.msra.mxu0 %v3495
    %5284 = vmatmul.bf16.gmra.mxu0 %v987
    %v5285 = vpop.f32.mrf.mxu0
    %v5286 = vadd.f32 %v5272, %v5285
    %v5287 = vpop.f32.mrf.mxu0
    %v5288 = vadd.f32 %v5274, %v5287
    %5289 = vdwg.mxu0
    %5290 = vmatpush.bf16.msra.mxu0 %v3555
    %5291 = vmatpush.bf16.msra.mxu0 %v3551
    %5292 = vmatpush.bf16.msra.mxu0 %v3547
    %5293 = vmatpush.bf16.msra.mxu0 %v3543
    %5294 = vmatpush.bf16.msra.mxu0 %v3539
    %5295 = vmatpush.bf16.msra.mxu0 %v3535
    %5296 = vmatpush.bf16.msra.mxu0 %v3531
    %5297 = vmatpush.bf16.msra.mxu0 %v3527
    %5298 = vmatmul.bf16.gmra.mxu0 %v988
    %v5299 = vpop.f32.mrf.mxu0
    %v5300 = vadd.f32 %v5286, %v5299
    %v5301 = vpop.f32.mrf.mxu0
    %v5302 = vadd.f32 %v5288, %v5301
    %5303 = vdwg.mxu0
    %5304 = vmatpush.bf16.msra.mxu0 %v3587
    %5305 = vmatpush.bf16.msra.mxu0 %v3583
    %5306 = vmatpush.bf16.msra.mxu0 %v3579
    %5307 = vmatpush.bf16.msra.mxu0 %v3575
    %5308 = vmatpush.bf16.msra.mxu0 %v3571
    %5309 = vmatpush.bf16.msra.mxu0 %v3567
    %5310 = vmatpush.bf16.msra.mxu0 %v3563
    %5311 = vmatpush.bf16.msra.mxu0 %v3559
    %5312 = vmatmul.bf16.gmra.mxu0 %v989
    %v5313 = vpop.f32.mrf.mxu0
    %v5314 = vadd.f32 %v5300, %v5313
    %v5315 = vpop.f32.mrf.mxu0
    %v5316 = vadd.f32 %v5302, %v5315
    %5317 = vdwg.mxu0
    %5318 = vmatpush.bf16.msra.mxu0 %v3619
    %5319 = vmatpush.bf16.msra.mxu0 %v3615
    %5320 = vmatpush.bf16.msra.mxu0 %v3611
    %5321 = vmatpush.bf16.msra.mxu0 %v3607
    %5322 = vmatpush.bf16.msra.mxu0 %v3603
    %5323 = vmatpush.bf16.msra.mxu0 %v3599
    %5324 = vmatpush.bf16.msra.mxu0 %v3595
    %5325 = vmatpush.bf16.msra.mxu0 %v3591
    %5326 = vmatmul.bf16.gmra.mxu0 %v990
    %v5327 = vpop.f32.mrf.mxu0
    %v5328 = vadd.f32 %v5314, %v5327
    %v5329 = vpop.f32.mrf.mxu0
    %v5330 = vadd.f32 %v5316, %v5329
    %5331 = vdwg.mxu0
    %5332 = vmatpush.bf16.msra.mxu0 %v3651
    %5333 = vmatpush.bf16.msra.mxu0 %v3647
    %5334 = vmatpush.bf16.msra.mxu0 %v3643
    %5335 = vmatpush.bf16.msra.mxu0 %v3639
    %5336 = vmatpush.bf16.msra.mxu0 %v3635
    %5337 = vmatpush.bf16.msra.mxu0 %v3631
    %5338 = vmatpush.bf16.msra.mxu0 %v3627
    %5339 = vmatpush.bf16.msra.mxu0 %v3623
    %5340 = vmatmul.bf16.gmra.mxu0 %v991
    %v5341 = vpop.f32.mrf.mxu0
    %v5342 = vadd.f32 %v5328, %v5341
    %v5343 = vpop.f32.mrf.mxu0
    %v5344 = vadd.f32 %v5330, %v5343
    %5345 = vdwg.mxu0
    %5346 = vmatpush.bf16.msra.mxu0 %v3683
    %5347 = vmatpush.bf16.msra.mxu0 %v3679
    %5348 = vmatpush.bf16.msra.mxu0 %v3675
    %5349 = vmatpush.bf16.msra.mxu0 %v3671
    %5350 = vmatpush.bf16.msra.mxu0 %v3667
    %5351 = vmatpush.bf16.msra.mxu0 %v3663
    %5352 = vmatpush.bf16.msra.mxu0 %v3659
    %5353 = vmatpush.bf16.msra.mxu0 %v3655
    %5354 = vmatmul.bf16.gmra.mxu0 %v992
    %v5355 = vpop.f32.mrf.mxu0
    %v5356 = vadd.f32 %v5342, %v5355
    %v5357 = vpop.f32.mrf.mxu0
    %v5358 = vadd.f32 %v5344, %v5357
    %5359 = vdwg.mxu0
    %5360 = vmatpush.bf16.msra.mxu0 %v3715
    %5361 = vmatpush.bf16.msra.mxu0 %v3711
    %5362 = vmatpush.bf16.msra.mxu0 %v3707
    %5363 = vmatpush.bf16.msra.mxu0 %v3703
    %5364 = vmatpush.bf16.msra.mxu0 %v3699
    %5365 = vmatpush.bf16.msra.mxu0 %v3695
    %5366 = vmatpush.bf16.msra.mxu0 %v3691
    %5367 = vmatpush.bf16.msra.mxu0 %v3687
    %5368 = vmatmul.bf16.gmra.mxu0 %v993
    %v5369 = vpop.f32.mrf.mxu0
    %v5370 = vadd.f32 %v5356, %v5369
    %v5371 = vpop.f32.mrf.mxu0
    %v5372 = vadd.f32 %v5358, %v5371
    %5373 = vdwg.mxu0
    %5374 = vmatpush.bf16.msra.mxu0 %v3747
    %5375 = vmatpush.bf16.msra.mxu0 %v3743
    %5376 = vmatpush.bf16.msra.mxu0 %v3739
    %5377 = vmatpush.bf16.msra.mxu0 %v3735
    %5378 = vmatpush.bf16.msra.mxu0 %v3731
    %5379 = vmatpush.bf16.msra.mxu0 %v3727
    %5380 = vmatpush.bf16.msra.mxu0 %v3723
    %5381 = vmatpush.bf16.msra.mxu0 %v3719
    %5382 = vmatmul.bf16.gmra.mxu0 %v994
    %v5383 = vpop.f32.mrf.mxu0
    %v5384 = vadd.f32 %v5370, %v5383
    %v5385 = vpop.f32.mrf.mxu0
    %v5386 = vadd.f32 %v5372, %v5385
    %5387 = vdwg.mxu0
    %5388 = vmatpush.bf16.msra.mxu0 %v3779
    %5389 = vmatpush.bf16.msra.mxu0 %v3775
    %5390 = vmatpush.bf16.msra.mxu0 %v3771
    %5391 = vmatpush.bf16.msra.mxu0 %v3767
    %5392 = vmatpush.bf16.msra.mxu0 %v3763
    %5393 = vmatpush.bf16.msra.mxu0 %v3759
    %5394 = vmatpush.bf16.msra.mxu0 %v3755
    %5395 = vmatpush.bf16.msra.mxu0 %v3751
    %5396 = vmatmul.bf16.gmra.mxu0 %v995
    %v5397 = vpop.f32.mrf.mxu0
    %v5398 = vadd.f32 %v5384, %v5397
    %v5399 = vpop.f32.mrf.mxu0
    %v5400 = vadd.f32 %v5386, %v5399
    %5401 = vdwg.mxu0
    %5402 = vmatpush.bf16.msra.mxu0 %v3811
    %5403 = vmatpush.bf16.msra.mxu0 %v3807
    %5404 = vmatpush.bf16.msra.mxu0 %v3803
    %5405 = vmatpush.bf16.msra.mxu0 %v3799
    %5406 = vmatpush.bf16.msra.mxu0 %v3795
    %5407 = vmatpush.bf16.msra.mxu0 %v3791
    %5408 = vmatpush.bf16.msra.mxu0 %v3787
    %5409 = vmatpush.bf16.msra.mxu0 %v3783
    %5410 = vmatmul.bf16.gmra.mxu0 %v996
    %v5411 = vpop.f32.mrf.mxu0
    %v5412 = vadd.f32 %v5398, %v5411
    %v5413 = vpop.f32.mrf.mxu0
    %v5414 = vadd.f32 %v5400, %v5413
    %5415 = vdwg.mxu0
    %5416 = vmatpush.bf16.msra.mxu0 %v3843
    %5417 = vmatpush.bf16.msra.mxu0 %v3839
    %5418 = vmatpush.bf16.msra.mxu0 %v3835
    %5419 = vmatpush.bf16.msra.mxu0 %v3831
    %5420 = vmatpush.bf16.msra.mxu0 %v3827
    %5421 = vmatpush.bf16.msra.mxu0 %v3823
    %5422 = vmatpush.bf16.msra.mxu0 %v3819
    %5423 = vmatpush.bf16.msra.mxu0 %v3815
    %5424 = vmatmul.bf16.gmra.mxu0 %v997
    %v5425 = vpop.f32.mrf.mxu0
    %v5426 = vadd.f32 %v5412, %v5425
    %v5427 = vpop.f32.mrf.mxu0
    %v5428 = vadd.f32 %v5414, %v5427
    %5429 = vdwg.mxu0
    %5430 = vmatpush.bf16.msra.mxu0 %v3875
    %5431 = vmatpush.bf16.msra.mxu0 %v3871
    %5432 = vmatpush.bf16.msra.mxu0 %v3867
    %5433 = vmatpush.bf16.msra.mxu0 %v3863
    %5434 = vmatpush.bf16.msra.mxu0 %v3859
    %5435 = vmatpush.bf16.msra.mxu0 %v3855
    %5436 = vmatpush.bf16.msra.mxu0 %v3851
    %5437 = vmatpush.bf16.msra.mxu0 %v3847
    %5438 = vmatmul.bf16.gmra.mxu0 %v998
    %v5439 = vpop.f32.mrf.mxu0
    %v5440 = vadd.f32 %v5426, %v5439
    %v5441 = vpop.f32.mrf.mxu0
    %v5442 = vadd.f32 %v5428, %v5441
    %5443 = vdwg.mxu0
    %5444 = vmatpush.bf16.msra.mxu0 %v3907
    %5445 = vmatpush.bf16.msra.mxu0 %v3903
    %5446 = vmatpush.bf16.msra.mxu0 %v3899
    %5447 = vmatpush.bf16.msra.mxu0 %v3895
    %5448 = vmatpush.bf16.msra.mxu0 %v3891
    %5449 = vmatpush.bf16.msra.mxu0 %v3887
    %5450 = vmatpush.bf16.msra.mxu0 %v3883
    %5451 = vmatpush.bf16.msra.mxu0 %v3879
    %5452 = vmatmul.bf16.gmra.mxu0 %v999
    %v5453 = vpop.f32.mrf.mxu0
    %v5454 = vadd.f32 %v5440, %v5453
    %v5455 = vpop.f32.mrf.mxu0
    %v5456 = vadd.f32 %v5442, %v5455
    %5457 = vdwg.mxu0
    %5458 = vmatpush.bf16.msra.mxu0 %v3939
    %5459 = vmatpush.bf16.msra.mxu0 %v3935
    %5460 = vmatpush.bf16.msra.mxu0 %v3931
    %5461 = vmatpush.bf16.msra.mxu0 %v3927
    %5462 = vmatpush.bf16.msra.mxu0 %v3923
    %5463 = vmatpush.bf16.msra.mxu0 %v3919
    %5464 = vmatpush.bf16.msra.mxu0 %v3915
    %5465 = vmatpush.bf16.msra.mxu0 %v3911
    %5466 = vmatmul.bf16.gmra.mxu0 %v1000
    %v5467 = vpop.f32.mrf.mxu0
    %v5468 = vadd.f32 %v5454, %v5467
    %v5469 = vpop.f32.mrf.mxu0
    %v5470 = vadd.f32 %v5456, %v5469
    %5471 = vdwg.mxu0
    %5472 = vmatpush.bf16.msra.mxu0 %v3971
    %5473 = vmatpush.bf16.msra.mxu0 %v3967
    %5474 = vmatpush.bf16.msra.mxu0 %v3963
    %5475 = vmatpush.bf16.msra.mxu0 %v3959
    %5476 = vmatpush.bf16.msra.mxu0 %v3955
    %5477 = vmatpush.bf16.msra.mxu0 %v3951
    %5478 = vmatpush.bf16.msra.mxu0 %v3947
    %5479 = vmatpush.bf16.msra.mxu0 %v3943
    %5480 = vmatmul.bf16.gmra.mxu0 %v1001
    %v5481 = vpop.f32.mrf.mxu0
    %v5482 = vadd.f32 %v5468, %v5481
    %v5483 = vpop.f32.mrf.mxu0
    %v5484 = vadd.f32 %v5470, %v5483
    %5485 = vdwg.mxu0
    %5486 = vmatpush.bf16.msra.mxu0 %v4003
    %5487 = vmatpush.bf16.msra.mxu0 %v3999
    %5488 = vmatpush.bf16.msra.mxu0 %v3995
    %5489 = vmatpush.bf16.msra.mxu0 %v3991
    %5490 = vmatpush.bf16.msra.mxu0 %v3987
    %5491 = vmatpush.bf16.msra.mxu0 %v3983
    %5492 = vmatpush.bf16.msra.mxu0 %v3979
    %5493 = vmatpush.bf16.msra.mxu0 %v3975
    %5494 = vmatmul.bf16.gmra.mxu0 %v1002
    %v5495 = vpop.f32.mrf.mxu0
    %v5496 = vadd.f32 %v5482, %v5495
    %v5497 = vpop.f32.mrf.mxu0
    %v5498 = vadd.f32 %v5484, %v5497
    %5499 = vdwg.mxu0
    %5500 = vmatpush.bf16.msra.mxu0 %v4035
    %5501 = vmatpush.bf16.msra.mxu0 %v4031
    %5502 = vmatpush.bf16.msra.mxu0 %v4027
    %5503 = vmatpush.bf16.msra.mxu0 %v4023
    %5504 = vmatpush.bf16.msra.mxu0 %v4019
    %5505 = vmatpush.bf16.msra.mxu0 %v4015
    %5506 = vmatpush.bf16.msra.mxu0 %v4011
    %5507 = vmatpush.bf16.msra.mxu0 %v4007
    %5508 = vmatmul.bf16.gmra.mxu0 %v1003
    %v5509 = vpop.f32.mrf.mxu0
    %v5510 = vadd.f32 %v5496, %v5509
    %v5511 = vpop.f32.mrf.mxu0
    %v5512 = vadd.f32 %v5498, %v5511
    %5513 = vdwg.mxu0
    %5514 = vmatpush.bf16.msra.mxu0 %v4067
    %5515 = vmatpush.bf16.msra.mxu0 %v4063
    %5516 = vmatpush.bf16.msra.mxu0 %v4059
    %5517 = vmatpush.bf16.msra.mxu0 %v4055
    %5518 = vmatpush.bf16.msra.mxu0 %v4051
    %5519 = vmatpush.bf16.msra.mxu0 %v4047
    %5520 = vmatpush.bf16.msra.mxu0 %v4043
    %5521 = vmatpush.bf16.msra.mxu0 %v4039
    %5522 = vmatmul.bf16.gmra.mxu0 %v1004
    %v5523 = vpop.f32.mrf.mxu0
    %v5524 = vadd.f32 %v5510, %v5523
    %v5525 = vpop.f32.mrf.mxu0
    %v5526 = vadd.f32 %v5512, %v5525
    %5527 = vdwg.mxu0
    %5528 = vmatpush.bf16.msra.mxu0 %v4099
    %5529 = vmatpush.bf16.msra.mxu0 %v4095
    %5530 = vmatpush.bf16.msra.mxu0 %v4091
    %5531 = vmatpush.bf16.msra.mxu0 %v4087
    %5532 = vmatpush.bf16.msra.mxu0 %v4083
    %5533 = vmatpush.bf16.msra.mxu0 %v4079
    %5534 = vmatpush.bf16.msra.mxu0 %v4075
    %5535 = vmatpush.bf16.msra.mxu0 %v4071
    %5536 = vmatmul.bf16.gmra.mxu0 %v1005
    %v5537 = vpop.f32.mrf.mxu0
    %v5538 = vadd.f32 %v5524, %v5537
    %v5539 = vpop.f32.mrf.mxu0
    %v5540 = vadd.f32 %v5526, %v5539
    %5541 = vdwg.mxu0
    %5542 = vmatpush.bf16.msra.mxu0 %v3364
    %5543 = vmatpush.bf16.msra.mxu0 %v3360
    %5544 = vmatpush.bf16.msra.mxu0 %v3356
    %5545 = vmatpush.bf16.msra.mxu0 %v3352
    %5546 = vmatpush.bf16.msra.mxu0 %v3348
    %5547 = vmatpush.bf16.msra.mxu0 %v3344
    %5548 = vmatpush.bf16.msra.mxu0 %v3340
    %5549 = vmatpush.bf16.msra.mxu0 %v3336
    %5550 = vmatmul.bf16.gmra.mxu0 %v982
    %v5551 = vpop.f32.mrf.mxu0
    %v5552 = vadd.f32 0.0, %v5551
    %v5553 = vpop.f32.mrf.mxu0
    %v5554 = vadd.f32 0.0, %v5553
    %5555 = vdwg.mxu0
    %5556 = vmatpush.bf16.msra.mxu0 %v3396
    %5557 = vmatpush.bf16.msra.mxu0 %v3392
    %5558 = vmatpush.bf16.msra.mxu0 %v3388
    %5559 = vmatpush.bf16.msra.mxu0 %v3384
    %5560 = vmatpush.bf16.msra.mxu0 %v3380
    %5561 = vmatpush.bf16.msra.mxu0 %v3376
    %5562 = vmatpush.bf16.msra.mxu0 %v3372
    %5563 = vmatpush.bf16.msra.mxu0 %v3368
    %5564 = vmatmul.bf16.gmra.mxu0 %v983
    %v5565 = vpop.f32.mrf.mxu0
    %v5566 = vadd.f32 %v5552, %v5565
    %v5567 = vpop.f32.mrf.mxu0
    %v5568 = vadd.f32 %v5554, %v5567
    %5569 = vdwg.mxu0
    %5570 = vmatpush.bf16.msra.mxu0 %v3428
    %5571 = vmatpush.bf16.msra.mxu0 %v3424
    %5572 = vmatpush.bf16.msra.mxu0 %v3420
    %5573 = vmatpush.bf16.msra.mxu0 %v3416
    %5574 = vmatpush.bf16.msra.mxu0 %v3412
    %5575 = vmatpush.bf16.msra.mxu0 %v3408
    %5576 = vmatpush.bf16.msra.mxu0 %v3404
    %5577 = vmatpush.bf16.msra.mxu0 %v3400
    %5578 = vmatmul.bf16.gmra.mxu0 %v984
    %v5579 = vpop.f32.mrf.mxu0
    %v5580 = vadd.f32 %v5566, %v5579
    %v5581 = vpop.f32.mrf.mxu0
    %v5582 = vadd.f32 %v5568, %v5581
    %5583 = vdwg.mxu0
    %5584 = vmatpush.bf16.msra.mxu0 %v3460
    %5585 = vmatpush.bf16.msra.mxu0 %v3456
    %5586 = vmatpush.bf16.msra.mxu0 %v3452
    %5587 = vmatpush.bf16.msra.mxu0 %v3448
    %5588 = vmatpush.bf16.msra.mxu0 %v3444
    %5589 = vmatpush.bf16.msra.mxu0 %v3440
    %5590 = vmatpush.bf16.msra.mxu0 %v3436
    %5591 = vmatpush.bf16.msra.mxu0 %v3432
    %5592 = vmatmul.bf16.gmra.mxu0 %v985
    %v5593 = vpop.f32.mrf.mxu0
    %v5594 = vadd.f32 %v5580, %v5593
    %v5595 = vpop.f32.mrf.mxu0
    %v5596 = vadd.f32 %v5582, %v5595
    %5597 = vdwg.mxu0
    %5598 = vmatpush.bf16.msra.mxu0 %v3492
    %5599 = vmatpush.bf16.msra.mxu0 %v3488
    %5600 = vmatpush.bf16.msra.mxu0 %v3484
    %5601 = vmatpush.bf16.msra.mxu0 %v3480
    %5602 = vmatpush.bf16.msra.mxu0 %v3476
    %5603 = vmatpush.bf16.msra.mxu0 %v3472
    %5604 = vmatpush.bf16.msra.mxu0 %v3468
    %5605 = vmatpush.bf16.msra.mxu0 %v3464
    %5606 = vmatmul.bf16.gmra.mxu0 %v986
    %v5607 = vpop.f32.mrf.mxu0
    %v5608 = vadd.f32 %v5594, %v5607
    %v5609 = vpop.f32.mrf.mxu0
    %v5610 = vadd.f32 %v5596, %v5609
    %5611 = vdwg.mxu0
    %5612 = vmatpush.bf16.msra.mxu0 %v3524
    %5613 = vmatpush.bf16.msra.mxu0 %v3520
    %5614 = vmatpush.bf16.msra.mxu0 %v3516
    %5615 = vmatpush.bf16.msra.mxu0 %v3512
    %5616 = vmatpush.bf16.msra.mxu0 %v3508
    %5617 = vmatpush.bf16.msra.mxu0 %v3504
    %5618 = vmatpush.bf16.msra.mxu0 %v3500
    %5619 = vmatpush.bf16.msra.mxu0 %v3496
    %5620 = vmatmul.bf16.gmra.mxu0 %v987
    %v5621 = vpop.f32.mrf.mxu0
    %v5622 = vadd.f32 %v5608, %v5621
    %v5623 = vpop.f32.mrf.mxu0
    %v5624 = vadd.f32 %v5610, %v5623
    %5625 = vdwg.mxu0
    %5626 = vmatpush.bf16.msra.mxu0 %v3556
    %5627 = vmatpush.bf16.msra.mxu0 %v3552
    %5628 = vmatpush.bf16.msra.mxu0 %v3548
    %5629 = vmatpush.bf16.msra.mxu0 %v3544
    %5630 = vmatpush.bf16.msra.mxu0 %v3540
    %5631 = vmatpush.bf16.msra.mxu0 %v3536
    %5632 = vmatpush.bf16.msra.mxu0 %v3532
    %5633 = vmatpush.bf16.msra.mxu0 %v3528
    %5634 = vmatmul.bf16.gmra.mxu0 %v988
    %v5635 = vpop.f32.mrf.mxu0
    %v5636 = vadd.f32 %v5622, %v5635
    %v5637 = vpop.f32.mrf.mxu0
    %v5638 = vadd.f32 %v5624, %v5637
    %5639 = vdwg.mxu0
    %5640 = vmatpush.bf16.msra.mxu0 %v3588
    %5641 = vmatpush.bf16.msra.mxu0 %v3584
    %5642 = vmatpush.bf16.msra.mxu0 %v3580
    %5643 = vmatpush.bf16.msra.mxu0 %v3576
    %5644 = vmatpush.bf16.msra.mxu0 %v3572
    %5645 = vmatpush.bf16.msra.mxu0 %v3568
    %5646 = vmatpush.bf16.msra.mxu0 %v3564
    %5647 = vmatpush.bf16.msra.mxu0 %v3560
    %5648 = vmatmul.bf16.gmra.mxu0 %v989
    %v5649 = vpop.f32.mrf.mxu0
    %v5650 = vadd.f32 %v5636, %v5649
    %v5651 = vpop.f32.mrf.mxu0
    %v5652 = vadd.f32 %v5638, %v5651
    %5653 = vdwg.mxu0
    %5654 = vmatpush.bf16.msra.mxu0 %v3620
    %5655 = vmatpush.bf16.msra.mxu0 %v3616
    %5656 = vmatpush.bf16.msra.mxu0 %v3612
    %5657 = vmatpush.bf16.msra.mxu0 %v3608
    %5658 = vmatpush.bf16.msra.mxu0 %v3604
    %5659 = vmatpush.bf16.msra.mxu0 %v3600
    %5660 = vmatpush.bf16.msra.mxu0 %v3596
    %5661 = vmatpush.bf16.msra.mxu0 %v3592
    %5662 = vmatmul.bf16.gmra.mxu0 %v990
    %v5663 = vpop.f32.mrf.mxu0
    %v5664 = vadd.f32 %v5650, %v5663
    %v5665 = vpop.f32.mrf.mxu0
    %v5666 = vadd.f32 %v5652, %v5665
    %5667 = vdwg.mxu0
    %5668 = vmatpush.bf16.msra.mxu0 %v3652
    %5669 = vmatpush.bf16.msra.mxu0 %v3648
    %5670 = vmatpush.bf16.msra.mxu0 %v3644
    %5671 = vmatpush.bf16.msra.mxu0 %v3640
    %5672 = vmatpush.bf16.msra.mxu0 %v3636
    %5673 = vmatpush.bf16.msra.mxu0 %v3632
    %5674 = vmatpush.bf16.msra.mxu0 %v3628
    %5675 = vmatpush.bf16.msra.mxu0 %v3624
    %5676 = vmatmul.bf16.gmra.mxu0 %v991
    %v5677 = vpop.f32.mrf.mxu0
    %v5678 = vadd.f32 %v5664, %v5677
    %v5679 = vpop.f32.mrf.mxu0
    %v5680 = vadd.f32 %v5666, %v5679
    %5681 = vdwg.mxu0
    %5682 = vmatpush.bf16.msra.mxu0 %v3684
    %5683 = vmatpush.bf16.msra.mxu0 %v3680
    %5684 = vmatpush.bf16.msra.mxu0 %v3676
    %5685 = vmatpush.bf16.msra.mxu0 %v3672
    %5686 = vmatpush.bf16.msra.mxu0 %v3668
    %5687 = vmatpush.bf16.msra.mxu0 %v3664
    %5688 = vmatpush.bf16.msra.mxu0 %v3660
    %5689 = vmatpush.bf16.msra.mxu0 %v3656
    %5690 = vmatmul.bf16.gmra.mxu0 %v992
    %v5691 = vpop.f32.mrf.mxu0
    %v5692 = vadd.f32 %v5678, %v5691
    %v5693 = vpop.f32.mrf.mxu0
    %v5694 = vadd.f32 %v5680, %v5693
    %5695 = vdwg.mxu0
    %5696 = vmatpush.bf16.msra.mxu0 %v3716
    %5697 = vmatpush.bf16.msra.mxu0 %v3712
    %5698 = vmatpush.bf16.msra.mxu0 %v3708
    %5699 = vmatpush.bf16.msra.mxu0 %v3704
    %5700 = vmatpush.bf16.msra.mxu0 %v3700
    %5701 = vmatpush.bf16.msra.mxu0 %v3696
    %5702 = vmatpush.bf16.msra.mxu0 %v3692
    %5703 = vmatpush.bf16.msra.mxu0 %v3688
    %5704 = vmatmul.bf16.gmra.mxu0 %v993
    %v5705 = vpop.f32.mrf.mxu0
    %v5706 = vadd.f32 %v5692, %v5705
    %v5707 = vpop.f32.mrf.mxu0
    %v5708 = vadd.f32 %v5694, %v5707
    %5709 = vdwg.mxu0
    %5710 = vmatpush.bf16.msra.mxu0 %v3748
    %5711 = vmatpush.bf16.msra.mxu0 %v3744
    %5712 = vmatpush.bf16.msra.mxu0 %v3740
    %5713 = vmatpush.bf16.msra.mxu0 %v3736
    %5714 = vmatpush.bf16.msra.mxu0 %v3732
    %5715 = vmatpush.bf16.msra.mxu0 %v3728
    %5716 = vmatpush.bf16.msra.mxu0 %v3724
    %5717 = vmatpush.bf16.msra.mxu0 %v3720
    %5718 = vmatmul.bf16.gmra.mxu0 %v994
    %v5719 = vpop.f32.mrf.mxu0
    %v5720 = vadd.f32 %v5706, %v5719
    %v5721 = vpop.f32.mrf.mxu0
    %v5722 = vadd.f32 %v5708, %v5721
    %5723 = vdwg.mxu0
    %5724 = vmatpush.bf16.msra.mxu0 %v3780
    %5725 = vmatpush.bf16.msra.mxu0 %v3776
    %5726 = vmatpush.bf16.msra.mxu0 %v3772
    %5727 = vmatpush.bf16.msra.mxu0 %v3768
    %5728 = vmatpush.bf16.msra.mxu0 %v3764
    %5729 = vmatpush.bf16.msra.mxu0 %v3760
    %5730 = vmatpush.bf16.msra.mxu0 %v3756
    %5731 = vmatpush.bf16.msra.mxu0 %v3752
    %5732 = vmatmul.bf16.gmra.mxu0 %v995
    %v5733 = vpop.f32.mrf.mxu0
    %v5734 = vadd.f32 %v5720, %v5733
    %v5735 = vpop.f32.mrf.mxu0
    %v5736 = vadd.f32 %v5722, %v5735
    %5737 = vdwg.mxu0
    %5738 = vmatpush.bf16.msra.mxu0 %v3812
    %5739 = vmatpush.bf16.msra.mxu0 %v3808
    %5740 = vmatpush.bf16.msra.mxu0 %v3804
    %5741 = vmatpush.bf16.msra.mxu0 %v3800
    %5742 = vmatpush.bf16.msra.mxu0 %v3796
    %5743 = vmatpush.bf16.msra.mxu0 %v3792
    %5744 = vmatpush.bf16.msra.mxu0 %v3788
    %5745 = vmatpush.bf16.msra.mxu0 %v3784
    %5746 = vmatmul.bf16.gmra.mxu0 %v996
    %v5747 = vpop.f32.mrf.mxu0
    %v5748 = vadd.f32 %v5734, %v5747
    %v5749 = vpop.f32.mrf.mxu0
    %v5750 = vadd.f32 %v5736, %v5749
    %5751 = vdwg.mxu0
    %5752 = vmatpush.bf16.msra.mxu0 %v3844
    %5753 = vmatpush.bf16.msra.mxu0 %v3840
    %5754 = vmatpush.bf16.msra.mxu0 %v3836
    %5755 = vmatpush.bf16.msra.mxu0 %v3832
    %5756 = vmatpush.bf16.msra.mxu0 %v3828
    %5757 = vmatpush.bf16.msra.mxu0 %v3824
    %5758 = vmatpush.bf16.msra.mxu0 %v3820
    %5759 = vmatpush.bf16.msra.mxu0 %v3816
    %5760 = vmatmul.bf16.gmra.mxu0 %v997
    %v5761 = vpop.f32.mrf.mxu0
    %v5762 = vadd.f32 %v5748, %v5761
    %v5763 = vpop.f32.mrf.mxu0
    %v5764 = vadd.f32 %v5750, %v5763
    %5765 = vdwg.mxu0
    %5766 = vmatpush.bf16.msra.mxu0 %v3876
    %5767 = vmatpush.bf16.msra.mxu0 %v3872
    %5768 = vmatpush.bf16.msra.mxu0 %v3868
    %5769 = vmatpush.bf16.msra.mxu0 %v3864
    %5770 = vmatpush.bf16.msra.mxu0 %v3860
    %5771 = vmatpush.bf16.msra.mxu0 %v3856
    %5772 = vmatpush.bf16.msra.mxu0 %v3852
    %5773 = vmatpush.bf16.msra.mxu0 %v3848
    %5774 = vmatmul.bf16.gmra.mxu0 %v998
    %v5775 = vpop.f32.mrf.mxu0
    %v5776 = vadd.f32 %v5762, %v5775
    %v5777 = vpop.f32.mrf.mxu0
    %v5778 = vadd.f32 %v5764, %v5777
    %5779 = vdwg.mxu0
    %5780 = vmatpush.bf16.msra.mxu0 %v3908
    %5781 = vmatpush.bf16.msra.mxu0 %v3904
    %5782 = vmatpush.bf16.msra.mxu0 %v3900
    %5783 = vmatpush.bf16.msra.mxu0 %v3896
    %5784 = vmatpush.bf16.msra.mxu0 %v3892
    %5785 = vmatpush.bf16.msra.mxu0 %v3888
    %5786 = vmatpush.bf16.msra.mxu0 %v3884
    %5787 = vmatpush.bf16.msra.mxu0 %v3880
    %5788 = vmatmul.bf16.gmra.mxu0 %v999
    %v5789 = vpop.f32.mrf.mxu0
    %v5790 = vadd.f32 %v5776, %v5789
    %v5791 = vpop.f32.mrf.mxu0
    %v5792 = vadd.f32 %v5778, %v5791
    %5793 = vdwg.mxu0
    %5794 = vmatpush.bf16.msra.mxu0 %v3940
    %5795 = vmatpush.bf16.msra.mxu0 %v3936
    %5796 = vmatpush.bf16.msra.mxu0 %v3932
    %5797 = vmatpush.bf16.msra.mxu0 %v3928
    %5798 = vmatpush.bf16.msra.mxu0 %v3924
    %5799 = vmatpush.bf16.msra.mxu0 %v3920
    %5800 = vmatpush.bf16.msra.mxu0 %v3916
    %5801 = vmatpush.bf16.msra.mxu0 %v3912
    %5802 = vmatmul.bf16.gmra.mxu0 %v1000
    %v5803 = vpop.f32.mrf.mxu0
    %v5804 = vadd.f32 %v5790, %v5803
    %v5805 = vpop.f32.mrf.mxu0
    %v5806 = vadd.f32 %v5792, %v5805
    %5807 = vdwg.mxu0
    %5808 = vmatpush.bf16.msra.mxu0 %v3972
    %5809 = vmatpush.bf16.msra.mxu0 %v3968
    %5810 = vmatpush.bf16.msra.mxu0 %v3964
    %5811 = vmatpush.bf16.msra.mxu0 %v3960
    %5812 = vmatpush.bf16.msra.mxu0 %v3956
    %5813 = vmatpush.bf16.msra.mxu0 %v3952
    %5814 = vmatpush.bf16.msra.mxu0 %v3948
    %5815 = vmatpush.bf16.msra.mxu0 %v3944
    %5816 = vmatmul.bf16.gmra.mxu0 %v1001
    %v5817 = vpop.f32.mrf.mxu0
    %v5818 = vadd.f32 %v5804, %v5817
    %v5819 = vpop.f32.mrf.mxu0
    %v5820 = vadd.f32 %v5806, %v5819
    %5821 = vdwg.mxu0
    %5822 = vmatpush.bf16.msra.mxu0 %v4004
    %5823 = vmatpush.bf16.msra.mxu0 %v4000
    %5824 = vmatpush.bf16.msra.mxu0 %v3996
    %5825 = vmatpush.bf16.msra.mxu0 %v3992
    %5826 = vmatpush.bf16.msra.mxu0 %v3988
    %5827 = vmatpush.bf16.msra.mxu0 %v3984
    %5828 = vmatpush.bf16.msra.mxu0 %v3980
    %5829 = vmatpush.bf16.msra.mxu0 %v3976
    %5830 = vmatmul.bf16.gmra.mxu0 %v1002
    %v5831 = vpop.f32.mrf.mxu0
    %v5832 = vadd.f32 %v5818, %v5831
    %v5833 = vpop.f32.mrf.mxu0
    %v5834 = vadd.f32 %v5820, %v5833
    %5835 = vdwg.mxu0
    %5836 = vmatpush.bf16.msra.mxu0 %v4036
    %5837 = vmatpush.bf16.msra.mxu0 %v4032
    %5838 = vmatpush.bf16.msra.mxu0 %v4028
    %5839 = vmatpush.bf16.msra.mxu0 %v4024
    %5840 = vmatpush.bf16.msra.mxu0 %v4020
    %5841 = vmatpush.bf16.msra.mxu0 %v4016
    %5842 = vmatpush.bf16.msra.mxu0 %v4012
    %5843 = vmatpush.bf16.msra.mxu0 %v4008
    %5844 = vmatmul.bf16.gmra.mxu0 %v1003
    %v5845 = vpop.f32.mrf.mxu0
    %v5846 = vadd.f32 %v5832, %v5845
    %v5847 = vpop.f32.mrf.mxu0
    %v5848 = vadd.f32 %v5834, %v5847
    %5849 = vdwg.mxu0
    %5850 = vmatpush.bf16.msra.mxu0 %v4068
    %5851 = vmatpush.bf16.msra.mxu0 %v4064
    %5852 = vmatpush.bf16.msra.mxu0 %v4060
    %5853 = vmatpush.bf16.msra.mxu0 %v4056
    %5854 = vmatpush.bf16.msra.mxu0 %v4052
    %5855 = vmatpush.bf16.msra.mxu0 %v4048
    %5856 = vmatpush.bf16.msra.mxu0 %v4044
    %5857 = vmatpush.bf16.msra.mxu0 %v4040
    %5858 = vmatmul.bf16.gmra.mxu0 %v1004
    %v5859 = vpop.f32.mrf.mxu0
    %v5860 = vadd.f32 %v5846, %v5859
    %v5861 = vpop.f32.mrf.mxu0
    %v5862 = vadd.f32 %v5848, %v5861
    %5863 = vdwg.mxu0
    %5864 = vmatpush.bf16.msra.mxu0 %v4100
    %5865 = vmatpush.bf16.msra.mxu0 %v4096
    %5866 = vmatpush.bf16.msra.mxu0 %v4092
    %5867 = vmatpush.bf16.msra.mxu0 %v4088
    %5868 = vmatpush.bf16.msra.mxu0 %v4084
    %5869 = vmatpush.bf16.msra.mxu0 %v4080
    %5870 = vmatpush.bf16.msra.mxu0 %v4076
    %5871 = vmatpush.bf16.msra.mxu0 %v4072
    %5872 = vmatmul.bf16.gmra.mxu0 %v1005
    %v5873 = vpop.f32.mrf.mxu0
    %v5874 = vadd.f32 %v5860, %v5873
    %v5875 = vpop.f32.mrf.mxu0
    %v5876 = vadd.f32 %v5862, %v5875
    %5877 = vdwg.mxu0
    %5878 = vmatpush.bf16.msra.mxu0 %v3365
    %5879 = vmatpush.bf16.msra.mxu0 %v3361
    %5880 = vmatpush.bf16.msra.mxu0 %v3357
    %5881 = vmatpush.bf16.msra.mxu0 %v3353
    %5882 = vmatpush.bf16.msra.mxu0 %v3349
    %5883 = vmatpush.bf16.msra.mxu0 %v3345
    %5884 = vmatpush.bf16.msra.mxu0 %v3341
    %5885 = vmatpush.bf16.msra.mxu0 %v3337
    %5886 = vmatmul.bf16.gmra.mxu0 %v982
    %v5887 = vpop.f32.mrf.mxu0
    %v5888 = vadd.f32 0.0, %v5887
    %v5889 = vpop.f32.mrf.mxu0
    %v5890 = vadd.f32 0.0, %v5889
    %5891 = vdwg.mxu0
    %5892 = vmatpush.bf16.msra.mxu0 %v3397
    %5893 = vmatpush.bf16.msra.mxu0 %v3393
    %5894 = vmatpush.bf16.msra.mxu0 %v3389
    %5895 = vmatpush.bf16.msra.mxu0 %v3385
    %5896 = vmatpush.bf16.msra.mxu0 %v3381
    %5897 = vmatpush.bf16.msra.mxu0 %v3377
    %5898 = vmatpush.bf16.msra.mxu0 %v3373
    %5899 = vmatpush.bf16.msra.mxu0 %v3369
    %5900 = vmatmul.bf16.gmra.mxu0 %v983
    %v5901 = vpop.f32.mrf.mxu0
    %v5902 = vadd.f32 %v5888, %v5901
    %v5903 = vpop.f32.mrf.mxu0
    %v5904 = vadd.f32 %v5890, %v5903
    %5905 = vdwg.mxu0
    %5906 = vmatpush.bf16.msra.mxu0 %v3429
    %5907 = vmatpush.bf16.msra.mxu0 %v3425
    %5908 = vmatpush.bf16.msra.mxu0 %v3421
    %5909 = vmatpush.bf16.msra.mxu0 %v3417
    %5910 = vmatpush.bf16.msra.mxu0 %v3413
    %5911 = vmatpush.bf16.msra.mxu0 %v3409
    %5912 = vmatpush.bf16.msra.mxu0 %v3405
    %5913 = vmatpush.bf16.msra.mxu0 %v3401
    %5914 = vmatmul.bf16.gmra.mxu0 %v984
    %v5915 = vpop.f32.mrf.mxu0
    %v5916 = vadd.f32 %v5902, %v5915
    %v5917 = vpop.f32.mrf.mxu0
    %v5918 = vadd.f32 %v5904, %v5917
    %5919 = vdwg.mxu0
    %5920 = vmatpush.bf16.msra.mxu0 %v3461
    %5921 = vmatpush.bf16.msra.mxu0 %v3457
    %5922 = vmatpush.bf16.msra.mxu0 %v3453
    %5923 = vmatpush.bf16.msra.mxu0 %v3449
    %5924 = vmatpush.bf16.msra.mxu0 %v3445
    %5925 = vmatpush.bf16.msra.mxu0 %v3441
    %5926 = vmatpush.bf16.msra.mxu0 %v3437
    %5927 = vmatpush.bf16.msra.mxu0 %v3433
    %5928 = vmatmul.bf16.gmra.mxu0 %v985
    %v5929 = vpop.f32.mrf.mxu0
    %v5930 = vadd.f32 %v5916, %v5929
    %v5931 = vpop.f32.mrf.mxu0
    %v5932 = vadd.f32 %v5918, %v5931
    %5933 = vdwg.mxu0
    %5934 = vmatpush.bf16.msra.mxu0 %v3493
    %5935 = vmatpush.bf16.msra.mxu0 %v3489
    %5936 = vmatpush.bf16.msra.mxu0 %v3485
    %5937 = vmatpush.bf16.msra.mxu0 %v3481
    %5938 = vmatpush.bf16.msra.mxu0 %v3477
    %5939 = vmatpush.bf16.msra.mxu0 %v3473
    %5940 = vmatpush.bf16.msra.mxu0 %v3469
    %5941 = vmatpush.bf16.msra.mxu0 %v3465
    %5942 = vmatmul.bf16.gmra.mxu0 %v986
    %v5943 = vpop.f32.mrf.mxu0
    %v5944 = vadd.f32 %v5930, %v5943
    %v5945 = vpop.f32.mrf.mxu0
    %v5946 = vadd.f32 %v5932, %v5945
    %5947 = vdwg.mxu0
    %5948 = vmatpush.bf16.msra.mxu0 %v3525
    %5949 = vmatpush.bf16.msra.mxu0 %v3521
    %5950 = vmatpush.bf16.msra.mxu0 %v3517
    %5951 = vmatpush.bf16.msra.mxu0 %v3513
    %5952 = vmatpush.bf16.msra.mxu0 %v3509
    %5953 = vmatpush.bf16.msra.mxu0 %v3505
    %5954 = vmatpush.bf16.msra.mxu0 %v3501
    %5955 = vmatpush.bf16.msra.mxu0 %v3497
    %5956 = vmatmul.bf16.gmra.mxu0 %v987
    %v5957 = vpop.f32.mrf.mxu0
    %v5958 = vadd.f32 %v5944, %v5957
    %v5959 = vpop.f32.mrf.mxu0
    %v5960 = vadd.f32 %v5946, %v5959
    %5961 = vdwg.mxu0
    %5962 = vmatpush.bf16.msra.mxu0 %v3557
    %5963 = vmatpush.bf16.msra.mxu0 %v3553
    %5964 = vmatpush.bf16.msra.mxu0 %v3549
    %5965 = vmatpush.bf16.msra.mxu0 %v3545
    %5966 = vmatpush.bf16.msra.mxu0 %v3541
    %5967 = vmatpush.bf16.msra.mxu0 %v3537
    %5968 = vmatpush.bf16.msra.mxu0 %v3533
    %5969 = vmatpush.bf16.msra.mxu0 %v3529
    %5970 = vmatmul.bf16.gmra.mxu0 %v988
    %v5971 = vpop.f32.mrf.mxu0
    %v5972 = vadd.f32 %v5958, %v5971
    %v5973 = vpop.f32.mrf.mxu0
    %v5974 = vadd.f32 %v5960, %v5973
    %5975 = vdwg.mxu0
    %5976 = vmatpush.bf16.msra.mxu0 %v3589
    %5977 = vmatpush.bf16.msra.mxu0 %v3585
    %5978 = vmatpush.bf16.msra.mxu0 %v3581
    %5979 = vmatpush.bf16.msra.mxu0 %v3577
    %5980 = vmatpush.bf16.msra.mxu0 %v3573
    %5981 = vmatpush.bf16.msra.mxu0 %v3569
    %5982 = vmatpush.bf16.msra.mxu0 %v3565
    %5983 = vmatpush.bf16.msra.mxu0 %v3561
    %5984 = vmatmul.bf16.gmra.mxu0 %v989
    %v5985 = vpop.f32.mrf.mxu0
    %v5986 = vadd.f32 %v5972, %v5985
    %v5987 = vpop.f32.mrf.mxu0
    %v5988 = vadd.f32 %v5974, %v5987
    %5989 = vdwg.mxu0
    %5990 = vmatpush.bf16.msra.mxu0 %v3621
    %5991 = vmatpush.bf16.msra.mxu0 %v3617
    %5992 = vmatpush.bf16.msra.mxu0 %v3613
    %5993 = vmatpush.bf16.msra.mxu0 %v3609
    %5994 = vmatpush.bf16.msra.mxu0 %v3605
    %5995 = vmatpush.bf16.msra.mxu0 %v3601
    %5996 = vmatpush.bf16.msra.mxu0 %v3597
    %5997 = vmatpush.bf16.msra.mxu0 %v3593
    %5998 = vmatmul.bf16.gmra.mxu0 %v990
    %v5999 = vpop.f32.mrf.mxu0
    %v6000 = vadd.f32 %v5986, %v5999
    %v6001 = vpop.f32.mrf.mxu0
    %v6002 = vadd.f32 %v5988, %v6001
    %6003 = vdwg.mxu0
    %6004 = vmatpush.bf16.msra.mxu0 %v3653
    %6005 = vmatpush.bf16.msra.mxu0 %v3649
    %6006 = vmatpush.bf16.msra.mxu0 %v3645
    %6007 = vmatpush.bf16.msra.mxu0 %v3641
    %6008 = vmatpush.bf16.msra.mxu0 %v3637
    %6009 = vmatpush.bf16.msra.mxu0 %v3633
    %6010 = vmatpush.bf16.msra.mxu0 %v3629
    %6011 = vmatpush.bf16.msra.mxu0 %v3625
    %6012 = vmatmul.bf16.gmra.mxu0 %v991
    %v6013 = vpop.f32.mrf.mxu0
    %v6014 = vadd.f32 %v6000, %v6013
    %v6015 = vpop.f32.mrf.mxu0
    %v6016 = vadd.f32 %v6002, %v6015
    %6017 = vdwg.mxu0
    %6018 = vmatpush.bf16.msra.mxu0 %v3685
    %6019 = vmatpush.bf16.msra.mxu0 %v3681
    %6020 = vmatpush.bf16.msra.mxu0 %v3677
    %6021 = vmatpush.bf16.msra.mxu0 %v3673
    %6022 = vmatpush.bf16.msra.mxu0 %v3669
    %6023 = vmatpush.bf16.msra.mxu0 %v3665
    %6024 = vmatpush.bf16.msra.mxu0 %v3661
    %6025 = vmatpush.bf16.msra.mxu0 %v3657
    %6026 = vmatmul.bf16.gmra.mxu0 %v992
    %v6027 = vpop.f32.mrf.mxu0
    %v6028 = vadd.f32 %v6014, %v6027
    %v6029 = vpop.f32.mrf.mxu0
    %v6030 = vadd.f32 %v6016, %v6029
    %6031 = vdwg.mxu0
    %6032 = vmatpush.bf16.msra.mxu0 %v3717
    %6033 = vmatpush.bf16.msra.mxu0 %v3713
    %6034 = vmatpush.bf16.msra.mxu0 %v3709
    %6035 = vmatpush.bf16.msra.mxu0 %v3705
    %6036 = vmatpush.bf16.msra.mxu0 %v3701
    %6037 = vmatpush.bf16.msra.mxu0 %v3697
    %6038 = vmatpush.bf16.msra.mxu0 %v3693
    %6039 = vmatpush.bf16.msra.mxu0 %v3689
    %6040 = vmatmul.bf16.gmra.mxu0 %v993
    %v6041 = vpop.f32.mrf.mxu0
    %v6042 = vadd.f32 %v6028, %v6041
    %v6043 = vpop.f32.mrf.mxu0
    %v6044 = vadd.f32 %v6030, %v6043
    %6045 = vdwg.mxu0
    %6046 = vmatpush.bf16.msra.mxu0 %v3749
    %6047 = vmatpush.bf16.msra.mxu0 %v3745
    %6048 = vmatpush.bf16.msra.mxu0 %v3741
    %6049 = vmatpush.bf16.msra.mxu0 %v3737
    %6050 = vmatpush.bf16.msra.mxu0 %v3733
    %6051 = vmatpush.bf16.msra.mxu0 %v3729
    %6052 = vmatpush.bf16.msra.mxu0 %v3725
    %6053 = vmatpush.bf16.msra.mxu0 %v3721
    %6054 = vmatmul.bf16.gmra.mxu0 %v994
    %v6055 = vpop.f32.mrf.mxu0
    %v6056 = vadd.f32 %v6042, %v6055
    %v6057 = vpop.f32.mrf.mxu0
    %v6058 = vadd.f32 %v6044, %v6057
    %6059 = vdwg.mxu0
    %6060 = vmatpush.bf16.msra.mxu0 %v3781
    %6061 = vmatpush.bf16.msra.mxu0 %v3777
    %6062 = vmatpush.bf16.msra.mxu0 %v3773
    %6063 = vmatpush.bf16.msra.mxu0 %v3769
    %6064 = vmatpush.bf16.msra.mxu0 %v3765
    %6065 = vmatpush.bf16.msra.mxu0 %v3761
    %6066 = vmatpush.bf16.msra.mxu0 %v3757
    %6067 = vmatpush.bf16.msra.mxu0 %v3753
    %6068 = vmatmul.bf16.gmra.mxu0 %v995
    %v6069 = vpop.f32.mrf.mxu0
    %v6070 = vadd.f32 %v6056, %v6069
    %v6071 = vpop.f32.mrf.mxu0
    %v6072 = vadd.f32 %v6058, %v6071
    %6073 = vdwg.mxu0
    %6074 = vmatpush.bf16.msra.mxu0 %v3813
    %6075 = vmatpush.bf16.msra.mxu0 %v3809
    %6076 = vmatpush.bf16.msra.mxu0 %v3805
    %6077 = vmatpush.bf16.msra.mxu0 %v3801
    %6078 = vmatpush.bf16.msra.mxu0 %v3797
    %6079 = vmatpush.bf16.msra.mxu0 %v3793
    %6080 = vmatpush.bf16.msra.mxu0 %v3789
    %6081 = vmatpush.bf16.msra.mxu0 %v3785
    %6082 = vmatmul.bf16.gmra.mxu0 %v996
    %v6083 = vpop.f32.mrf.mxu0
    %v6084 = vadd.f32 %v6070, %v6083
    %v6085 = vpop.f32.mrf.mxu0
    %v6086 = vadd.f32 %v6072, %v6085
    %6087 = vdwg.mxu0
    %6088 = vmatpush.bf16.msra.mxu0 %v3845
    %6089 = vmatpush.bf16.msra.mxu0 %v3841
    %6090 = vmatpush.bf16.msra.mxu0 %v3837
    %6091 = vmatpush.bf16.msra.mxu0 %v3833
    %6092 = vmatpush.bf16.msra.mxu0 %v3829
    %6093 = vmatpush.bf16.msra.mxu0 %v3825
    %6094 = vmatpush.bf16.msra.mxu0 %v3821
    %6095 = vmatpush.bf16.msra.mxu0 %v3817
    %6096 = vmatmul.bf16.gmra.mxu0 %v997
    %v6097 = vpop.f32.mrf.mxu0
    %v6098 = vadd.f32 %v6084, %v6097
    %v6099 = vpop.f32.mrf.mxu0
    %v6100 = vadd.f32 %v6086, %v6099
    %6101 = vdwg.mxu0
    %6102 = vmatpush.bf16.msra.mxu0 %v3877
    %6103 = vmatpush.bf16.msra.mxu0 %v3873
    %6104 = vmatpush.bf16.msra.mxu0 %v3869
    %6105 = vmatpush.bf16.msra.mxu0 %v3865
    %6106 = vmatpush.bf16.msra.mxu0 %v3861
    %6107 = vmatpush.bf16.msra.mxu0 %v3857
    %6108 = vmatpush.bf16.msra.mxu0 %v3853
    %6109 = vmatpush.bf16.msra.mxu0 %v3849
    %6110 = vmatmul.bf16.gmra.mxu0 %v998
    %v6111 = vpop.f32.mrf.mxu0
    %v6112 = vadd.f32 %v6098, %v6111
    %v6113 = vpop.f32.mrf.mxu0
    %v6114 = vadd.f32 %v6100, %v6113
    %6115 = vdwg.mxu0
    %6116 = vmatpush.bf16.msra.mxu0 %v3909
    %6117 = vmatpush.bf16.msra.mxu0 %v3905
    %6118 = vmatpush.bf16.msra.mxu0 %v3901
    %6119 = vmatpush.bf16.msra.mxu0 %v3897
    %6120 = vmatpush.bf16.msra.mxu0 %v3893
    %6121 = vmatpush.bf16.msra.mxu0 %v3889
    %6122 = vmatpush.bf16.msra.mxu0 %v3885
    %6123 = vmatpush.bf16.msra.mxu0 %v3881
    %6124 = vmatmul.bf16.gmra.mxu0 %v999
    %v6125 = vpop.f32.mrf.mxu0
    %v6126 = vadd.f32 %v6112, %v6125
    %v6127 = vpop.f32.mrf.mxu0
    %v6128 = vadd.f32 %v6114, %v6127
    %6129 = vdwg.mxu0
    %6130 = vmatpush.bf16.msra.mxu0 %v3941
    %6131 = vmatpush.bf16.msra.mxu0 %v3937
    %6132 = vmatpush.bf16.msra.mxu0 %v3933
    %6133 = vmatpush.bf16.msra.mxu0 %v3929
    %6134 = vmatpush.bf16.msra.mxu0 %v3925
    %6135 = vmatpush.bf16.msra.mxu0 %v3921
    %6136 = vmatpush.bf16.msra.mxu0 %v3917
    %6137 = vmatpush.bf16.msra.mxu0 %v3913
    %6138 = vmatmul.bf16.gmra.mxu0 %v1000
    %v6139 = vpop.f32.mrf.mxu0
    %v6140 = vadd.f32 %v6126, %v6139
    %v6141 = vpop.f32.mrf.mxu0
    %v6142 = vadd.f32 %v6128, %v6141
    %6143 = vdwg.mxu0
    %6144 = vmatpush.bf16.msra.mxu0 %v3973
    %6145 = vmatpush.bf16.msra.mxu0 %v3969
    %6146 = vmatpush.bf16.msra.mxu0 %v3965
    %6147 = vmatpush.bf16.msra.mxu0 %v3961
    %6148 = vmatpush.bf16.msra.mxu0 %v3957
    %6149 = vmatpush.bf16.msra.mxu0 %v3953
    %6150 = vmatpush.bf16.msra.mxu0 %v3949
    %6151 = vmatpush.bf16.msra.mxu0 %v3945
    %6152 = vmatmul.bf16.gmra.mxu0 %v1001
    %v6153 = vpop.f32.mrf.mxu0
    %v6154 = vadd.f32 %v6140, %v6153
    %v6155 = vpop.f32.mrf.mxu0
    %v6156 = vadd.f32 %v6142, %v6155
    %6157 = vdwg.mxu0
    %6158 = vmatpush.bf16.msra.mxu0 %v4005
    %6159 = vmatpush.bf16.msra.mxu0 %v4001
    %6160 = vmatpush.bf16.msra.mxu0 %v3997
    %6161 = vmatpush.bf16.msra.mxu0 %v3993
    %6162 = vmatpush.bf16.msra.mxu0 %v3989
    %6163 = vmatpush.bf16.msra.mxu0 %v3985
    %6164 = vmatpush.bf16.msra.mxu0 %v3981
    %6165 = vmatpush.bf16.msra.mxu0 %v3977
    %6166 = vmatmul.bf16.gmra.mxu0 %v1002
    %v6167 = vpop.f32.mrf.mxu0
    %v6168 = vadd.f32 %v6154, %v6167
    %v6169 = vpop.f32.mrf.mxu0
    %v6170 = vadd.f32 %v6156, %v6169
    %6171 = vdwg.mxu0
    %6172 = vmatpush.bf16.msra.mxu0 %v4037
    %6173 = vmatpush.bf16.msra.mxu0 %v4033
    %6174 = vmatpush.bf16.msra.mxu0 %v4029
    %6175 = vmatpush.bf16.msra.mxu0 %v4025
    %6176 = vmatpush.bf16.msra.mxu0 %v4021
    %6177 = vmatpush.bf16.msra.mxu0 %v4017
    %6178 = vmatpush.bf16.msra.mxu0 %v4013
    %6179 = vmatpush.bf16.msra.mxu0 %v4009
    %6180 = vmatmul.bf16.gmra.mxu0 %v1003
    %v6181 = vpop.f32.mrf.mxu0
    %v6182 = vadd.f32 %v6168, %v6181
    %v6183 = vpop.f32.mrf.mxu0
    %v6184 = vadd.f32 %v6170, %v6183
    %6185 = vdwg.mxu0
    %6186 = vmatpush.bf16.msra.mxu0 %v4069
    %6187 = vmatpush.bf16.msra.mxu0 %v4065
    %6188 = vmatpush.bf16.msra.mxu0 %v4061
    %6189 = vmatpush.bf16.msra.mxu0 %v4057
    %6190 = vmatpush.bf16.msra.mxu0 %v4053
    %6191 = vmatpush.bf16.msra.mxu0 %v4049
    %6192 = vmatpush.bf16.msra.mxu0 %v4045
    %6193 = vmatpush.bf16.msra.mxu0 %v4041
    %6194 = vmatmul.bf16.gmra.mxu0 %v1004
    %v6195 = vpop.f32.mrf.mxu0
    %v6196 = vadd.f32 %v6182, %v6195
    %v6197 = vpop.f32.mrf.mxu0
    %v6198 = vadd.f32 %v6184, %v6197
    %6199 = vdwg.mxu0
    %6200 = vmatpush.bf16.msra.mxu0 %v4101
    %6201 = vmatpush.bf16.msra.mxu0 %v4097
    %6202 = vmatpush.bf16.msra.mxu0 %v4093
    %6203 = vmatpush.bf16.msra.mxu0 %v4089
    %6204 = vmatpush.bf16.msra.mxu0 %v4085
    %6205 = vmatpush.bf16.msra.mxu0 %v4081
    %6206 = vmatpush.bf16.msra.mxu0 %v4077
    %6207 = vmatpush.bf16.msra.mxu0 %v4073
    %6208 = vmatmul.bf16.gmra.mxu0 %v1005
    %v6209 = vpop.f32.mrf.mxu0
    %v6210 = vadd.f32 %v6196, %v6209
    %v6211 = vpop.f32.mrf.mxu0
    %v6212 = vadd.f32 %v6198, %v6211
    %6213 = vdwg.mxu0
    %v6214 = vmax.f32 %v5202, 0.0
    %v6215 = vmax.f32 %v5538, 0.0
    %v6216 = vmax.f32 %v5874, 0.0
    %v6217 = vmax.f32 %v6210, 0.0
    %v6218 = vmax.f32 %v5204, 0.0
    %v6219 = vmax.f32 %v5540, 0.0
    %v6220 = vmax.f32 %v5876, 0.0
    %v6221 = vmax.f32 %v6212, 0.0
    %v6222 = vpack.c.bf16 %v6218, %v6214
    %v6223 = vpack.c.bf16 %v6219, %v6215
    %v6224 = vpack.c.bf16 %v6220, %v6216
    %v6225 = vpack.c.bf16 %v6221, %v6217
    %v6226 = vld [vmem:[#allocation7] sm:$0xff]
    %v6227 = vld [vmem:[#allocation7 + $0x8] sm:$0xff]
    %v6228 = vld [vmem:[#allocation7 + $0x10] sm:$0xff]
    %v6229 = vld [vmem:[#allocation7 + $0x18] sm:$0xff]
    %v6230 = vld [vmem:[#allocation7 + $0x20] sm:$0xff]
    %v6231 = vld [vmem:[#allocation7 + $0x28] sm:$0xff]
    %v6232 = vld [vmem:[#allocation7 + $0x30] sm:$0xff]
    %v6233 = vld [vmem:[#allocation7 + $0x38] sm:$0xff]
    %v6234 = vld [vmem:[#allocation7 + $0x40] sm:$0xff]
    %v6235 = vld [vmem:[#allocation7 + $0x48] sm:$0xff]
    %v6236 = vld [vmem:[#allocation7 + $0x50] sm:$0xff]
    %v6237 = vld [vmem:[#allocation7 + $0x58] sm:$0xff]
    %v6238 = vld [vmem:[#allocation7 + $0x60] sm:$0xff]
    %v6239 = vld [vmem:[#allocation7 + $0x68] sm:$0xff]
    %v6240 = vld [vmem:[#allocation7 + $0x70] sm:$0xff]
    %v6241 = vld [vmem:[#allocation7 + $0x78] sm:$0xff]
    %v6242 = vld [vmem:[#allocation7 + $0x80] sm:$0xff]
    %v6243 = vld [vmem:[#allocation7 + $0x88] sm:$0xff]
    %v6244 = vld [vmem:[#allocation7 + $0x90] sm:$0xff]
    %v6245 = vld [vmem:[#allocation7 + $0x98] sm:$0xff]
    %v6246 = vld [vmem:[#allocation7 + $0xa0] sm:$0xff]
    %v6247 = vld [vmem:[#allocation7 + $0xa8] sm:$0xff]
    %v6248 = vld [vmem:[#allocation7 + $0xb0] sm:$0xff]
    %v6249 = vld [vmem:[#allocation7 + $0xb8] sm:$0xff]
    %v6250 = vld [vmem:[#allocation7 + $0xc0] sm:$0xff]
    %v6251 = vld [vmem:[#allocation7 + $0xc8] sm:$0xff]
    %v6252 = vld [vmem:[#allocation7 + $0xd0] sm:$0xff]
    %v6253 = vld [vmem:[#allocation7 + $0xd8] sm:$0xff]
    %v6254 = vld [vmem:[#allocation7 + $0xe0] sm:$0xff]
    %v6255 = vld [vmem:[#allocation7 + $0xe8] sm:$0xff]
    %v6256 = vld [vmem:[#allocation7 + $0xf0] sm:$0xff]
    %v6257 = vld [vmem:[#allocation7 + $0xf8] sm:$0xff]
    %v6258 = vld [vmem:[#allocation7 + $0x100] sm:$0xff]
    %v6259 = vld [vmem:[#allocation7 + $0x108] sm:$0xff]
    %v6260 = vld [vmem:[#allocation7 + $0x110] sm:$0xff]
    %v6261 = vld [vmem:[#allocation7 + $0x118] sm:$0xff]
    %v6262 = vld [vmem:[#allocation7 + $0x120] sm:$0xff]
    %v6263 = vld [vmem:[#allocation7 + $0x128] sm:$0xff]
    %v6264 = vld [vmem:[#allocation7 + $0x130] sm:$0xff]
    %v6265 = vld [vmem:[#allocation7 + $0x138] sm:$0xff]
    %v6266 = vld [vmem:[#allocation7 + $0x140] sm:$0xff]
    %v6267 = vld [vmem:[#allocation7 + $0x148] sm:$0xff]
    %v6268 = vld [vmem:[#allocation7 + $0x150] sm:$0xff]
    %v6269 = vld [vmem:[#allocation7 + $0x158] sm:$0xff]
    %v6270 = vld [vmem:[#allocation7 + $0x160] sm:$0xff]
    %v6271 = vld [vmem:[#allocation7 + $0x168] sm:$0xff]
    %v6272 = vld [vmem:[#allocation7 + $0x170] sm:$0xff]
    %v6273 = vld [vmem:[#allocation7 + $0x178] sm:$0xff]
    %v6274 = vld [vmem:[#allocation7 + $0x180] sm:$0xff]
    %v6275 = vld [vmem:[#allocation7 + $0x188] sm:$0xff]
    %v6276 = vld [vmem:[#allocation7 + $0x190] sm:$0xff]
    %v6277 = vld [vmem:[#allocation7 + $0x198] sm:$0xff]
    %v6278 = vld [vmem:[#allocation7 + $0x1a0] sm:$0xff]
    %v6279 = vld [vmem:[#allocation7 + $0x1a8] sm:$0xff]
    %v6280 = vld [vmem:[#allocation7 + $0x1b0] sm:$0xff]
    %v6281 = vld [vmem:[#allocation7 + $0x1b8] sm:$0xff]
    %v6282 = vld [vmem:[#allocation7 + $0x1c0] sm:$0xff]
    %v6283 = vld [vmem:[#allocation7 + $0x1c8] sm:$0xff]
    %v6284 = vld [vmem:[#allocation7 + $0x1d0] sm:$0xff]
    %v6285 = vld [vmem:[#allocation7 + $0x1d8] sm:$0xff]
    %v6286 = vld [vmem:[#allocation7 + $0x1e0] sm:$0xff]
    %v6287 = vld [vmem:[#allocation7 + $0x1e8] sm:$0xff]
    %v6288 = vld [vmem:[#allocation7 + $0x1f0] sm:$0xff]
    %v6289 = vld [vmem:[#allocation7 + $0x1f8] sm:$0xff]
    %v6354 = vunpack.c.l.b16 %v6226
    %v6355 = vunpack.c.h.b16 %v6226
    %v6356 = vunpack.c.l.b16 %v6227
    %v6357 = vunpack.c.h.b16 %v6227
    %v6358 = vunpack.c.l.b16 %v6228
    %v6359 = vunpack.c.h.b16 %v6228
    %v6360 = vunpack.c.l.b16 %v6229
    %v6361 = vunpack.c.h.b16 %v6229
    %v6362 = vunpack.c.l.b16 %v6230
    %v6363 = vunpack.c.h.b16 %v6230
    %v6364 = vunpack.c.l.b16 %v6231
    %v6365 = vunpack.c.h.b16 %v6231
    %v6366 = vunpack.c.l.b16 %v6232
    %v6367 = vunpack.c.h.b16 %v6232
    %v6368 = vunpack.c.l.b16 %v6233
    %v6369 = vunpack.c.h.b16 %v6233
    %v6370 = vunpack.c.l.b16 %v6234
    %v6371 = vunpack.c.h.b16 %v6234
    %v6372 = vunpack.c.l.b16 %v6235
    %v6373 = vunpack.c.h.b16 %v6235
    %v6374 = vunpack.c.l.b16 %v6236
    %v6375 = vunpack.c.h.b16 %v6236
    %v6376 = vunpack.c.l.b16 %v6237
    %v6377 = vunpack.c.h.b16 %v6237
    %v6378 = vunpack.c.l.b16 %v6238
    %v6379 = vunpack.c.h.b16 %v6238
    %v6380 = vunpack.c.l.b16 %v6239
    %v6381 = vunpack.c.h.b16 %v6239
    %v6382 = vunpack.c.l.b16 %v6240
    %v6383 = vunpack.c.h.b16 %v6240
    %v6384 = vunpack.c.l.b16 %v6241
    %v6385 = vunpack.c.h.b16 %v6241
    %v6386 = vunpack.c.l.b16 %v6242
    %v6387 = vunpack.c.h.b16 %v6242
    %v6388 = vunpack.c.l.b16 %v6243
    %v6389 = vunpack.c.h.b16 %v6243
    %v6390 = vunpack.c.l.b16 %v6244
    %v6391 = vunpack.c.h.b16 %v6244
    %v6392 = vunpack.c.l.b16 %v6245
    %v6393 = vunpack.c.h.b16 %v6245
    %v6394 = vunpack.c.l.b16 %v6246
    %v6395 = vunpack.c.h.b16 %v6246
    %v6396 = vunpack.c.l.b16 %v6247
    %v6397 = vunpack.c.h.b16 %v6247
    %v6398 = vunpack.c.l.b16 %v6248
    %v6399 = vunpack.c.h.b16 %v6248
    %v6400 = vunpack.c.l.b16 %v6249
    %v6401 = vunpack.c.h.b16 %v6249
    %v6402 = vunpack.c.l.b16 %v6250
    %v6403 = vunpack.c.h.b16 %v6250
    %v6404 = vunpack.c.l.b16 %v6251
    %v6405 = vunpack.c.h.b16 %v6251
    %v6406 = vunpack.c.l.b16 %v6252
    %v6407 = vunpack.c.h.b16 %v6252
    %v6408 = vunpack.c.l.b16 %v6253
    %v6409 = vunpack.c.h.b16 %v6253
    %v6410 = vunpack.c.l.b16 %v6254
    %v6411 = vunpack.c.h.b16 %v6254
    %v6412 = vunpack.c.l.b16 %v6255
    %v6413 = vunpack.c.h.b16 %v6255
    %v6414 = vunpack.c.l.b16 %v6256
    %v6415 = vunpack.c.h.b16 %v6256
    %v6416 = vunpack.c.l.b16 %v6257
    %v6417 = vunpack.c.h.b16 %v6257
    %v6418 = vunpack.c.l.b16 %v6258
    %v6419 = vunpack.c.h.b16 %v6258
    %v6420 = vunpack.c.l.b16 %v6259
    %v6421 = vunpack.c.h.b16 %v6259
    %v6422 = vunpack.c.l.b16 %v6260
    %v6423 = vunpack.c.h.b16 %v6260
    %v6424 = vunpack.c.l.b16 %v6261
    %v6425 = vunpack.c.h.b16 %v6261
    %v6426 = vunpack.c.l.b16 %v6262
    %v6427 = vunpack.c.h.b16 %v6262
    %v6428 = vunpack.c.l.b16 %v6263
    %v6429 = vunpack.c.h.b16 %v6263
    %v6430 = vunpack.c.l.b16 %v6264
    %v6431 = vunpack.c.h.b16 %v6264
    %v6432 = vunpack.c.l.b16 %v6265
    %v6433 = vunpack.c.h.b16 %v6265
    %v6434 = vunpack.c.l.b16 %v6266
    %v6435 = vunpack.c.h.b16 %v6266
    %v6436 = vunpack.c.l.b16 %v6267
    %v6437 = vunpack.c.h.b16 %v6267
    %v6438 = vunpack.c.l.b16 %v6268
    %v6439 = vunpack.c.h.b16 %v6268
    %v6440 = vunpack.c.l.b16 %v6269
    %v6441 = vunpack.c.h.b16 %v6269
    %v6442 = vunpack.c.l.b16 %v6270
    %v6443 = vunpack.c.h.b16 %v6270
    %v6444 = vunpack.c.l.b16 %v6271
    %v6445 = vunpack.c.h.b16 %v6271
    %v6446 = vunpack.c.l.b16 %v6272
    %v6447 = vunpack.c.h.b16 %v6272
    %v6448 = vunpack.c.l.b16 %v6273
    %v6449 = vunpack.c.h.b16 %v6273
    %v6450 = vunpack.c.l.b16 %v6274
    %v6451 = vunpack.c.h.b16 %v6274
    %v6452 = vunpack.c.l.b16 %v6275
    %v6453 = vunpack.c.h.b16 %v6275
    %v6454 = vunpack.c.l.b16 %v6276
    %v6455 = vunpack.c.h.b16 %v6276
    %v6456 = vunpack.c.l.b16 %v6277
    %v6457 = vunpack.c.h.b16 %v6277
    %v6458 = vunpack.c.l.b16 %v6278
    %v6459 = vunpack.c.h.b16 %v6278
    %v6460 = vunpack.c.l.b16 %v6279
    %v6461 = vunpack.c.h.b16 %v6279
    %v6462 = vunpack.c.l.b16 %v6280
    %v6463 = vunpack.c.h.b16 %v6280
    %v6464 = vunpack.c.l.b16 %v6281
    %v6465 = vunpack.c.h.b16 %v6281
    %v6466 = vunpack.c.l.b16 %v6282
    %v6467 = vunpack.c.h.b16 %v6282
    %v6468 = vunpack.c.l.b16 %v6283
    %v6469 = vunpack.c.h.b16 %v6283
    %v6470 = vunpack.c.l.b16 %v6284
    %v6471 = vunpack.c.h.b16 %v6284
    %v6472 = vunpack.c.l.b16 %v6285
    %v6473 = vunpack.c.h.b16 %v6285
    %v6474 = vunpack.c.l.b16 %v6286
    %v6475 = vunpack.c.h.b16 %v6286
    %v6476 = vunpack.c.l.b16 %v6287
    %v6477 = vunpack.c.h.b16 %v6287
    %v6478 = vunpack.c.l.b16 %v6288
    %v6479 = vunpack.c.h.b16 %v6288
    %v6480 = vunpack.c.l.b16 %v6289
    %v6481 = vunpack.c.h.b16 %v6289
    %v6482 = vpack.c.b16 %v6356, %v6354
    %v6483 = vpack.c.b16 %v6357, %v6355
    %v6484 = vpack.c.b16 %v6360, %v6358
    %v6485 = vpack.c.b16 %v6361, %v6359
    %v6486 = vpack.c.b16 %v6364, %v6362
    %v6487 = vpack.c.b16 %v6365, %v6363
    %v6488 = vpack.c.b16 %v6368, %v6366
    %v6489 = vpack.c.b16 %v6369, %v6367
    %v6490 = vpack.c.b16 %v6372, %v6370
    %v6491 = vpack.c.b16 %v6373, %v6371
    %v6492 = vpack.c.b16 %v6376, %v6374
    %v6493 = vpack.c.b16 %v6377, %v6375
    %v6494 = vpack.c.b16 %v6380, %v6378
    %v6495 = vpack.c.b16 %v6381, %v6379
    %v6496 = vpack.c.b16 %v6384, %v6382
    %v6497 = vpack.c.b16 %v6385, %v6383
    %v6498 = vpack.c.b16 %v6388, %v6386
    %v6499 = vpack.c.b16 %v6389, %v6387
    %v6500 = vpack.c.b16 %v6392, %v6390
    %v6501 = vpack.c.b16 %v6393, %v6391
    %v6502 = vpack.c.b16 %v6396, %v6394
    %v6503 = vpack.c.b16 %v6397, %v6395
    %v6504 = vpack.c.b16 %v6400, %v6398
    %v6505 = vpack.c.b16 %v6401, %v6399
    %v6506 = vpack.c.b16 %v6404, %v6402
    %v6507 = vpack.c.b16 %v6405, %v6403
    %v6508 = vpack.c.b16 %v6408, %v6406
    %v6509 = vpack.c.b16 %v6409, %v6407
    %v6510 = vpack.c.b16 %v6412, %v6410
    %v6511 = vpack.c.b16 %v6413, %v6411
    %v6512 = vpack.c.b16 %v6416, %v6414
    %v6513 = vpack.c.b16 %v6417, %v6415
    %v6514 = vpack.c.b16 %v6420, %v6418
    %v6515 = vpack.c.b16 %v6421, %v6419
    %v6516 = vpack.c.b16 %v6424, %v6422
    %v6517 = vpack.c.b16 %v6425, %v6423
    %v6518 = vpack.c.b16 %v6428, %v6426
    %v6519 = vpack.c.b16 %v6429, %v6427
    %v6520 = vpack.c.b16 %v6432, %v6430
    %v6521 = vpack.c.b16 %v6433, %v6431
    %v6522 = vpack.c.b16 %v6436, %v6434
    %v6523 = vpack.c.b16 %v6437, %v6435
    %v6524 = vpack.c.b16 %v6440, %v6438
    %v6525 = vpack.c.b16 %v6441, %v6439
    %v6526 = vpack.c.b16 %v6444, %v6442
    %v6527 = vpack.c.b16 %v6445, %v6443
    %v6528 = vpack.c.b16 %v6448, %v6446
    %v6529 = vpack.c.b16 %v6449, %v6447
    %v6530 = vpack.c.b16 %v6452, %v6450
    %v6531 = vpack.c.b16 %v6453, %v6451
    %v6532 = vpack.c.b16 %v6456, %v6454
    %v6533 = vpack.c.b16 %v6457, %v6455
    %v6534 = vpack.c.b16 %v6460, %v6458
    %v6535 = vpack.c.b16 %v6461, %v6459
    %v6536 = vpack.c.b16 %v6464, %v6462
    %v6537 = vpack.c.b16 %v6465, %v6463
    %v6538 = vpack.c.b16 %v6468, %v6466
    %v6539 = vpack.c.b16 %v6469, %v6467
    %v6540 = vpack.c.b16 %v6472, %v6470
    %v6541 = vpack.c.b16 %v6473, %v6471
    %v6542 = vpack.c.b16 %v6476, %v6474
    %v6543 = vpack.c.b16 %v6477, %v6475
    %v6544 = vpack.c.b16 %v6480, %v6478
    %v6545 = vpack.c.b16 %v6481, %v6479
    %6610 = vmatpush.bf16.msra.mxu0 %v6496
    %6611 = vmatpush.bf16.msra.mxu0 %v6494
    %6612 = vmatpush.bf16.msra.mxu0 %v6492
    %6613 = vmatpush.bf16.msra.mxu0 %v6490
    %6614 = vmatpush.bf16.msra.mxu0 %v6488
    %6615 = vmatpush.bf16.msra.mxu0 %v6486
    %6616 = vmatpush.bf16.msra.mxu0 %v6484
    %6617 = vmatpush.bf16.msra.mxu0 %v6482
    %6618 = vmatmul.bf16.gmra.mxu0 %v6222
    %v6619 = vpop.f32.mrf.mxu0
    %v6620 = vadd.f32 0.0, %v6619
    %v6621 = vpop.f32.mrf.mxu0
    %v6622 = vadd.f32 0.0, %v6621
    %6623 = vdwg.mxu0
    %6624 = vmatpush.bf16.msra.mxu0 %v6512
    %6625 = vmatpush.bf16.msra.mxu0 %v6510
    %6626 = vmatpush.bf16.msra.mxu0 %v6508
    %6627 = vmatpush.bf16.msra.mxu0 %v6506
    %6628 = vmatpush.bf16.msra.mxu0 %v6504
    %6629 = vmatpush.bf16.msra.mxu0 %v6502
    %6630 = vmatpush.bf16.msra.mxu0 %v6500
    %6631 = vmatpush.bf16.msra.mxu0 %v6498
    %6632 = vmatmul.bf16.gmra.mxu0 %v6223
    %v6633 = vpop.f32.mrf.mxu0
    %v6634 = vadd.f32 %v6620, %v6633
    %v6635 = vpop.f32.mrf.mxu0
    %v6636 = vadd.f32 %v6622, %v6635
    %6637 = vdwg.mxu0
    %6638 = vmatpush.bf16.msra.mxu0 %v6528
    %6639 = vmatpush.bf16.msra.mxu0 %v6526
    %6640 = vmatpush.bf16.msra.mxu0 %v6524
    %6641 = vmatpush.bf16.msra.mxu0 %v6522
    %6642 = vmatpush.bf16.msra.mxu0 %v6520
    %6643 = vmatpush.bf16.msra.mxu0 %v6518
    %6644 = vmatpush.bf16.msra.mxu0 %v6516
    %6645 = vmatpush.bf16.msra.mxu0 %v6514
    %6646 = vmatmul.bf16.gmra.mxu0 %v6224
    %v6647 = vpop.f32.mrf.mxu0
    %v6648 = vadd.f32 %v6634, %v6647
    %v6649 = vpop.f32.mrf.mxu0
    %v6650 = vadd.f32 %v6636, %v6649
    %6651 = vdwg.mxu0
    %6652 = vmatpush.bf16.msra.mxu0 %v6544
    %6653 = vmatpush.bf16.msra.mxu0 %v6542
    %6654 = vmatpush.bf16.msra.mxu0 %v6540
    %6655 = vmatpush.bf16.msra.mxu0 %v6538
    %6656 = vmatpush.bf16.msra.mxu0 %v6536
    %6657 = vmatpush.bf16.msra.mxu0 %v6534
    %6658 = vmatpush.bf16.msra.mxu0 %v6532
    %6659 = vmatpush.bf16.msra.mxu0 %v6530
    %6660 = vmatmul.bf16.gmra.mxu0 %v6225
    %v6661 = vpop.f32.mrf.mxu0
    %v6662 = vadd.f32 %v6648, %v6661
    %v6663 = vpop.f32.mrf.mxu0
    %v6664 = vadd.f32 %v6650, %v6663
    %6665 = vdwg.mxu0
    %6666 = vmatpush.bf16.msra.mxu0 %v6497
    %6667 = vmatpush.bf16.msra.mxu0 %v6495
    %6668 = vmatpush.bf16.msra.mxu0 %v6493
    %6669 = vmatpush.bf16.msra.mxu0 %v6491
    %6670 = vmatpush.bf16.msra.mxu0 %v6489
    %6671 = vmatpush.bf16.msra.mxu0 %v6487
    %6672 = vmatpush.bf16.msra.mxu0 %v6485
    %6673 = vmatpush.bf16.msra.mxu0 %v6483
    %6674 = vmatmul.bf16.gmra.mxu0 %v6222
    %v6675 = vpop.f32.mrf.mxu0
    %v6676 = vadd.f32 0.0, %v6675
    %v6677 = vpop.f32.mrf.mxu0
    %v6678 = vadd.f32 0.0, %v6677
    %6679 = vdwg.mxu0
    %6680 = vmatpush.bf16.msra.mxu0 %v6513
    %6681 = vmatpush.bf16.msra.mxu0 %v6511
    %6682 = vmatpush.bf16.msra.mxu0 %v6509
    %6683 = vmatpush.bf16.msra.mxu0 %v6507
    %6684 = vmatpush.bf16.msra.mxu0 %v6505
    %6685 = vmatpush.bf16.msra.mxu0 %v6503
    %6686 = vmatpush.bf16.msra.mxu0 %v6501
    %6687 = vmatpush.bf16.msra.mxu0 %v6499
    %6688 = vmatmul.bf16.gmra.mxu0 %v6223
    %v6689 = vpop.f32.mrf.mxu0
    %v6690 = vadd.f32 %v6676, %v6689
    %v6691 = vpop.f32.mrf.mxu0
    %v6692 = vadd.f32 %v6678, %v6691
    %6693 = vdwg.mxu0
    %6694 = vmatpush.bf16.msra.mxu0 %v6529
    %6695 = vmatpush.bf16.msra.mxu0 %v6527
    %6696 = vmatpush.bf16.msra.mxu0 %v6525
    %6697 = vmatpush.bf16.msra.mxu0 %v6523
    %6698 = vmatpush.bf16.msra.mxu0 %v6521
    %6699 = vmatpush.bf16.msra.mxu0 %v6519
    %6700 = vmatpush.bf16.msra.mxu0 %v6517
    %6701 = vmatpush.bf16.msra.mxu0 %v6515
    %6702 = vmatmul.bf16.gmra.mxu0 %v6224
    %v6703 = vpop.f32.mrf.mxu0
    %v6704 = vadd.f32 %v6690, %v6703
    %v6705 = vpop.f32.mrf.mxu0
    %v6706 = vadd.f32 %v6692, %v6705
    %6707 = vdwg.mxu0
    %6708 = vmatpush.bf16.msra.mxu0 %v6545
    %6709 = vmatpush.bf16.msra.mxu0 %v6543
    %6710 = vmatpush.bf16.msra.mxu0 %v6541
    %6711 = vmatpush.bf16.msra.mxu0 %v6539
    %6712 = vmatpush.bf16.msra.mxu0 %v6537
    %6713 = vmatpush.bf16.msra.mxu0 %v6535
    %6714 = vmatpush.bf16.msra.mxu0 %v6533
    %6715 = vmatpush.bf16.msra.mxu0 %v6531
    %6716 = vmatmul.bf16.gmra.mxu0 %v6225
    %v6717 = vpop.f32.mrf.mxu0
    %v6718 = vadd.f32 %v6704, %v6717
    %v6719 = vpop.f32.mrf.mxu0
    %v6720 = vadd.f32 %v6706, %v6719
    %6721 = vdwg.mxu0
    %v6722 = vmax.f32 %v6662, 0.0
    %v6723 = vmax.f32 %v6718, 0.0
    %v6724 = vmax.f32 %v6664, 0.0
    %v6725 = vmax.f32 %v6720, 0.0
    %v6726 = vpack.c.bf16 %v6724, %v6722
    %v6727 = vpack.c.bf16 %v6725, %v6723
    %v6728 = vld [vmem:[#allocation8] sm:$0xf]
    %v6729 = vld [vmem:[#allocation8 + $0x4] sm:$0xf]
    %v6730 = vld [vmem:[#allocation8 + $0x8] sm:$0xf]
    %v6731 = vld [vmem:[#allocation8 + $0xc] sm:$0xf]
    %v6732 = vld [vmem:[#allocation8 + $0x10] sm:$0xf]
    %v6733 = vld [vmem:[#allocation8 + $0x14] sm:$0xf]
    %v6734 = vld [vmem:[#allocation8 + $0x18] sm:$0xf]
    %v6735 = vld [vmem:[#allocation8 + $0x1c] sm:$0xf]
    %v6736 = vld [vmem:[#allocation8 + $0x20] sm:$0xf]
    %v6737 = vld [vmem:[#allocation8 + $0x24] sm:$0xf]
    %v6738 = vld [vmem:[#allocation8 + $0x28] sm:$0xf]
    %v6739 = vld [vmem:[#allocation8 + $0x2c] sm:$0xf]
    %v6740 = vld [vmem:[#allocation8 + $0x30] sm:$0xf]
    %v6741 = vld [vmem:[#allocation8 + $0x34] sm:$0xf]
    %v6742 = vld [vmem:[#allocation8 + $0x38] sm:$0xf]
    %v6743 = vld [vmem:[#allocation8 + $0x3c] sm:$0xf]
    %v6744 = vld [vmem:[#allocation8 + $0x40] sm:$0xf]
    %v6745 = vld [vmem:[#allocation8 + $0x44] sm:$0xf]
    %v6746 = vld [vmem:[#allocation8 + $0x48] sm:$0xf]
    %v6747 = vld [vmem:[#allocation8 + $0x4c] sm:$0xf]
    %v6748 = vld [vmem:[#allocation8 + $0x50] sm:$0xf]
    %v6749 = vld [vmem:[#allocation8 + $0x54] sm:$0xf]
    %v6750 = vld [vmem:[#allocation8 + $0x58] sm:$0xf]
    %v6751 = vld [vmem:[#allocation8 + $0x5c] sm:$0xf]
    %v6752 = vld [vmem:[#allocation8 + $0x60] sm:$0xf]
    %v6753 = vld [vmem:[#allocation8 + $0x64] sm:$0xf]
    %v6754 = vld [vmem:[#allocation8 + $0x68] sm:$0xf]
    %v6755 = vld [vmem:[#allocation8 + $0x6c] sm:$0xf]
    %v6756 = vld [vmem:[#allocation8 + $0x70] sm:$0xf]
    %v6757 = vld [vmem:[#allocation8 + $0x74] sm:$0xf]
    %v6758 = vld [vmem:[#allocation8 + $0x78] sm:$0xf]
    %v6759 = vld [vmem:[#allocation8 + $0x7c] sm:$0xf]
    %v6792 = vunpack.c.l.b16 %v6728
    %v6793 = vunpack.c.l.b16 %v6729
    %v6794 = vunpack.c.l.b16 %v6730
    %v6795 = vunpack.c.l.b16 %v6731
    %v6796 = vunpack.c.l.b16 %v6732
    %v6797 = vunpack.c.l.b16 %v6733
    %v6798 = vunpack.c.l.b16 %v6734
    %v6799 = vunpack.c.l.b16 %v6735
    %v6800 = vunpack.c.l.b16 %v6736
    %v6801 = vunpack.c.l.b16 %v6737
    %v6802 = vunpack.c.l.b16 %v6738
    %v6803 = vunpack.c.l.b16 %v6739
    %v6804 = vunpack.c.l.b16 %v6740
    %v6805 = vunpack.c.l.b16 %v6741
    %v6806 = vunpack.c.l.b16 %v6742
    %v6807 = vunpack.c.l.b16 %v6743
    %v6808 = vunpack.c.l.b16 %v6744
    %v6809 = vunpack.c.l.b16 %v6745
    %v6810 = vunpack.c.l.b16 %v6746
    %v6811 = vunpack.c.l.b16 %v6747
    %v6812 = vunpack.c.l.b16 %v6748
    %v6813 = vunpack.c.l.b16 %v6749
    %v6814 = vunpack.c.l.b16 %v6750
    %v6815 = vunpack.c.l.b16 %v6751
    %v6816 = vunpack.c.l.b16 %v6752
    %v6817 = vunpack.c.l.b16 %v6753
    %v6818 = vunpack.c.l.b16 %v6754
    %v6819 = vunpack.c.l.b16 %v6755
    %v6820 = vunpack.c.l.b16 %v6756
    %v6821 = vunpack.c.l.b16 %v6757
    %v6822 = vunpack.c.l.b16 %v6758
    %v6823 = vunpack.c.l.b16 %v6759
    %v6824 = vpack.c.b16 %v6793, %v6792
    %v6825 = vpack.c.b16 %v6795, %v6794
    %v6826 = vpack.c.b16 %v6797, %v6796
    %v6827 = vpack.c.b16 %v6799, %v6798
    %v6828 = vpack.c.b16 %v6801, %v6800
    %v6829 = vpack.c.b16 %v6803, %v6802
    %v6830 = vpack.c.b16 %v6805, %v6804
    %v6831 = vpack.c.b16 %v6807, %v6806
    %v6832 = vpack.c.b16 %v6809, %v6808
    %v6833 = vpack.c.b16 %v6811, %v6810
    %v6834 = vpack.c.b16 %v6813, %v6812
    %v6835 = vpack.c.b16 %v6815, %v6814
    %v6836 = vpack.c.b16 %v6817, %v6816
    %v6837 = vpack.c.b16 %v6819, %v6818
    %v6838 = vpack.c.b16 %v6821, %v6820
    %v6839 = vpack.c.b16 %v6823, %v6822
    %6856 = vmatpush.bf16.msra.mxu0 %v6831
    %6857 = vmatpush.bf16.msra.mxu0 %v6830
    %6858 = vmatpush.bf16.msra.mxu0 %v6829
    %6859 = vmatpush.bf16.msra.mxu0 %v6828
    %6860 = vmatpush.bf16.msra.mxu0 %v6827
    %6861 = vmatpush.bf16.msra.mxu0 %v6826
    %6862 = vmatpush.bf16.msra.mxu0 %v6825
    %6863 = vmatpush.bf16.msra.mxu0 %v6824
    %6864 = vmatmul.bf16.gmra.mxu0 %v6726
    %v6865 = vpop.f32.mrf.mxu0
    %v6866 = vadd.f32 0.0, %v6865
    %v6867 = vpop.f32.mrf.mxu0
    %v6868 = vadd.f32 0.0, %v6867
    %6869 = vdwg.mxu0
    %6870 = vmatpush.bf16.msra.mxu0 %v6839
    %6871 = vmatpush.bf16.msra.mxu0 %v6838
    %6872 = vmatpush.bf16.msra.mxu0 %v6837
    %6873 = vmatpush.bf16.msra.mxu0 %v6836
    %6874 = vmatpush.bf16.msra.mxu0 %v6835
    %6875 = vmatpush.bf16.msra.mxu0 %v6834
    %6876 = vmatpush.bf16.msra.mxu0 %v6833
    %6877 = vmatpush.bf16.msra.mxu0 %v6832
    %6878 = vmatmul.bf16.gmra.mxu0 %v6727
    %v6879 = vpop.f32.mrf.mxu0
    %v6880 = vadd.f32 %v6866, %v6879
    %v6881 = vpop.f32.mrf.mxu0
    %v6882 = vadd.f32 %v6868, %v6881
    %6883 = vdwg.mxu0
    %v6884 = vmax.f32 %v6880, 0.0
    %v6885 = vmax.f32 %v6882, 0.0
    %v6886 = vpack.c.bf16 %v6885, %v6884
    %v6887 = vld [vmem:[#allocation10] sm:$0xf]
    %v6888 = vld [vmem:[#allocation10 + $0x4] sm:$0xf]
    %v6889 = vld [vmem:[#allocation10 + $0x8] sm:$0xf]
    %v6890 = vld [vmem:[#allocation10 + $0xc] sm:$0xf]
    %v6891 = vld [vmem:[#allocation10 + $0x10] sm:$0xf]
    %v6892 = vld [vmem:[#allocation10 + $0x14] sm:$0xf]
    %v6893 = vld [vmem:[#allocation10 + $0x18] sm:$0xf]
    %v6894 = vld [vmem:[#allocation10 + $0x1c] sm:$0xf]
    %v6895 = vld [vmem:[#allocation10 + $0x20] sm:$0xf]
    %v6896 = vld [vmem:[#allocation10 + $0x24] sm:$0xf]
    %v6897 = vld [vmem:[#allocation10 + $0x28] sm:$0xf]
    %v6898 = vld [vmem:[#allocation10 + $0x2c] sm:$0xf]
    %v6899 = vld [vmem:[#allocation10 + $0x30] sm:$0xf]
    %v6900 = vld [vmem:[#allocation10 + $0x34] sm:$0xf]
    %v6901 = vld [vmem:[#allocation10 + $0x38] sm:$0xf]
    %v6902 = vld [vmem:[#allocation10 + $0x3c] sm:$0xf]
    %v6919 = vunpack.c.l.b16 %v6887
    %v6920 = vunpack.c.l.b16 %v6888
    %v6921 = vunpack.c.l.b16 %v6889
    %v6922 = vunpack.c.l.b16 %v6890
    %v6923 = vunpack.c.l.b16 %v6891
    %v6924 = vunpack.c.l.b16 %v6892
    %v6925 = vunpack.c.l.b16 %v6893
    %v6926 = vunpack.c.l.b16 %v6894
    %v6927 = vunpack.c.l.b16 %v6895
    %v6928 = vunpack.c.l.b16 %v6896
    %v6929 = vunpack.c.l.b16 %v6897
    %v6930 = vunpack.c.l.b16 %v6898
    %v6931 = vunpack.c.l.b16 %v6899
    %v6932 = vunpack.c.l.b16 %v6900
    %v6933 = vunpack.c.l.b16 %v6901
    %v6934 = vunpack.c.l.b16 %v6902
    %v6935 = vpack.c.b16 %v6920, %v6919
    %v6936 = vpack.c.b16 %v6922, %v6921
    %v6937 = vpack.c.b16 %v6924, %v6923
    %v6938 = vpack.c.b16 %v6926, %v6925
    %v6939 = vpack.c.b16 %v6928, %v6927
    %v6940 = vpack.c.b16 %v6930, %v6929
    %v6941 = vpack.c.b16 %v6932, %v6931
    %v6942 = vpack.c.b16 %v6934, %v6933
    %6951 = vmatpush.bf16.msra.mxu0 %v6942
    %6952 = vmatpush.bf16.msra.mxu0 %v6941
    %6953 = vmatpush.bf16.msra.mxu0 %v6940
    %6954 = vmatpush.bf16.msra.mxu0 %v6939
    %6955 = vmatpush.bf16.msra.mxu0 %v6938
    %6956 = vmatpush.bf16.msra.mxu0 %v6937
    %6957 = vmatpush.bf16.msra.mxu0 %v6936
    %6958 = vmatpush.bf16.msra.mxu0 %v6935
    %6959 = vmatmul.bf16.gmra.mxu0 %v6886
    %v6960 = vpop.f32.mrf.mxu0
    %v6961 = vadd.f32 0.0, %v6960
    %v6962 = vpop.f32.mrf.mxu0
    %v6963 = vadd.f32 0.0, %v6962
    %6964 = vdwg.mxu0
    %v6965 = vmax.f32 %v6961, 0.0
    %v6966 = vmax.f32 %v6963, 0.0
    %v6967 = vpack.c.bf16 %v6966, %v6965
    %v6968 = vld [vmem:[#allocation11] sm:$0xf]
    %v6969 = vld [vmem:[#allocation11 + $0x4] sm:$0xf]
    %v6970 = vld [vmem:[#allocation11 + $0x8] sm:$0xf]
    %v6971 = vld [vmem:[#allocation11 + $0xc] sm:$0xf]
    %v6972 = vld [vmem:[#allocation11 + $0x10] sm:$0xf]
    %v6973 = vld [vmem:[#allocation11 + $0x14] sm:$0xf]
    %v6974 = vld [vmem:[#allocation11 + $0x18] sm:$0xf]
    %v6975 = vld [vmem:[#allocation11 + $0x1c] sm:$0xf]
    %v6976 = vld [vmem:[#allocation11 + $0x20] sm:$0xf]
    %v6977 = vld [vmem:[#allocation11 + $0x24] sm:$0xf]
    %v6978 = vld [vmem:[#allocation11 + $0x28] sm:$0xf]
    %v6979 = vld [vmem:[#allocation11 + $0x2c] sm:$0xf]
    %v6980 = vld [vmem:[#allocation11 + $0x30] sm:$0xf]
    %v6981 = vld [vmem:[#allocation11 + $0x34] sm:$0xf]
    %v6982 = vld [vmem:[#allocation11 + $0x38] sm:$0xf]
    %v6983 = vld [vmem:[#allocation11 + $0x3c] sm:$0xf]
    %v7000 = vunpack.c.l.b16 %v6968
    %v7001 = vunpack.c.l.b16 %v6969
    %v7002 = vunpack.c.l.b16 %v6970
    %v7003 = vunpack.c.l.b16 %v6971
    %v7004 = vunpack.c.l.b16 %v6972
    %v7005 = vunpack.c.l.b16 %v6973
    %v7006 = vunpack.c.l.b16 %v6974
    %v7007 = vunpack.c.l.b16 %v6975
    %v7008 = vunpack.c.l.b16 %v6976
    %v7009 = vunpack.c.l.b16 %v6977
    %v7010 = vunpack.c.l.b16 %v6978
    %v7011 = vunpack.c.l.b16 %v6979
    %v7012 = vunpack.c.l.b16 %v6980
    %v7013 = vunpack.c.l.b16 %v6981
    %v7014 = vunpack.c.l.b16 %v6982
    %v7015 = vunpack.c.l.b16 %v6983
    %v7016 = vpack.c.b16 %v7001, %v7000
    %v7017 = vpack.c.b16 %v7003, %v7002
    %v7018 = vpack.c.b16 %v7005, %v7004
    %v7019 = vpack.c.b16 %v7007, %v7006
    %v7020 = vpack.c.b16 %v7009, %v7008
    %v7021 = vpack.c.b16 %v7011, %v7010
    %v7022 = vpack.c.b16 %v7013, %v7012
    %v7023 = vpack.c.b16 %v7015, %v7014
    %7032 = vmatpush.bf16.msra.mxu0 %v7023
    %7033 = vmatpush.bf16.msra.mxu0 %v7022
    %7034 = vmatpush.bf16.msra.mxu0 %v7021
    %7035 = vmatpush.bf16.msra.mxu0 %v7020
    %7036 = vmatpush.bf16.msra.mxu0 %v7019
    %7037 = vmatpush.bf16.msra.mxu0 %v7018
    %7038 = vmatpush.bf16.msra.mxu0 %v7017
    %7039 = vmatpush.bf16.msra.mxu0 %v7016
    %7040 = vmatmul.bf16.gmra.mxu0 %v6967
    %v7041 = vpop.f32.mrf.mxu0
    %v7042 = vadd.f32 0.0, %v7041
    %v7043 = vpop.f32.mrf.mxu0
    %v7044 = vadd.f32 0.0, %v7043
    %7045 = vdwg.mxu0
    %v7046 = vlaneseq
    %v7047 = vand.u32 %v7046, 127
    %vm7048 = vcmp.lt.s32.totalorder %v7047, 10
    %v7049 = vsel %vm7048, %v7042, -1e+30
    %v7050 = vsel %vm7048, %v7044, -1e+30
    %7051 = vmax.xlane.f32.xlu0 %v7049
    %v7052 = vpop.xlane.xlu0 %7051
    %7053 = vmax.xlane.f32.xlu0 %v7050
    %v7054 = vpop.xlane.xlu0 %7053
    %v7055 = vsub.f32 %v7049, %v7052
    %v7056 = vsub.f32 %v7050, %v7054
    %v7057 = vmul.f32 %v7055, 1.442695
    %v7058 = vpow.pop %v7057
    %v7059 = vmul.f32 %v7056, 1.442695
    %v7060 = vpow.pop %v7059
    %7061 = vadd.xlane.f32.xlu0 %v7058
    %v7062 = vpop.xlane.xlu0 %7061
    %7063 = vadd.xlane.f32.xlu0 %v7060
    %v7064 = vpop.xlane.xlu0 %7063
    %v7065 = vlog2.pop %v7062
    %v7066 = vmul.f32 %v7065, 0.6931472
    %v7067 = vlog2.pop %v7064
    %v7068 = vmul.f32 %v7067, 0.6931472
    %v7069 = vsub.f32 %v7055, %v7066
    %v7070 = vsub.f32 %v7056, %v7068
    %7071 = vst [vmem:[#allocation13] sm:$0xff] %v7069
    %7072 = vst [vmem:[#allocation13 + $0x8] sm:$0xff] %v7070
    // Predicated region
    $region50: #{tpu_custom_call.1} parent=1 // pred_check
      _
    $region51: #{tpu_custom_call.1} parent=1 // pred_check_branch
      %7074 = sbr.rel (0) target = $region53
    $region52: #{tpu_custom_call.1} parent=1 // pred_region
      %7076 = vsyncadd [#allocation4], 0
      %s7077 = sshll.u32 [#allocation13], 4
      %s7078 = int_to_ptr.vmem [resolvable:$true] %s7077
      %s7079 = sshll.u32 %s6, 4
      %s7080 = int_to_ptr.hbm [resolvable:$true] %s7079
      %7085 = dma.vmem_to_hbm [thread:$0]  %s7078, 256, %s7080, [#allocation4], 128, 128, 8
    $region53: #{tpu_custom_call.1} parent=1 // pred_fallthru
      _
    // Predicated region
    $region54: #{tpu_custom_call.1} parent=1 // pred_check
      _
    $region55: #{tpu_custom_call.1} parent=1 // pred_check_branch
      %7087 = sbr.rel (0) target = $region57
    $region56: #{tpu_custom_call.1} parent=1 // pred_region
      %7089 = dma.done [#allocation4], 256
    $region57: #{tpu_custom_call.1} parent=1 // pred_fallthru
      _
    %7090 = vsyncpa [#allocation3], 1
    %7091 = vsyncpa [#allocation6], 1
    %7092 = vsyncpa [#allocation9], 1
    %7093 = vsyncpa [#allocation12], 1
    %7094 = vsyncpa [#allocation4], 1

</llo_original>
